<compile_context>
chip_gen: v6e
topology: v6e:2x2x1
jax: 0.10.0
libtpu: 0.0.40
codegen_flags: <defaults>
</compile_context>

<pallas_src>
import math

import jax
import jax.numpy as jnp
from jax import lax
from jax.experimental import pallas as pl
from jax.experimental.pallas import tpu as pltpu

HIDDEN = 32
NUM_HEADS = 4
HEAD_DIM = HIDDEN // NUM_HEADS
TAU = 0.1
EPS = 1e-5
SCALE = math.sqrt(HEAD_DIM)
NEG_INF = float("-inf")


def _round_up(x, m):
    return (x + m - 1) // m * m


def _fit_tile(t, n_pad):
    """Largest multiple of 128 that is <= t and divides n_pad (n_pad % 128 == 0)."""
    t = max(128, min(t, n_pad))
    t -= t % 128
    while n_pad % t:
        t -= 128
    return t


def _default_exp_dtype():
    # bf16 exp hits the EUP bf16 path on v6e/v7x; v5e and older have no bf16 EUP.
    try:
        kind = jax.devices()[0].device_kind.lower()
    except Exception:
        return jnp.float32
    return jnp.bfloat16 if ("v6" in kind or "v7" in kind) else jnp.float32


def _layer_norm(x, gamma, beta):
    mu = jnp.mean(x, axis=-1, keepdims=True)
    var = jnp.mean((x - mu) ** 2, axis=-1, keepdims=True)
    return (x - mu) * lax.rsqrt(var + EPS) * gamma + beta


# ---------------------------------------------------------------------------
# Pre-pass kernel: Z -> (Z_norm, Q, K), computed once per row.
# pvec rows: 0 ln1_g, 1 ln1_b, 2 b1, 3 bq_folded, 4 bk_folded, 5 ln2_g, 6 ln2_b, 7 pad
# ---------------------------------------------------------------------------
def _prepass_kernel(z_ref, pvec_ref, w1_ref, wq_ref, wk_ref,
                    zn_ref, q_ref, k_ref):
    z = z_ref[...].astype(jnp.float32)
    g1 = pvec_ref[0:1, :]
    be1 = pvec_ref[1:2, :]
    b1 = pvec_ref[2:3, :]
    bq = pvec_ref[3:4, :]
    bk = pvec_ref[4:5, :]

    zn = _layer_norm(z, g1, be1)
    h = jnp.dot(zn.astype(jnp.bfloat16), w1_ref[...],
                preferred_element_type=jnp.float32) + b1
    h = jnp.maximum(h, 0.0).astype(jnp.bfloat16)
    q = jnp.dot(h, wq_ref[...], preferred_element_type=jnp.float32) + bq
    k = jnp.dot(h, wk_ref[...], preferred_element_type=jnp.float32) + bk

    zn_ref[...] = zn.astype(jnp.bfloat16)
    q_ref[...] = q.astype(jnp.bfloat16)
    k_ref[...] = k.astype(jnp.bfloat16)


def _prepass(z, pvec, w1, wq, wk, tr):
    n, d = z.shape
    row_spec = pl.BlockSpec((tr, d), lambda i: (i, 0))
    const = lambda i: (0, 0)
    return pl.pallas_call(
        _prepass_kernel,
        out_shape=(jax.ShapeDtypeStruct((n, d), jnp.bfloat16),) * 3,
        grid_spec=pltpu.PrefetchScalarGridSpec(
            num_scalar_prefetch=0,
            grid=(n // tr,),
            in_specs=[row_spec,
                      pl.BlockSpec(pvec.shape, const),
                      pl.BlockSpec(w1.shape, const),
                      pl.BlockSpec(wq.shape, const),
                      pl.BlockSpec(wk.shape, const)],
            out_specs=[row_spec, row_spec, row_spec],
        ),
        compiler_params=pltpu.CompilerParams(dimension_semantics=("parallel",)),
    )(z, pvec, w1, wq, wk)


# ---------------------------------------------------------------------------
# Flash-style attention + residual + LayerNorm2 kernel, grid (N/TQ, N/TK).
# ---------------------------------------------------------------------------
def _make_attn_kernel(n_valid, n_pad, tk, exp_dtype):
    masked = n_pad > n_valid   # trace-time flag: masking code emitted only if padded

    def kernel(zq_ref, q_ref, zn_ref, k_ref, pvec_ref, out_ref,
               m_sc, l_sc, acc_sc):
        ki = pl.program_id(1)

        @pl.when(ki == 0)
        def _init():
            m_sc[...] = jnp.full(m_sc.shape, -jnp.inf, jnp.float32)
            l_sc[...] = jnp.zeros(l_sc.shape, jnp.float32)
            acc_sc[...] = jnp.zeros(acc_sc.shape, jnp.float32)

        # scores [TQ, TK]: contract last dims of Q and K (no k.T / XLU transpose).
        s = lax.dot_general(q_ref[...], k_ref[...],
                            dimension_numbers=(((1,), (1,)), ((), ())),
                            preferred_element_type=jnp.float32)
        if masked:
            col = ki * tk + lax.broadcasted_iota(jnp.int32, s.shape, 1)
            s = jnp.where(col < n_valid, s, NEG_INF)

        m_prev = m_sc[...]
        m_new = jnp.maximum(m_prev, jnp.max(s, axis=-1, keepdims=True))
        alpha = jnp.exp(m_prev - m_new)
        # Unnormalized probabilities: bf16 exp (EUP bf16 path) on v6e/v7x, f32 on v5e.
        p = jnp.exp((s - m_new).astype(exp_dtype))
        l_sc[...] = alpha * l_sc[...] + jnp.sum(
            p.astype(jnp.float32), axis=-1, keepdims=True)
        acc_sc[...] = alpha * acc_sc[...] + jnp.dot(
            p.astype(jnp.bfloat16), zn_ref[...],
            preferred_element_type=jnp.float32)
        m_sc[...] = m_new

        @pl.when(ki == pl.num_programs(1) - 1)
        def _finalize():
            z_q = zq_ref[...].astype(jnp.float32)
            z_prop = acc_sc[...] * pl.reciprocal(l_sc[...], approx=True)
            z_res1 = z_q + TAU * (z_prop - z_q)
            out_ref[...] = _layer_norm(
                z_res1, pvec_ref[5:6, :], pvec_ref[6:7, :]).astype(out_ref.dtype)

    return kernel


def residual_diffusion_layer(z, params, *, tq=256, tk=512, tr=512, exp_dtype=None):
    """z: [N, D] float32.  params: dict of weights in PyTorch layout."""
    n, d = z.shape
    assert d == HIDDEN
    if exp_dtype is None:
        exp_dtype = _default_exp_dtype()

    # Pad N to a multiple of 128 so TK (lane dim of the score tile) is always a
    # multiple of 128; padded KV columns are masked inside the kernel.
    n_pad = _round_up(max(n, 128), 128)
    tq = _fit_tile(tq, n_pad)
    tk = _fit_tile(tk, n_pad)
    tr = _fit_tile(tr, n_pad)

    z_p = z.astype(jnp.float32)
    if n_pad != n:
        z_p = jnp.pad(z_p, ((0, n_pad - n), (0, 0)))

    # PyTorch Linear computes x @ W.T + b -> transpose once on the host.  Fold W2
    # into proj_q / proj_k (exact: no nonlinearity between them) and fold the
    # 1/sqrt(head_dim) attention scale into the Q side.
    w1_t = params["w1"].T
    wq_f = (params["w2"].T @ params["wq"].T) / SCALE
    bq_f = (params["b2"] @ params["wq"].T + params["bq"]) / SCALE
    wk_f = params["w2"].T @ params["wk"].T
    bk_f = params["b2"] @ params["wk"].T + params["bk"]

    # All [D] vector parameters packed into a single (8, D) f32 block.
    pvec = jnp.stack([
        params["ln1_g"], params["ln1_b"], params["b1"], bq_f, bk_f,
        params["ln2_g"], params["ln2_b"], jnp.zeros((d,), jnp.float32),
    ]).astype(jnp.float32)

    # Pre-pass: one sweep over the rows produces Z_norm / Q / K for the whole graph.
    zn, q, k = _prepass(z_p, pvec,
                        w1_t.astype(jnp.bfloat16),
                        wq_f.astype(jnp.bfloat16),
                        wk_f.astype(jnp.bfloat16), tr)

    kernel = _make_attn_kernel(n, n_pad, tk, exp_dtype)
    qi_map = lambda qi, ki: (qi, 0)
    ki_map = lambda qi, ki: (ki, 0)
    const = lambda qi, ki: (0, 0)

    out_p = pl.pallas_call(
        kernel,
        out_shape=jax.ShapeDtypeStruct((n_pad, d), z.dtype),
        grid_spec=pltpu.PrefetchScalarGridSpec(
            num_scalar_prefetch=0,
            grid=(n_pad // tq, n_pad // tk),          # KV (reduction) axis last
            in_specs=[
                pl.BlockSpec((tq, d), qi_map),        # original Z rows (residual/LN2)
                pl.BlockSpec((tq, d), qi_map),        # Q (pre-scaled, bf16)
                # NOTE: if a trace ever shows exposed DMA on the KV stream, add
                # pipeline_mode=pl.Buffered(3) to the two specs below.
                pl.BlockSpec((tk, d), ki_map),        # Z_norm rows = V (bf16)
                pl.BlockSpec((tk, d), ki_map),        # K (bf16)
                pl.BlockSpec((8, d), const),          # packed vector params
            ],
            out_specs=pl.BlockSpec((tq, d), qi_map),
            scratch_shapes=[
                pltpu.VMEM((tq, 1), jnp.float32),     # running row max
                pltpu.VMEM((tq, 1), jnp.float32),     # running row sum
                pltpu.VMEM((tq, d), jnp.float32),     # unnormalized P @ Z_norm
            ],
        ),
        compiler_params=pltpu.CompilerParams(
            dimension_semantics=("parallel", "arbitrary")),
    )(z_p, q, zn, k, pvec)

    return out_p[:n]


def init_params(key, d):
    ks = jax.random.split(key, 8)
    bound = 1.0 / math.sqrt(d)

    def lin(k):
        kw, kb = jax.random.split(k)
        w = jax.random.uniform(kw, (d, d), jnp.float32, -bound, bound)
        b = jax.random.uniform(kb, (d,), jnp.float32, -bound, bound)
        return w, b

    w1, b1 = lin(ks[0])
    w2, b2 = lin(ks[1])
    wq, bq = lin(ks[2])
    wk, bk = lin(ks[3])
    return dict(
        ln1_g=jnp.ones((d,), jnp.float32), ln1_b=jnp.zeros((d,), jnp.float32),
        ln2_g=jnp.ones((d,), jnp.float32), ln2_b=jnp.zeros((d,), jnp.float32),
        w1=w1, b1=b1, w2=w2, b2=b2, wq=wq, bq=bq, wk=wk, bk=bk,
    )


def reference_forward(z, p):
    """Pure-JAX f32 reference mirroring the PyTorch forward (eval mode)."""
    def ln(x, g, b):
        mu = jnp.mean(x, axis=-1, keepdims=True)
        var = jnp.mean((x - mu) ** 2, axis=-1, keepdims=True)
        return (x - mu) / jnp.sqrt(var + EPS) * g + b

    z_norm = ln(z, p["ln1_g"], p["ln1_b"])
    h = jnp.maximum(z_norm @ p["w1"].T + p["b1"], 0.0)
    zt = h @ p["w2"].T + p["b2"]
    q = zt @ p["wq"].T + p["bq"]
    k = zt @ p["wk"].T + p["bk"]
    s = jax.nn.softmax((q @ k.T) / SCALE, axis=-1)
    z_prop = s @ z_norm
    z_res1 = z + TAU * (z_prop - z)
    return ln(z_res1, p["ln2_g"], p["ln2_b"])


if __name__ == "__main__":
    key = jax.random.PRNGKey(0)
    k_z, k_p = jax.random.split(key)

    # N=1000 is not a multiple of 128: exercises host padding to 1024 + in-kernel
    # masking, grid = (1024/256, 1024/512) = (4, 2) -> multi-tile query axis and a
    # multi-step online-softmax KV loop.
    N = 1000
    Z = jax.random.normal(k_z, (N, HIDDEN), jnp.float32)
    params = init_params(k_p, HIDDEN)

    out = residual_diffusion_layer(Z, params)
    out = jax.block_until_ready(out)

    ref = reference_forward(Z, params)
    assert out.shape == (N, HIDDEN)
    assert bool(jnp.all(jnp.isfinite(out)))
    # bf16 MXU operands / bf16 probabilities / W2 fold / deferred normalization
    # reorder and coarsen FP ops vs. the f32 reference -> relaxed tolerance.
    assert jnp.allclose(out, ref, atol=2e-2, rtol=2e-2), "mismatch vs reference"

    print("KERNEL_OK")
</pallas_src>

<mosaic_0001>
module attributes {stable_mosaic.version = 11 : i64} {
  func.func @_prepass_kernel(%arg0: i32, %arg1: memref<512x32xf32, #tpu.memory_space<vmem>>, %arg2: memref<8x32xf32, #tpu.memory_space<vmem>>, %arg3: memref<32x32xbf16, #tpu.memory_space<vmem>>, %arg4: memref<32x32xbf16, #tpu.memory_space<vmem>>, %arg5: memref<32x32xbf16, #tpu.memory_space<vmem>>, %arg6: memref<512x32xbf16, #tpu.memory_space<vmem>>, %arg7: memref<512x32xbf16, #tpu.memory_space<vmem>>, %arg8: memref<512x32xbf16, #tpu.memory_space<vmem>>) attributes {dimension_semantics = [#tpu.dimension_semantics<parallel>], iteration_bounds = array<i64: 2>, scalar_prefetch = 0 : i64, scratch_operands = 0 : i64, tpu.core_type = #tpu.core_type<tc>, window_params = [{transform_indices = @transform_0, window_bounds = array<i64: 512, 32>}, {pipeline_mode = #tpu.pipeline_mode<synchronous>, transform_indices = @transform_1, window_bounds = array<i64: 8, 32>}, {pipeline_mode = #tpu.pipeline_mode<synchronous>, transform_indices = @transform_2, window_bounds = array<i64: 32, 32>}, {pipeline_mode = #tpu.pipeline_mode<synchronous>, transform_indices = @transform_3, window_bounds = array<i64: 32, 32>}, {pipeline_mode = #tpu.pipeline_mode<synchronous>, transform_indices = @transform_4, window_bounds = array<i64: 32, 32>}, {transform_indices = @transform_5, window_bounds = array<i64: 512, 32>}, {transform_indices = @transform_6, window_bounds = array<i64: 512, 32>}, {transform_indices = @transform_7, window_bounds = array<i64: 512, 32>}]} {
    %c0 = arith.constant 0 : index
    %c0_0 = arith.constant 0 : index
    %0 = vector.load %arg1[%c0, %c0_0] : memref<512x32xf32, #tpu.memory_space<vmem>>, vector<512x32xf32>
    %c0_1 = arith.constant 0 : index
    %c0_2 = arith.constant 0 : index
    %1 = vector.load %arg2[%c0_1, %c0_2] : memref<8x32xf32, #tpu.memory_space<vmem>>, vector<1x32xf32>
    %c1 = arith.constant 1 : index
    %c0_3 = arith.constant 0 : index
    %2 = vector.load %arg2[%c1, %c0_3] : memref<8x32xf32, #tpu.memory_space<vmem>>, vector<1x32xf32>
    %c2 = arith.constant 2 : index
    %c0_4 = arith.constant 0 : index
    %3 = vector.load %arg2[%c2, %c0_4] : memref<8x32xf32, #tpu.memory_space<vmem>>, vector<1x32xf32>
    %c3 = arith.constant 3 : index
    %c0_5 = arith.constant 0 : index
    %4 = vector.load %arg2[%c3, %c0_5] : memref<8x32xf32, #tpu.memory_space<vmem>>, vector<1x32xf32>
    %c4 = arith.constant 4 : index
    %c0_6 = arith.constant 0 : index
    %5 = vector.load %arg2[%c4, %c0_6] : memref<8x32xf32, #tpu.memory_space<vmem>>, vector<1x32xf32>
    %cst = arith.constant dense<0.000000e+00> : vector<512xf32>
    %6 = vector.multi_reduction <add>, %0, %cst [1] : vector<512x32xf32> to vector<512xf32>
    %7 = vector.shape_cast %6 : vector<512xf32> to vector<512x1xf32>
    %cst_7 = arith.constant 3.200000e+01 : f32
    %8 = vector.broadcast %cst_7 : f32 to vector<512x1xf32>
    %9 = arith.divf %7, %8 : vector<512x1xf32>
    %10 = vector.broadcast %9 : vector<512x1xf32> to vector<512x32xf32>
    %11 = arith.subf %0, %10 : vector<512x32xf32>
    %12 = arith.mulf %11, %11 : vector<512x32xf32>
    %cst_8 = arith.constant dense<0.000000e+00> : vector<512xf32>
    %13 = vector.multi_reduction <add>, %12, %cst_8 [1] : vector<512x32xf32> to vector<512xf32>
    %14 = vector.shape_cast %13 : vector<512xf32> to vector<512x1xf32>
    %cst_9 = arith.constant 3.200000e+01 : f32
    %15 = vector.broadcast %cst_9 : f32 to vector<512x1xf32>
    %16 = arith.divf %14, %15 : vector<512x1xf32>
    %17 = vector.broadcast %9 : vector<512x1xf32> to vector<512x32xf32>
    %18 = arith.subf %0, %17 : vector<512x32xf32>
    %cst_10 = arith.constant 9.99999974E-6 : f32
    %19 = vector.broadcast %cst_10 : f32 to vector<512x1xf32>
    %20 = arith.addf %16, %19 : vector<512x1xf32>
    %21 = math.rsqrt %20 : vector<512x1xf32>
    %22 = vector.broadcast %21 : vector<512x1xf32> to vector<512x32xf32>
    %23 = arith.mulf %18, %22 : vector<512x32xf32>
    %24 = vector.broadcast %1 : vector<1x32xf32> to vector<512x32xf32>
    %25 = arith.mulf %23, %24 : vector<512x32xf32>
    %26 = vector.broadcast %2 : vector<1x32xf32> to vector<512x32xf32>
    %27 = arith.addf %25, %26 : vector<512x32xf32>
    %28 = arith.truncf %27 : vector<512x32xf32> to vector<512x32xbf16>
    %c0_11 = arith.constant 0 : index
    %c0_12 = arith.constant 0 : index
    %29 = vector.load %arg3[%c0_11, %c0_12] : memref<32x32xbf16, #tpu.memory_space<vmem>>, vector<32x32xbf16>
    %cst_13 = arith.constant dense<0.000000e+00> : vector<512x32xf32>
    %30 = tpu.matmul %28, %29, %cst_13 {dimension_numbers = #tpu.dot_dimension_numbers<[1], [0], [0], [1], [0, 0, 1, 1], [], []>} : vector<512x32xbf16>, vector<32x32xbf16>, vector<512x32xf32> -> vector<512x32xf32>
    %31 = vector.broadcast %3 : vector<1x32xf32> to vector<512x32xf32>
    %32 = arith.addf %30, %31 : vector<512x32xf32>
    %cst_14 = arith.constant 0.000000e+00 : f32
    %33 = vector.broadcast %cst_14 : f32 to vector<512x32xf32>
    %34 = arith.maximumf %32, %33 : vector<512x32xf32>
    %35 = arith.truncf %34 : vector<512x32xf32> to vector<512x32xbf16>
    %c0_15 = arith.constant 0 : index
    %c0_16 = arith.constant 0 : index
    %36 = vector.load %arg4[%c0_15, %c0_16] : memref<32x32xbf16, #tpu.memory_space<vmem>>, vector<32x32xbf16>
    %cst_17 = arith.constant dense<0.000000e+00> : vector<512x32xf32>
    %37 = tpu.matmul %35, %36, %cst_17 {dimension_numbers = #tpu.dot_dimension_numbers<[1], [0], [0], [1], [0, 0, 1, 1], [], []>} : vector<512x32xbf16>, vector<32x32xbf16>, vector<512x32xf32> -> vector<512x32xf32>
    %38 = vector.broadcast %4 : vector<1x32xf32> to vector<512x32xf32>
    %39 = arith.addf %37, %38 : vector<512x32xf32>
    %c0_18 = arith.constant 0 : index
    %c0_19 = arith.constant 0 : index
    %40 = vector.load %arg5[%c0_18, %c0_19] : memref<32x32xbf16, #tpu.memory_space<vmem>>, vector<32x32xbf16>
    %cst_20 = arith.constant dense<0.000000e+00> : vector<512x32xf32>
    %41 = tpu.matmul %35, %40, %cst_20 {dimension_numbers = #tpu.dot_dimension_numbers<[1], [0], [0], [1], [0, 0, 1, 1], [], []>} : vector<512x32xbf16>, vector<32x32xbf16>, vector<512x32xf32> -> vector<512x32xf32>
    %42 = vector.broadcast %5 : vector<1x32xf32> to vector<512x32xf32>
    %43 = arith.addf %41, %42 : vector<512x32xf32>
    %44 = arith.truncf %27 : vector<512x32xf32> to vector<512x32xbf16>
    %c0_21 = arith.constant 0 : index
    %c0_22 = arith.constant 0 : index
    %45 = vector.load %arg6[%c0_21, %c0_22] : memref<512x32xbf16, #tpu.memory_space<vmem>>, vector<512x32xbf16>
    tpu.vector_store %arg6[%c0_21, %c0_22], %44 {strides = array<i32>} : memref<512x32xbf16, #tpu.memory_space<vmem>>, vector<512x32xbf16>,
    %46 = arith.truncf %39 : vector<512x32xf32> to vector<512x32xbf16>
    %c0_23 = arith.constant 0 : index
    %c0_24 = arith.constant 0 : index
    %47 = vector.load %arg7[%c0_23, %c0_24] : memref<512x32xbf16, #tpu.memory_space<vmem>>, vector<512x32xbf16>
    tpu.vector_store %arg7[%c0_23, %c0_24], %46 {strides = array<i32>} : memref<512x32xbf16, #tpu.memory_space<vmem>>, vector<512x32xbf16>,
    %48 = arith.truncf %43 : vector<512x32xf32> to vector<512x32xbf16>
    %c0_25 = arith.constant 0 : index
    %c0_26 = arith.constant 0 : index
    %49 = vector.load %arg8[%c0_25, %c0_26] : memref<512x32xbf16, #tpu.memory_space<vmem>>, vector<512x32xbf16>
    tpu.vector_store %arg8[%c0_25, %c0_26], %48 {strides = array<i32>} : memref<512x32xbf16, #tpu.memory_space<vmem>>, vector<512x32xbf16>,
    return
  }
  func.func @transform_0(%arg0: i32) -> (i32, i32) {
    %c0_i32 = arith.constant 0 : i32
    %c0_i32_0 = arith.constant 0 : i32
    return %arg0, %c0_i32 : i32, i32
  }
  func.func @transform_1(%arg0: i32) -> (i32, i32) {
    %c0_i32 = arith.constant 0 : i32
    %c0_i32_0 = arith.constant 0 : i32
    %c0_i32_1 = arith.constant 0 : i32
    return %c0_i32, %c0_i32_0 : i32, i32
  }
  func.func @transform_2(%arg0: i32) -> (i32, i32) {
    %c0_i32 = arith.constant 0 : i32
    %c0_i32_0 = arith.constant 0 : i32
    %c0_i32_1 = arith.constant 0 : i32
    return %c0_i32, %c0_i32_0 : i32, i32
  }
  func.func @transform_3(%arg0: i32) -> (i32, i32) {
    %c0_i32 = arith.constant 0 : i32
    %c0_i32_0 = arith.constant 0 : i32
    %c0_i32_1 = arith.constant 0 : i32
    return %c0_i32, %c0_i32_0 : i32, i32
  }
  func.func @transform_4(%arg0: i32) -> (i32, i32) {
    %c0_i32 = arith.constant 0 : i32
    %c0_i32_0 = arith.constant 0 : i32
    %c0_i32_1 = arith.constant 0 : i32
    return %c0_i32, %c0_i32_0 : i32, i32
  }
  func.func @transform_5(%arg0: i32) -> (i32, i32) {
    %c0_i32 = arith.constant 0 : i32
    %c0_i32_0 = arith.constant 0 : i32
    return %arg0, %c0_i32 : i32, i32
  }
  func.func @transform_6(%arg0: i32) -> (i32, i32) {
    %c0_i32 = arith.constant 0 : i32
    %c0_i32_0 = arith.constant 0 : i32
    return %arg0, %c0_i32 : i32, i32
  }
  func.func @transform_7(%arg0: i32) -> (i32, i32) {
    %c0_i32 = arith.constant 0 : i32
    %c0_i32_0 = arith.constant 0 : i32
    return %arg0, %c0_i32 : i32, i32
  }
}

</mosaic_0001>

<llo_original>
// kernel: tpu_custom_call.1
$region0: #{tpu_custom_call.1}
  #allocation0 [shape = 'u32[]', space=smem, size = 0x4, offset = 0x4, fixed_abs, tag = 'smem constant byte address 0x4 - core index']
  #allocation1 [shape = 'u32[144,128]{1,0:T(1,128)}', space=vmem, size = 0x12000, scoped, tag = 'internal scratch']
  %s0 = inlined_call_operand.vmem [shape: f32[1024,32], index: 0, kind: input, shape index: {}]
  %s1 = inlined_call_operand.vmem [shape: f32[8,32], index: 1, kind: input, shape index: {}]
  %s2 = inlined_call_operand.vmem [shape: bf16[32,32], index: 2, kind: input, shape index: {}]
  %s3 = inlined_call_operand.vmem [shape: bf16[32,32], index: 3, kind: input, shape index: {}]
  %s4 = inlined_call_operand.vmem [shape: bf16[32,32], index: 4, kind: input, shape index: {}]
  %s5 = inlined_call_operand.vmem [shape: bf16[1024,32], index: 5, kind: output, shape index: {0}]
  %s6 = inlined_call_operand.vmem [shape: bf16[1024,32], index: 6, kind: output, shape index: {1}]
  %s7 = inlined_call_operand.vmem [shape: bf16[1024,32], index: 7, kind: output, shape index: {2}]
  %8 = xla_tuple %s5, %s6, %s7
  %s9 = sld [smem:[#allocation0]]
  $region69: #{tpu_custom_call.1} parent=0
    _
  %s11 = ssub.s32 1, %s9
  %s12 = scalar_select 0, %s11, %s9
  loop: start=0, step=1, limit=4
  $region2: #{tpu_custom_call.1} parent=0 // loop_pre_header
    _
  $region3: #{tpu_custom_call.1} parent=0 // loop_header
    %s14 = sphi 0, %s18
    %p15 = scmp.ge.s32.totalorder %s14, 4
    %s24 = sphi 0, %s26
    %s27 = sphi 0, %s24
    %s28 = sphi 0, %s27
    %s44 = sphi 0, %s28
    %s48 = sphi 0, %s48
    %s50 = sphi 0, %s48
    %s51 = sphi 0, %s50
    %s65 = sphi 0, %s51
    %s69 = sphi 0, %s69
    %s71 = sphi 0, %s69
    %s72 = sphi 0, %s71
    %s86 = sphi 0, %s72
    %s90 = sphi 0, %s90
    %s92 = sphi 0, %s90
    %s93 = sphi 0, %s92
    %s107 = sphi 0, %s93
    %s111 = sphi 0, %s111
    %s113 = sphi 0, %s111
    %s114 = sphi 0, %s113
    %s128 = sphi 0, %s114
    %s134 = sphi 0, %s136
    %s137 = sphi 0, %s134
    %s138 = sphi 0, %s137
    %s154 = sphi 0, %s138
    %s160 = sphi 0, %s162
    %s163 = sphi 0, %s160
    %s164 = sphi 0, %s163
    %s180 = sphi 0, %s164
    %s186 = sphi 0, %s188
    %s189 = sphi 0, %s186
    %s190 = sphi 0, %s189
    %s206 = sphi 0, %s190
  $region4: #{tpu_custom_call.1} parent=0 // loop_header_branch
    %17 = sbr.rel (%p15) target = $region8
  $region5: #{tpu_custom_call.1} parent=0 // loop_body
    %s19 = ssub.s32 %s14, 1
    %s20 = ssub.s32 %s14, 2
    %s21 = sadd.s32 %s14, 1
    %s22 = ssub.s32 %s14, %s21
    %p23 = scmp.eq.s32.totalorder %s22, 0
    %s25 = sadd.s32 %s24, 1
    %s26 = scalar_select %p23, %s24, %s25
    %p29 = pneg %p23
    %p30 = scmp.eq.s32.totalorder %s14, 1
    %p31 = por %p29, %p30
    %p32 = scmp.ne.s32.totalorder %s24, %s27
    %p33 = scmp.eq.s32.totalorder %s14, 0
    %p34 = por %p32, %p33
    %p35 = scmp.ne.s32.totalorder %s24, %s27
    %p36 = scmp.eq.s32.totalorder %s19, 1
    %p37 = por %p35, %p36
    %p38 = scmp.ne.s32.totalorder %s27, %s28
    %p39 = scmp.eq.s32.totalorder %s19, 0
    %p40 = por %p38, %p39
    %p41 = scmp.ne.s32.totalorder %s27, %s28
    %p42 = scmp.eq.s32.totalorder %s20, 1
    %p43 = por %p41, %p42
    %p45 = scmp.ne.s32.totalorder %s28, %s44
    %p46 = scmp.eq.s32.totalorder %s20, 0
    %p47 = por %p45, %p46
    %s49 = sadd.s32 %s48, 1
    %p52 = scmp.eq.s32.totalorder %s14, 1
    %p53 = scmp.ne.s32.totalorder %s48, %s50
    %p54 = scmp.eq.s32.totalorder %s14, 0
    %p55 = por %p53, %p54
    %p56 = scmp.ne.s32.totalorder %s48, %s50
    %p57 = scmp.eq.s32.totalorder %s19, 1
    %p58 = por %p56, %p57
    %p59 = scmp.ne.s32.totalorder %s50, %s51
    %p60 = scmp.eq.s32.totalorder %s19, 0
    %p61 = por %p59, %p60
    %p62 = scmp.ne.s32.totalorder %s50, %s51
    %p63 = scmp.eq.s32.totalorder %s20, 1
    %p64 = por %p62, %p63
    %p66 = scmp.ne.s32.totalorder %s51, %s65
    %p67 = scmp.eq.s32.totalorder %s20, 0
    %p68 = por %p66, %p67
    %s70 = sadd.s32 %s69, 1
    %p73 = scmp.eq.s32.totalorder %s14, 1
    %p74 = scmp.ne.s32.totalorder %s69, %s71
    %p75 = scmp.eq.s32.totalorder %s14, 0
    %p76 = por %p74, %p75
    %p77 = scmp.ne.s32.totalorder %s69, %s71
    %p78 = scmp.eq.s32.totalorder %s19, 1
    %p79 = por %p77, %p78
    %p80 = scmp.ne.s32.totalorder %s71, %s72
    %p81 = scmp.eq.s32.totalorder %s19, 0
    %p82 = por %p80, %p81
    %p83 = scmp.ne.s32.totalorder %s71, %s72
    %p84 = scmp.eq.s32.totalorder %s20, 1
    %p85 = por %p83, %p84
    %p87 = scmp.ne.s32.totalorder %s72, %s86
    %p88 = scmp.eq.s32.totalorder %s20, 0
    %p89 = por %p87, %p88
    %s91 = sadd.s32 %s90, 1
    %p94 = scmp.eq.s32.totalorder %s14, 1
    %p95 = scmp.ne.s32.totalorder %s90, %s92
    %p96 = scmp.eq.s32.totalorder %s14, 0
    %p97 = por %p95, %p96
    %p98 = scmp.ne.s32.totalorder %s90, %s92
    %p99 = scmp.eq.s32.totalorder %s19, 1
    %p100 = por %p98, %p99
    %p101 = scmp.ne.s32.totalorder %s92, %s93
    %p102 = scmp.eq.s32.totalorder %s19, 0
    %p103 = por %p101, %p102
    %p104 = scmp.ne.s32.totalorder %s92, %s93
    %p105 = scmp.eq.s32.totalorder %s20, 1
    %p106 = por %p104, %p105
    %p108 = scmp.ne.s32.totalorder %s93, %s107
    %p109 = scmp.eq.s32.totalorder %s20, 0
    %p110 = por %p108, %p109
    %s112 = sadd.s32 %s111, 1
    %p115 = scmp.eq.s32.totalorder %s14, 1
    %p116 = scmp.ne.s32.totalorder %s111, %s113
    %p117 = scmp.eq.s32.totalorder %s14, 0
    %p118 = por %p116, %p117
    %p119 = scmp.ne.s32.totalorder %s111, %s113
    %p120 = scmp.eq.s32.totalorder %s19, 1
    %p121 = por %p119, %p120
    %p122 = scmp.ne.s32.totalorder %s113, %s114
    %p123 = scmp.eq.s32.totalorder %s19, 0
    %p124 = por %p122, %p123
    %p125 = scmp.ne.s32.totalorder %s113, %s114
    %p126 = scmp.eq.s32.totalorder %s20, 1
    %p127 = por %p125, %p126
    %p129 = scmp.ne.s32.totalorder %s114, %s128
    %p130 = scmp.eq.s32.totalorder %s20, 0
    %p131 = por %p129, %p130
    %s132 = ssub.s32 %s14, %s21
    %p133 = scmp.eq.s32.totalorder %s132, 0
    %s135 = sadd.s32 %s134, 1
    %s136 = scalar_select %p133, %s134, %s135
    %p139 = pneg %p133
    %p140 = scmp.eq.s32.totalorder %s14, 1
    %p141 = por %p139, %p140
    %p142 = scmp.ne.s32.totalorder %s134, %s137
    %p143 = scmp.eq.s32.totalorder %s14, 0
    %p144 = por %p142, %p143
    %p145 = scmp.ne.s32.totalorder %s134, %s137
    %p146 = scmp.eq.s32.totalorder %s19, 1
    %p147 = por %p145, %p146
    %p148 = scmp.ne.s32.totalorder %s137, %s138
    %p149 = scmp.eq.s32.totalorder %s19, 0
    %p150 = por %p148, %p149
    %p151 = scmp.ne.s32.totalorder %s137, %s138
    %p152 = scmp.eq.s32.totalorder %s20, 1
    %p153 = por %p151, %p152
    %p155 = scmp.ne.s32.totalorder %s138, %s154
    %p156 = scmp.eq.s32.totalorder %s20, 0
    %p157 = por %p155, %p156
    %s158 = ssub.s32 %s14, %s21
    %p159 = scmp.eq.s32.totalorder %s158, 0
    %s161 = sadd.s32 %s160, 1
    %s162 = scalar_select %p159, %s160, %s161
    %p165 = pneg %p159
    %p166 = scmp.eq.s32.totalorder %s14, 1
    %p167 = por %p165, %p166
    %p168 = scmp.ne.s32.totalorder %s160, %s163
    %p169 = scmp.eq.s32.totalorder %s14, 0
    %p170 = por %p168, %p169
    %p171 = scmp.ne.s32.totalorder %s160, %s163
    %p172 = scmp.eq.s32.totalorder %s19, 1
    %p173 = por %p171, %p172
    %p174 = scmp.ne.s32.totalorder %s163, %s164
    %p175 = scmp.eq.s32.totalorder %s19, 0
    %p176 = por %p174, %p175
    %p177 = scmp.ne.s32.totalorder %s163, %s164
    %p178 = scmp.eq.s32.totalorder %s20, 1
    %p179 = por %p177, %p178
    %p181 = scmp.ne.s32.totalorder %s164, %s180
    %p182 = scmp.eq.s32.totalorder %s20, 0
    %p183 = por %p181, %p182
    %s184 = ssub.s32 %s14, %s21
    %p185 = scmp.eq.s32.totalorder %s184, 0
    %s187 = sadd.s32 %s186, 1
    %s188 = scalar_select %p185, %s186, %s187
    %p191 = pneg %p185
    %p192 = scmp.eq.s32.totalorder %s14, 1
    %p193 = por %p191, %p192
    %p194 = scmp.ne.s32.totalorder %s186, %s189
    %p195 = scmp.eq.s32.totalorder %s14, 0
    %p196 = por %p194, %p195
    %p197 = scmp.ne.s32.totalorder %s186, %s189
    %p198 = scmp.eq.s32.totalorder %s19, 1
    %p199 = por %p197, %p198
    %p200 = scmp.ne.s32.totalorder %s189, %s190
    %p201 = scmp.eq.s32.totalorder %s19, 0
    %p202 = por %p200, %p201
    %p203 = scmp.ne.s32.totalorder %s189, %s190
    %p204 = scmp.eq.s32.totalorder %s20, 1
    %p205 = por %p203, %p204
    %p207 = scmp.ne.s32.totalorder %s190, %s206
    %p208 = scmp.eq.s32.totalorder %s20, 0
    %p209 = por %p207, %p208
    %p210 = scmp.le.s32.totalorder 1, %s14
    %p211 = scmp.lt.s32.totalorder %s14, 3
    %p212 = pnand %p210, %p211
    %p213 = pneg %p212
    // Predicated region
    $region9: #{tpu_custom_call.1} parent=5 // pred_check
      _
    $region10: #{tpu_custom_call.1} parent=5 // pred_check_branch
      %215 = sbr.rel (%p212) target = $region12
    $region11: #{tpu_custom_call.1} parent=5 // pred_region
      %s216 = ssub.s32 %s14, 1
      // Predicated region
      $region13: #{tpu_custom_call.1} parent=11 // pred_check
        %p217 = pneg %p61
      $region14: #{tpu_custom_call.1} parent=11 // pred_check_branch
        %219 = sbr.rel (%p217) target = $region16
      $region15: #{tpu_custom_call.1} parent=11 // pred_region
        _
      $region16: #{tpu_custom_call.1} parent=11 // pred_fallthru
        _
      // Predicated region
      $region17: #{tpu_custom_call.1} parent=11 // pred_check
        %p220 = pneg %p82
      $region18: #{tpu_custom_call.1} parent=11 // pred_check_branch
        %222 = sbr.rel (%p220) target = $region20
      $region19: #{tpu_custom_call.1} parent=11 // pred_region
        _
      $region20: #{tpu_custom_call.1} parent=11 // pred_fallthru
        _
      // Predicated region
      $region21: #{tpu_custom_call.1} parent=11 // pred_check
        %p223 = pneg %p103
      $region22: #{tpu_custom_call.1} parent=11 // pred_check_branch
        %225 = sbr.rel (%p223) target = $region24
      $region23: #{tpu_custom_call.1} parent=11 // pred_region
        _
      $region24: #{tpu_custom_call.1} parent=11 // pred_fallthru
        _
      // Predicated region
      $region25: #{tpu_custom_call.1} parent=11 // pred_check
        %p226 = pneg %p124
      $region26: #{tpu_custom_call.1} parent=11 // pred_check_branch
        %228 = sbr.rel (%p226) target = $region28
      $region27: #{tpu_custom_call.1} parent=11 // pred_region
        _
      $region28: #{tpu_custom_call.1} parent=11 // pred_fallthru
        _
    $region12: #{tpu_custom_call.1} parent=5 // pred_fallthru
      _
    %p229 = scmp.lt.s32.totalorder %s14, 2
    // Predicated region
    $region29: #{tpu_custom_call.1} parent=5 // pred_check
      %p230 = pneg %p229
    $region30: #{tpu_custom_call.1} parent=5 // pred_check_branch
      %232 = sbr.rel (%p230) target = $region32
    $region31: #{tpu_custom_call.1} parent=5 // pred_region
      // Predicated region
      $region33: #{tpu_custom_call.1} parent=31 // pred_check
        %p233 = pneg %p34
      $region34: #{tpu_custom_call.1} parent=31 // pred_check_branch
        %235 = sbr.rel (%p233) target = $region36
      $region35: #{tpu_custom_call.1} parent=31 // pred_region
        %s236 = smul.u32 64, %s14
        %p237 = scmp.lt.s32.totalorder %s236, 127
        %s238 = scalar_select %p237, %s236, 127
        %s239 = smul.addr %s238, 8
        %s240 = scalar_lea.vmem %s0, %s239
        %s241 = smul.u32 64, %s14
      $region36: #{tpu_custom_call.1} parent=31 // pred_fallthru
        _
    $region32: #{tpu_custom_call.1} parent=5 // pred_fallthru
      _
    %p242 = scmp.le.s32.totalorder 1, %s14
    %p243 = scmp.lt.s32.totalorder %s14, 3
    %p244 = pnand %p242, %p243
    %p245 = pneg %p244
    // Predicated region
    $region37: #{tpu_custom_call.1} parent=5 // pred_check
      _
    $region38: #{tpu_custom_call.1} parent=5 // pred_check_branch
      %247 = sbr.rel (%p244) target = $region40
    $region39: #{tpu_custom_call.1} parent=5 // pred_region
      %s248 = ssub.s32 %s14, 1
      %s249 = smul.u32 64, %s19
      %p250 = scmp.lt.s32.totalorder %s249, 127
      %s251 = scalar_select %p250, %s249, 127
      %s252 = smul.addr %s251, 8
      %s253 = scalar_lea.vmem %s0, %s252
      %p254 = pneg %p40
      %p255 = pneg %p37
      %p256 = pneg %p61
      %p257 = pneg %p58
      %p258 = pneg %p82
      %p259 = pneg %p79
      %p260 = pneg %p103
      %p261 = pneg %p100
      %p262 = pneg %p124
      %p263 = pneg %p121
      %p264 = pneg %p150
      %p265 = pneg %p147
      %s266 = smul.u32 64, %s19
      %p267 = scmp.lt.s32.totalorder %s266, 127
      %s268 = scalar_select %p267, %s266, 127
      %s269 = smul.addr %s268, 4
      %s270 = scalar_lea.vmem %s5, %s269
      %p271 = pneg %p176
      %p272 = pneg %p173
      %s273 = smul.u32 64, %s19
      %p274 = scmp.lt.s32.totalorder %s273, 127
      %s275 = scalar_select %p274, %s273, 127
      %s276 = smul.addr %s275, 4
      %s277 = scalar_lea.vmem %s6, %s276
      %p278 = pneg %p202
      %p279 = pneg %p199
      %s280 = smul.u32 64, %s19
      %p281 = scmp.lt.s32.totalorder %s280, 127
      %s282 = scalar_select %p281, %s280, 127
      %s283 = smul.addr %s282, 4
      %s284 = scalar_lea.vmem %s7, %s283
      %s285 = smul.u32 64, %s19
      %p286 = scmp.lt.s32.totalorder %s285, 127
      %s287 = scalar_select %p286, %s285, 127
      %s288 = smul.addr %s287, 8
      %s289 = scalar_lea.vmem %s0, %s288
      %s290 = smul.u32 64, %s19
      %s291 = smul.u32 64, %s19
      %p292 = scmp.lt.s32.totalorder %s291, 127
      %s293 = scalar_select %p292, %s291, 127
      %s294 = smul.addr %s293, 4
      %s295 = scalar_lea.vmem %s5, %s294
      %s296 = smul.u32 64, %s19
      %s297 = smul.u32 64, %s19
      %p298 = scmp.lt.s32.totalorder %s297, 127
      %s299 = scalar_select %p298, %s297, 127
      %s300 = smul.addr %s299, 4
      %s301 = scalar_lea.vmem %s6, %s300
      %s302 = smul.u32 64, %s19
      %s303 = smul.u32 64, %s19
      %p304 = scmp.lt.s32.totalorder %s303, 127
      %s305 = scalar_select %p304, %s303, 127
      %s306 = smul.addr %s305, 4
      %s307 = scalar_lea.vmem %s7, %s306
      %s308 = smul.u32 64, %s19
      %v310 = vld [vmem:[%s289] sm:$0xff]
      %v311 = vld [vmem:[%s289 + $0x8] sm:$0xff]
      %v312 = vld [vmem:[%s289 + $0x10] sm:$0xff]
      %v313 = vld [vmem:[%s289 + $0x18] sm:$0xff]
      %v314 = vld [vmem:[%s289 + $0x20] sm:$0xff]
      %v315 = vld [vmem:[%s289 + $0x28] sm:$0xff]
      %v316 = vld [vmem:[%s289 + $0x30] sm:$0xff]
      %v317 = vld [vmem:[%s289 + $0x38] sm:$0xff]
      %v318 = vld [vmem:[%s289 + $0x40] sm:$0xff]
      %v319 = vld [vmem:[%s289 + $0x48] sm:$0xff]
      %v320 = vld [vmem:[%s289 + $0x50] sm:$0xff]
      %v321 = vld [vmem:[%s289 + $0x58] sm:$0xff]
      %v322 = vld [vmem:[%s289 + $0x60] sm:$0xff]
      %v323 = vld [vmem:[%s289 + $0x68] sm:$0xff]
      %v324 = vld [vmem:[%s289 + $0x70] sm:$0xff]
      %v325 = vld [vmem:[%s289 + $0x78] sm:$0xff]
      %v326 = vld [vmem:[%s289 + $0x80] sm:$0xff]
      %v327 = vld [vmem:[%s289 + $0x88] sm:$0xff]
      %v328 = vld [vmem:[%s289 + $0x90] sm:$0xff]
      %v329 = vld [vmem:[%s289 + $0x98] sm:$0xff]
      %v330 = vld [vmem:[%s289 + $0xa0] sm:$0xff]
      %v331 = vld [vmem:[%s289 + $0xa8] sm:$0xff]
      %v332 = vld [vmem:[%s289 + $0xb0] sm:$0xff]
      %v333 = vld [vmem:[%s289 + $0xb8] sm:$0xff]
      %v334 = vld [vmem:[%s289 + $0xc0] sm:$0xff]
      %v335 = vld [vmem:[%s289 + $0xc8] sm:$0xff]
      %v336 = vld [vmem:[%s289 + $0xd0] sm:$0xff]
      %v337 = vld [vmem:[%s289 + $0xd8] sm:$0xff]
      %v338 = vld [vmem:[%s289 + $0xe0] sm:$0xff]
      %v339 = vld [vmem:[%s289 + $0xe8] sm:$0xff]
      %v340 = vld [vmem:[%s289 + $0xf0] sm:$0xff]
      %v341 = vld [vmem:[%s289 + $0xf8] sm:$0xff]
      %v342 = vld [vmem:[%s289 + $0x100] sm:$0xff]
      %v343 = vld [vmem:[%s289 + $0x108] sm:$0xff]
      %v344 = vld [vmem:[%s289 + $0x110] sm:$0xff]
      %v345 = vld [vmem:[%s289 + $0x118] sm:$0xff]
      %v346 = vld [vmem:[%s289 + $0x120] sm:$0xff]
      %v347 = vld [vmem:[%s289 + $0x128] sm:$0xff]
      %v348 = vld [vmem:[%s289 + $0x130] sm:$0xff]
      %v349 = vld [vmem:[%s289 + $0x138] sm:$0xff]
      %v350 = vld [vmem:[%s289 + $0x140] sm:$0xff]
      %v351 = vld [vmem:[%s289 + $0x148] sm:$0xff]
      %v352 = vld [vmem:[%s289 + $0x150] sm:$0xff]
      %v353 = vld [vmem:[%s289 + $0x158] sm:$0xff]
      %v354 = vld [vmem:[%s289 + $0x160] sm:$0xff]
      %v355 = vld [vmem:[%s289 + $0x168] sm:$0xff]
      %v356 = vld [vmem:[%s289 + $0x170] sm:$0xff]
      %v357 = vld [vmem:[%s289 + $0x178] sm:$0xff]
      %v358 = vld [vmem:[%s289 + $0x180] sm:$0xff]
      %v359 = vld [vmem:[%s289 + $0x188] sm:$0xff]
      %v360 = vld [vmem:[%s289 + $0x190] sm:$0xff]
      %v361 = vld [vmem:[%s289 + $0x198] sm:$0xff]
      %v362 = vld [vmem:[%s289 + $0x1a0] sm:$0xff]
      %v363 = vld [vmem:[%s289 + $0x1a8] sm:$0xff]
      %v364 = vld [vmem:[%s289 + $0x1b0] sm:$0xff]
      %v365 = vld [vmem:[%s289 + $0x1b8] sm:$0xff]
      %v366 = vld [vmem:[%s289 + $0x1c0] sm:$0xff]
      %v367 = vld [vmem:[%s289 + $0x1c8] sm:$0xff]
      %v368 = vld [vmem:[%s289 + $0x1d0] sm:$0xff]
      %v369 = vld [vmem:[%s289 + $0x1d8] sm:$0xff]
      %v370 = vld [vmem:[%s289 + $0x1e0] sm:$0xff]
      %v371 = vld [vmem:[%s289 + $0x1e8] sm:$0xff]
      %v372 = vld [vmem:[%s289 + $0x1f0] sm:$0xff]
      %v373 = vld [vmem:[%s289 + $0x1f8] sm:$0xff]
      %v374 = vld [vmem:[%s1] sm:$0x1]
      %v375 = vld [vmem:[%s1 + $0x1] sm:$0x1]
      %v376 = vld [vmem:[%s1 + $0x2] sm:$0x1]
      %v377 = vld [vmem:[%s1 + $0x3] sm:$0x1]
      %v378 = vld [vmem:[%s1 + $0x4] sm:$0x1]
      %vm379 = vcmask 261120
      %v380 = vsel %vm379, %v310, 0.0
      %381 = vadd.xlane.f32.xlu0 %v380
      %v382 = vpop.xlane.xlu0 %381
      %v383 = vsel %vm379, %v311, 0.0
      %384 = vadd.xlane.f32.xlu0 %v383
      %v385 = vpop.xlane.xlu0 %384
      %v386 = vsel %vm379, %v312, 0.0
      %387 = vadd.xlane.f32.xlu0 %v386
      %v388 = vpop.xlane.xlu0 %387
      %v389 = vsel %vm379, %v313, 0.0
      %390 = vadd.xlane.f32.xlu0 %v389
      %v391 = vpop.xlane.xlu0 %390
      %v392 = vsel %vm379, %v314, 0.0
      %393 = vadd.xlane.f32.xlu0 %v392
      %v394 = vpop.xlane.xlu0 %393
      %v395 = vsel %vm379, %v315, 0.0
      %396 = vadd.xlane.f32.xlu0 %v395
      %v397 = vpop.xlane.xlu0 %396
      %v398 = vsel %vm379, %v316, 0.0
      %399 = vadd.xlane.f32.xlu0 %v398
      %v400 = vpop.xlane.xlu0 %399
      %v401 = vsel %vm379, %v317, 0.0
      %402 = vadd.xlane.f32.xlu0 %v401
      %v403 = vpop.xlane.xlu0 %402
      %v404 = vsel %vm379, %v318, 0.0
      %405 = vadd.xlane.f32.xlu0 %v404
      %v406 = vpop.xlane.xlu0 %405
      %v407 = vsel %vm379, %v319, 0.0
      %408 = vadd.xlane.f32.xlu0 %v407
      %v409 = vpop.xlane.xlu0 %408
      %v410 = vsel %vm379, %v320, 0.0
      %411 = vadd.xlane.f32.xlu0 %v410
      %v412 = vpop.xlane.xlu0 %411
      %v413 = vsel %vm379, %v321, 0.0
      %414 = vadd.xlane.f32.xlu0 %v413
      %v415 = vpop.xlane.xlu0 %414
      %v416 = vsel %vm379, %v322, 0.0
      %417 = vadd.xlane.f32.xlu0 %v416
      %v418 = vpop.xlane.xlu0 %417
      %v419 = vsel %vm379, %v323, 0.0
      %420 = vadd.xlane.f32.xlu0 %v419
      %v421 = vpop.xlane.xlu0 %420
      %v422 = vsel %vm379, %v324, 0.0
      %423 = vadd.xlane.f32.xlu0 %v422
      %v424 = vpop.xlane.xlu0 %423
      %v425 = vsel %vm379, %v325, 0.0
      %426 = vadd.xlane.f32.xlu0 %v425
      %v427 = vpop.xlane.xlu0 %426
      %v428 = vsel %vm379, %v326, 0.0
      %429 = vadd.xlane.f32.xlu0 %v428
      %v430 = vpop.xlane.xlu0 %429
      %v431 = vsel %vm379, %v327, 0.0
      %432 = vadd.xlane.f32.xlu0 %v431
      %v433 = vpop.xlane.xlu0 %432
      %v434 = vsel %vm379, %v328, 0.0
      %435 = vadd.xlane.f32.xlu0 %v434
      %v436 = vpop.xlane.xlu0 %435
      %v437 = vsel %vm379, %v329, 0.0
      %438 = vadd.xlane.f32.xlu0 %v437
      %v439 = vpop.xlane.xlu0 %438
      %v440 = vsel %vm379, %v330, 0.0
      %441 = vadd.xlane.f32.xlu0 %v440
      %v442 = vpop.xlane.xlu0 %441
      %v443 = vsel %vm379, %v331, 0.0
      %444 = vadd.xlane.f32.xlu0 %v443
      %v445 = vpop.xlane.xlu0 %444
      %v446 = vsel %vm379, %v332, 0.0
      %447 = vadd.xlane.f32.xlu0 %v446
      %v448 = vpop.xlane.xlu0 %447
      %v449 = vsel %vm379, %v333, 0.0
      %450 = vadd.xlane.f32.xlu0 %v449
      %v451 = vpop.xlane.xlu0 %450
      %v452 = vsel %vm379, %v334, 0.0
      %453 = vadd.xlane.f32.xlu0 %v452
      %v454 = vpop.xlane.xlu0 %453
      %v455 = vsel %vm379, %v335, 0.0
      %456 = vadd.xlane.f32.xlu0 %v455
      %v457 = vpop.xlane.xlu0 %456
      %v458 = vsel %vm379, %v336, 0.0
      %459 = vadd.xlane.f32.xlu0 %v458
      %v460 = vpop.xlane.xlu0 %459
      %v461 = vsel %vm379, %v337, 0.0
      %462 = vadd.xlane.f32.xlu0 %v461
      %v463 = vpop.xlane.xlu0 %462
      %v464 = vsel %vm379, %v338, 0.0
      %465 = vadd.xlane.f32.xlu0 %v464
      %v466 = vpop.xlane.xlu0 %465
      %v467 = vsel %vm379, %v339, 0.0
      %468 = vadd.xlane.f32.xlu0 %v467
      %v469 = vpop.xlane.xlu0 %468
      %v470 = vsel %vm379, %v340, 0.0
      %471 = vadd.xlane.f32.xlu0 %v470
      %v472 = vpop.xlane.xlu0 %471
      %v473 = vsel %vm379, %v341, 0.0
      %474 = vadd.xlane.f32.xlu0 %v473
      %v475 = vpop.xlane.xlu0 %474
      %v476 = vsel %vm379, %v342, 0.0
      %477 = vadd.xlane.f32.xlu0 %v476
      %v478 = vpop.xlane.xlu0 %477
      %v479 = vsel %vm379, %v343, 0.0
      %480 = vadd.xlane.f32.xlu0 %v479
      %v481 = vpop.xlane.xlu0 %480
      %v482 = vsel %vm379, %v344, 0.0
      %483 = vadd.xlane.f32.xlu0 %v482
      %v484 = vpop.xlane.xlu0 %483
      %v485 = vsel %vm379, %v345, 0.0
      %486 = vadd.xlane.f32.xlu0 %v485
      %v487 = vpop.xlane.xlu0 %486
      %v488 = vsel %vm379, %v346, 0.0
      %489 = vadd.xlane.f32.xlu0 %v488
      %v490 = vpop.xlane.xlu0 %489
      %v491 = vsel %vm379, %v347, 0.0
      %492 = vadd.xlane.f32.xlu0 %v491
      %v493 = vpop.xlane.xlu0 %492
      %v494 = vsel %vm379, %v348, 0.0
      %495 = vadd.xlane.f32.xlu0 %v494
      %v496 = vpop.xlane.xlu0 %495
      %v497 = vsel %vm379, %v349, 0.0
      %498 = vadd.xlane.f32.xlu0 %v497
      %v499 = vpop.xlane.xlu0 %498
      %v500 = vsel %vm379, %v350, 0.0
      %501 = vadd.xlane.f32.xlu0 %v500
      %v502 = vpop.xlane.xlu0 %501
      %v503 = vsel %vm379, %v351, 0.0
      %504 = vadd.xlane.f32.xlu0 %v503
      %v505 = vpop.xlane.xlu0 %504
      %v506 = vsel %vm379, %v352, 0.0
      %507 = vadd.xlane.f32.xlu0 %v506
      %v508 = vpop.xlane.xlu0 %507
      %v509 = vsel %vm379, %v353, 0.0
      %510 = vadd.xlane.f32.xlu0 %v509
      %v511 = vpop.xlane.xlu0 %510
      %v512 = vsel %vm379, %v354, 0.0
      %513 = vadd.xlane.f32.xlu0 %v512
      %v514 = vpop.xlane.xlu0 %513
      %v515 = vsel %vm379, %v355, 0.0
      %516 = vadd.xlane.f32.xlu0 %v515
      %v517 = vpop.xlane.xlu0 %516
      %v518 = vsel %vm379, %v356, 0.0
      %519 = vadd.xlane.f32.xlu0 %v518
      %v520 = vpop.xlane.xlu0 %519
      %v521 = vsel %vm379, %v357, 0.0
      %522 = vadd.xlane.f32.xlu0 %v521
      %v523 = vpop.xlane.xlu0 %522
      %v524 = vsel %vm379, %v358, 0.0
      %525 = vadd.xlane.f32.xlu0 %v524
      %v526 = vpop.xlane.xlu0 %525
      %v527 = vsel %vm379, %v359, 0.0
      %528 = vadd.xlane.f32.xlu0 %v527
      %v529 = vpop.xlane.xlu0 %528
      %v530 = vsel %vm379, %v360, 0.0
      %531 = vadd.xlane.f32.xlu0 %v530
      %v532 = vpop.xlane.xlu0 %531
      %v533 = vsel %vm379, %v361, 0.0
      %534 = vadd.xlane.f32.xlu0 %v533
      %v535 = vpop.xlane.xlu0 %534
      %v536 = vsel %vm379, %v362, 0.0
      %537 = vadd.xlane.f32.xlu0 %v536
      %v538 = vpop.xlane.xlu0 %537
      %v539 = vsel %vm379, %v363, 0.0
      %540 = vadd.xlane.f32.xlu0 %v539
      %v541 = vpop.xlane.xlu0 %540
      %v542 = vsel %vm379, %v364, 0.0
      %543 = vadd.xlane.f32.xlu0 %v542
      %v544 = vpop.xlane.xlu0 %543
      %v545 = vsel %vm379, %v365, 0.0
      %546 = vadd.xlane.f32.xlu0 %v545
      %v547 = vpop.xlane.xlu0 %546
      %v548 = vsel %vm379, %v366, 0.0
      %549 = vadd.xlane.f32.xlu0 %v548
      %v550 = vpop.xlane.xlu0 %549
      %v551 = vsel %vm379, %v367, 0.0
      %552 = vadd.xlane.f32.xlu0 %v551
      %v553 = vpop.xlane.xlu0 %552
      %v554 = vsel %vm379, %v368, 0.0
      %555 = vadd.xlane.f32.xlu0 %v554
      %v556 = vpop.xlane.xlu0 %555
      %v557 = vsel %vm379, %v369, 0.0
      %558 = vadd.xlane.f32.xlu0 %v557
      %v559 = vpop.xlane.xlu0 %558
      %v560 = vsel %vm379, %v370, 0.0
      %561 = vadd.xlane.f32.xlu0 %v560
      %v562 = vpop.xlane.xlu0 %561
      %v563 = vsel %vm379, %v371, 0.0
      %564 = vadd.xlane.f32.xlu0 %v563
      %v565 = vpop.xlane.xlu0 %564
      %v566 = vsel %vm379, %v372, 0.0
      %567 = vadd.xlane.f32.xlu0 %v566
      %v568 = vpop.xlane.xlu0 %567
      %v569 = vsel %vm379, %v373, 0.0
      %570 = vadd.xlane.f32.xlu0 %v569
      %v571 = vpop.xlane.xlu0 %570
      %v572 = vrcp.pop 32.0
      %v573 = vmul.f32 %v382, %v572
      %v574 = vmul.f32 %v385, %v572
      %v575 = vmul.f32 %v388, %v572
      %v576 = vmul.f32 %v391, %v572
      %v577 = vmul.f32 %v394, %v572
      %v578 = vmul.f32 %v397, %v572
      %v579 = vmul.f32 %v400, %v572
      %v580 = vmul.f32 %v403, %v572
      %v581 = vmul.f32 %v406, %v572
      %v582 = vmul.f32 %v409, %v572
      %v583 = vmul.f32 %v412, %v572
      %v584 = vmul.f32 %v415, %v572
      %v585 = vmul.f32 %v418, %v572
      %v586 = vmul.f32 %v421, %v572
      %v587 = vmul.f32 %v424, %v572
      %v588 = vmul.f32 %v427, %v572
      %v589 = vmul.f32 %v430, %v572
      %v590 = vmul.f32 %v433, %v572
      %v591 = vmul.f32 %v436, %v572
      %v592 = vmul.f32 %v439, %v572
      %v593 = vmul.f32 %v442, %v572
      %v594 = vmul.f32 %v445, %v572
      %v595 = vmul.f32 %v448, %v572
      %v596 = vmul.f32 %v451, %v572
      %v597 = vmul.f32 %v454, %v572
      %v598 = vmul.f32 %v457, %v572
      %v599 = vmul.f32 %v460, %v572
      %v600 = vmul.f32 %v463, %v572
      %v601 = vmul.f32 %v466, %v572
      %v602 = vmul.f32 %v469, %v572
      %v603 = vmul.f32 %v472, %v572
      %v604 = vmul.f32 %v475, %v572
      %v605 = vmul.f32 %v478, %v572
      %v606 = vmul.f32 %v481, %v572
      %v607 = vmul.f32 %v484, %v572
      %v608 = vmul.f32 %v487, %v572
      %v609 = vmul.f32 %v490, %v572
      %v610 = vmul.f32 %v493, %v572
      %v611 = vmul.f32 %v496, %v572
      %v612 = vmul.f32 %v499, %v572
      %v613 = vmul.f32 %v502, %v572
      %v614 = vmul.f32 %v505, %v572
      %v615 = vmul.f32 %v508, %v572
      %v616 = vmul.f32 %v511, %v572
      %v617 = vmul.f32 %v514, %v572
      %v618 = vmul.f32 %v517, %v572
      %v619 = vmul.f32 %v520, %v572
      %v620 = vmul.f32 %v523, %v572
      %v621 = vmul.f32 %v526, %v572
      %v622 = vmul.f32 %v529, %v572
      %v623 = vmul.f32 %v532, %v572
      %v624 = vmul.f32 %v535, %v572
      %v625 = vmul.f32 %v538, %v572
      %v626 = vmul.f32 %v541, %v572
      %v627 = vmul.f32 %v544, %v572
      %v628 = vmul.f32 %v547, %v572
      %v629 = vmul.f32 %v550, %v572
      %v630 = vmul.f32 %v553, %v572
      %v631 = vmul.f32 %v556, %v572
      %v632 = vmul.f32 %v559, %v572
      %v633 = vmul.f32 %v562, %v572
      %v634 = vmul.f32 %v565, %v572
      %v635 = vmul.f32 %v568, %v572
      %v636 = vmul.f32 %v571, %v572
      %v637 = vsub.f32 %v310, %v573
      %v638 = vsub.f32 %v311, %v574
      %v639 = vsub.f32 %v312, %v575
      %v640 = vsub.f32 %v313, %v576
      %v641 = vsub.f32 %v314, %v577
      %v642 = vsub.f32 %v315, %v578
      %v643 = vsub.f32 %v316, %v579
      %v644 = vsub.f32 %v317, %v580
      %v645 = vsub.f32 %v318, %v581
      %v646 = vsub.f32 %v319, %v582
      %v647 = vsub.f32 %v320, %v583
      %v648 = vsub.f32 %v321, %v584
      %v649 = vsub.f32 %v322, %v585
      %v650 = vsub.f32 %v323, %v586
      %v651 = vsub.f32 %v324, %v587
      %v652 = vsub.f32 %v325, %v588
      %v653 = vsub.f32 %v326, %v589
      %v654 = vsub.f32 %v327, %v590
      %v655 = vsub.f32 %v328, %v591
      %v656 = vsub.f32 %v329, %v592
      %v657 = vsub.f32 %v330, %v593
      %v658 = vsub.f32 %v331, %v594
      %v659 = vsub.f32 %v332, %v595
      %v660 = vsub.f32 %v333, %v596
      %v661 = vsub.f32 %v334, %v597
      %v662 = vsub.f32 %v335, %v598
      %v663 = vsub.f32 %v336, %v599
      %v664 = vsub.f32 %v337, %v600
      %v665 = vsub.f32 %v338, %v601
      %v666 = vsub.f32 %v339, %v602
      %v667 = vsub.f32 %v340, %v603
      %v668 = vsub.f32 %v341, %v604
      %v669 = vsub.f32 %v342, %v605
      %v670 = vsub.f32 %v343, %v606
      %v671 = vsub.f32 %v344, %v607
      %v672 = vsub.f32 %v345, %v608
      %v673 = vsub.f32 %v346, %v609
      %v674 = vsub.f32 %v347, %v610
      %v675 = vsub.f32 %v348, %v611
      %v676 = vsub.f32 %v349, %v612
      %v677 = vsub.f32 %v350, %v613
      %v678 = vsub.f32 %v351, %v614
      %v679 = vsub.f32 %v352, %v615
      %v680 = vsub.f32 %v353, %v616
      %v681 = vsub.f32 %v354, %v617
      %v682 = vsub.f32 %v355, %v618
      %v683 = vsub.f32 %v356, %v619
      %v684 = vsub.f32 %v357, %v620
      %v685 = vsub.f32 %v358, %v621
      %v686 = vsub.f32 %v359, %v622
      %v687 = vsub.f32 %v360, %v623
      %v688 = vsub.f32 %v361, %v624
      %v689 = vsub.f32 %v362, %v625
      %v690 = vsub.f32 %v363, %v626
      %v691 = vsub.f32 %v364, %v627
      %v692 = vsub.f32 %v365, %v628
      %v693 = vsub.f32 %v366, %v629
      %v694 = vsub.f32 %v367, %v630
      %v695 = vsub.f32 %v368, %v631
      %v696 = vsub.f32 %v369, %v632
      %v697 = vsub.f32 %v370, %v633
      %v698 = vsub.f32 %v371, %v634
      %v699 = vsub.f32 %v372, %v635
      %v700 = vsub.f32 %v373, %v636
      %v701 = vmul.f32 %v637, %v637
      %v702 = vmul.f32 %v638, %v638
      %v703 = vmul.f32 %v639, %v639
      %v704 = vmul.f32 %v640, %v640
      %v705 = vmul.f32 %v641, %v641
      %v706 = vmul.f32 %v642, %v642
      %v707 = vmul.f32 %v643, %v643
      %v708 = vmul.f32 %v644, %v644
      %v709 = vmul.f32 %v645, %v645
      %v710 = vmul.f32 %v646, %v646
      %v711 = vmul.f32 %v647, %v647
      %v712 = vmul.f32 %v648, %v648
      %v713 = vmul.f32 %v649, %v649
      %v714 = vmul.f32 %v650, %v650
      %v715 = vmul.f32 %v651, %v651
      %v716 = vmul.f32 %v652, %v652
      %v717 = vmul.f32 %v653, %v653
      %v718 = vmul.f32 %v654, %v654
      %v719 = vmul.f32 %v655, %v655
      %v720 = vmul.f32 %v656, %v656
      %v721 = vmul.f32 %v657, %v657
      %v722 = vmul.f32 %v658, %v658
      %v723 = vmul.f32 %v659, %v659
      %v724 = vmul.f32 %v660, %v660
      %v725 = vmul.f32 %v661, %v661
      %v726 = vmul.f32 %v662, %v662
      %v727 = vmul.f32 %v663, %v663
      %v728 = vmul.f32 %v664, %v664
      %v729 = vmul.f32 %v665, %v665
      %v730 = vmul.f32 %v666, %v666
      %v731 = vmul.f32 %v667, %v667
      %v732 = vmul.f32 %v668, %v668
      %v733 = vmul.f32 %v669, %v669
      %v734 = vmul.f32 %v670, %v670
      %v735 = vmul.f32 %v671, %v671
      %v736 = vmul.f32 %v672, %v672
      %v737 = vmul.f32 %v673, %v673
      %v738 = vmul.f32 %v674, %v674
      %v739 = vmul.f32 %v675, %v675
      %v740 = vmul.f32 %v676, %v676
      %v741 = vmul.f32 %v677, %v677
      %v742 = vmul.f32 %v678, %v678
      %v743 = vmul.f32 %v679, %v679
      %v744 = vmul.f32 %v680, %v680
      %v745 = vmul.f32 %v681, %v681
      %v746 = vmul.f32 %v682, %v682
      %v747 = vmul.f32 %v683, %v683
      %v748 = vmul.f32 %v684, %v684
      %v749 = vmul.f32 %v685, %v685
      %v750 = vmul.f32 %v686, %v686
      %v751 = vmul.f32 %v687, %v687
      %v752 = vmul.f32 %v688, %v688
      %v753 = vmul.f32 %v689, %v689
      %v754 = vmul.f32 %v690, %v690
      %v755 = vmul.f32 %v691, %v691
      %v756 = vmul.f32 %v692, %v692
      %v757 = vmul.f32 %v693, %v693
      %v758 = vmul.f32 %v694, %v694
      %v759 = vmul.f32 %v695, %v695
      %v760 = vmul.f32 %v696, %v696
      %v761 = vmul.f32 %v697, %v697
      %v762 = vmul.f32 %v698, %v698
      %v763 = vmul.f32 %v699, %v699
      %v764 = vmul.f32 %v700, %v700
      %v765 = vsel %vm379, %v701, 0.0
      %766 = vadd.xlane.f32.xlu0 %v765
      %v767 = vpop.xlane.xlu0 %766
      %v768 = vsel %vm379, %v702, 0.0
      %769 = vadd.xlane.f32.xlu0 %v768
      %v770 = vpop.xlane.xlu0 %769
      %v771 = vsel %vm379, %v703, 0.0
      %772 = vadd.xlane.f32.xlu0 %v771
      %v773 = vpop.xlane.xlu0 %772
      %v774 = vsel %vm379, %v704, 0.0
      %775 = vadd.xlane.f32.xlu0 %v774
      %v776 = vpop.xlane.xlu0 %775
      %v777 = vsel %vm379, %v705, 0.0
      %778 = vadd.xlane.f32.xlu0 %v777
      %v779 = vpop.xlane.xlu0 %778
      %v780 = vsel %vm379, %v706, 0.0
      %781 = vadd.xlane.f32.xlu0 %v780
      %v782 = vpop.xlane.xlu0 %781
      %v783 = vsel %vm379, %v707, 0.0
      %784 = vadd.xlane.f32.xlu0 %v783
      %v785 = vpop.xlane.xlu0 %784
      %v786 = vsel %vm379, %v708, 0.0
      %787 = vadd.xlane.f32.xlu0 %v786
      %v788 = vpop.xlane.xlu0 %787
      %v789 = vsel %vm379, %v709, 0.0
      %790 = vadd.xlane.f32.xlu0 %v789
      %v791 = vpop.xlane.xlu0 %790
      %v792 = vsel %vm379, %v710, 0.0
      %793 = vadd.xlane.f32.xlu0 %v792
      %v794 = vpop.xlane.xlu0 %793
      %v795 = vsel %vm379, %v711, 0.0
      %796 = vadd.xlane.f32.xlu0 %v795
      %v797 = vpop.xlane.xlu0 %796
      %v798 = vsel %vm379, %v712, 0.0
      %799 = vadd.xlane.f32.xlu0 %v798
      %v800 = vpop.xlane.xlu0 %799
      %v801 = vsel %vm379, %v713, 0.0
      %802 = vadd.xlane.f32.xlu0 %v801
      %v803 = vpop.xlane.xlu0 %802
      %v804 = vsel %vm379, %v714, 0.0
      %805 = vadd.xlane.f32.xlu0 %v804
      %v806 = vpop.xlane.xlu0 %805
      %v807 = vsel %vm379, %v715, 0.0
      %808 = vadd.xlane.f32.xlu0 %v807
      %v809 = vpop.xlane.xlu0 %808
      %v810 = vsel %vm379, %v716, 0.0
      %811 = vadd.xlane.f32.xlu0 %v810
      %v812 = vpop.xlane.xlu0 %811
      %v813 = vsel %vm379, %v717, 0.0
      %814 = vadd.xlane.f32.xlu0 %v813
      %v815 = vpop.xlane.xlu0 %814
      %v816 = vsel %vm379, %v718, 0.0
      %817 = vadd.xlane.f32.xlu0 %v816
      %v818 = vpop.xlane.xlu0 %817
      %v819 = vsel %vm379, %v719, 0.0
      %820 = vadd.xlane.f32.xlu0 %v819
      %v821 = vpop.xlane.xlu0 %820
      %v822 = vsel %vm379, %v720, 0.0
      %823 = vadd.xlane.f32.xlu0 %v822
      %v824 = vpop.xlane.xlu0 %823
      %v825 = vsel %vm379, %v721, 0.0
      %826 = vadd.xlane.f32.xlu0 %v825
      %v827 = vpop.xlane.xlu0 %826
      %v828 = vsel %vm379, %v722, 0.0
      %829 = vadd.xlane.f32.xlu0 %v828
      %v830 = vpop.xlane.xlu0 %829
      %v831 = vsel %vm379, %v723, 0.0
      %832 = vadd.xlane.f32.xlu0 %v831
      %v833 = vpop.xlane.xlu0 %832
      %v834 = vsel %vm379, %v724, 0.0
      %835 = vadd.xlane.f32.xlu0 %v834
      %v836 = vpop.xlane.xlu0 %835
      %v837 = vsel %vm379, %v725, 0.0
      %838 = vadd.xlane.f32.xlu0 %v837
      %v839 = vpop.xlane.xlu0 %838
      %v840 = vsel %vm379, %v726, 0.0
      %841 = vadd.xlane.f32.xlu0 %v840
      %v842 = vpop.xlane.xlu0 %841
      %v843 = vsel %vm379, %v727, 0.0
      %844 = vadd.xlane.f32.xlu0 %v843
      %v845 = vpop.xlane.xlu0 %844
      %v846 = vsel %vm379, %v728, 0.0
      %847 = vadd.xlane.f32.xlu0 %v846
      %v848 = vpop.xlane.xlu0 %847
      %v849 = vsel %vm379, %v729, 0.0
      %850 = vadd.xlane.f32.xlu0 %v849
      %v851 = vpop.xlane.xlu0 %850
      %v852 = vsel %vm379, %v730, 0.0
      %853 = vadd.xlane.f32.xlu0 %v852
      %v854 = vpop.xlane.xlu0 %853
      %v855 = vsel %vm379, %v731, 0.0
      %856 = vadd.xlane.f32.xlu0 %v855
      %v857 = vpop.xlane.xlu0 %856
      %v858 = vsel %vm379, %v732, 0.0
      %859 = vadd.xlane.f32.xlu0 %v858
      %v860 = vpop.xlane.xlu0 %859
      %v861 = vsel %vm379, %v733, 0.0
      %862 = vadd.xlane.f32.xlu0 %v861
      %v863 = vpop.xlane.xlu0 %862
      %v864 = vsel %vm379, %v734, 0.0
      %865 = vadd.xlane.f32.xlu0 %v864
      %v866 = vpop.xlane.xlu0 %865
      %v867 = vsel %vm379, %v735, 0.0
      %868 = vadd.xlane.f32.xlu0 %v867
      %v869 = vpop.xlane.xlu0 %868
      %v870 = vsel %vm379, %v736, 0.0
      %871 = vadd.xlane.f32.xlu0 %v870
      %v872 = vpop.xlane.xlu0 %871
      %v873 = vsel %vm379, %v737, 0.0
      %874 = vadd.xlane.f32.xlu0 %v873
      %v875 = vpop.xlane.xlu0 %874
      %v876 = vsel %vm379, %v738, 0.0
      %877 = vadd.xlane.f32.xlu0 %v876
      %v878 = vpop.xlane.xlu0 %877
      %v879 = vsel %vm379, %v739, 0.0
      %880 = vadd.xlane.f32.xlu0 %v879
      %v881 = vpop.xlane.xlu0 %880
      %v882 = vsel %vm379, %v740, 0.0
      %883 = vadd.xlane.f32.xlu0 %v882
      %v884 = vpop.xlane.xlu0 %883
      %v885 = vsel %vm379, %v741, 0.0
      %886 = vadd.xlane.f32.xlu0 %v885
      %v887 = vpop.xlane.xlu0 %886
      %v888 = vsel %vm379, %v742, 0.0
      %889 = vadd.xlane.f32.xlu0 %v888
      %v890 = vpop.xlane.xlu0 %889
      %v891 = vsel %vm379, %v743, 0.0
      %892 = vadd.xlane.f32.xlu0 %v891
      %v893 = vpop.xlane.xlu0 %892
      %v894 = vsel %vm379, %v744, 0.0
      %895 = vadd.xlane.f32.xlu0 %v894
      %v896 = vpop.xlane.xlu0 %895
      %v897 = vsel %vm379, %v745, 0.0
      %898 = vadd.xlane.f32.xlu0 %v897
      %v899 = vpop.xlane.xlu0 %898
      %v900 = vsel %vm379, %v746, 0.0
      %901 = vadd.xlane.f32.xlu0 %v900
      %v902 = vpop.xlane.xlu0 %901
      %v903 = vsel %vm379, %v747, 0.0
      %904 = vadd.xlane.f32.xlu0 %v903
      %v905 = vpop.xlane.xlu0 %904
      %v906 = vsel %vm379, %v748, 0.0
      %907 = vadd.xlane.f32.xlu0 %v906
      %v908 = vpop.xlane.xlu0 %907
      %v909 = vsel %vm379, %v749, 0.0
      %910 = vadd.xlane.f32.xlu0 %v909
      %v911 = vpop.xlane.xlu0 %910
      %v912 = vsel %vm379, %v750, 0.0
      %913 = vadd.xlane.f32.xlu0 %v912
      %v914 = vpop.xlane.xlu0 %913
      %v915 = vsel %vm379, %v751, 0.0
      %916 = vadd.xlane.f32.xlu0 %v915
      %v917 = vpop.xlane.xlu0 %916
      %v918 = vsel %vm379, %v752, 0.0
      %919 = vadd.xlane.f32.xlu0 %v918
      %v920 = vpop.xlane.xlu0 %919
      %v921 = vsel %vm379, %v753, 0.0
      %922 = vadd.xlane.f32.xlu0 %v921
      %v923 = vpop.xlane.xlu0 %922
      %v924 = vsel %vm379, %v754, 0.0
      %925 = vadd.xlane.f32.xlu0 %v924
      %v926 = vpop.xlane.xlu0 %925
      %v927 = vsel %vm379, %v755, 0.0
      %928 = vadd.xlane.f32.xlu0 %v927
      %v929 = vpop.xlane.xlu0 %928
      %v930 = vsel %vm379, %v756, 0.0
      %931 = vadd.xlane.f32.xlu0 %v930
      %v932 = vpop.xlane.xlu0 %931
      %v933 = vsel %vm379, %v757, 0.0
      %934 = vadd.xlane.f32.xlu0 %v933
      %v935 = vpop.xlane.xlu0 %934
      %v936 = vsel %vm379, %v758, 0.0
      %937 = vadd.xlane.f32.xlu0 %v936
      %v938 = vpop.xlane.xlu0 %937
      %v939 = vsel %vm379, %v759, 0.0
      %940 = vadd.xlane.f32.xlu0 %v939
      %v941 = vpop.xlane.xlu0 %940
      %v942 = vsel %vm379, %v760, 0.0
      %943 = vadd.xlane.f32.xlu0 %v942
      %v944 = vpop.xlane.xlu0 %943
      %v945 = vsel %vm379, %v761, 0.0
      %946 = vadd.xlane.f32.xlu0 %v945
      %v947 = vpop.xlane.xlu0 %946
      %v948 = vsel %vm379, %v762, 0.0
      %949 = vadd.xlane.f32.xlu0 %v948
      %v950 = vpop.xlane.xlu0 %949
      %v951 = vsel %vm379, %v763, 0.0
      %952 = vadd.xlane.f32.xlu0 %v951
      %v953 = vpop.xlane.xlu0 %952
      %v954 = vsel %vm379, %v764, 0.0
      %955 = vadd.xlane.f32.xlu0 %v954
      %v956 = vpop.xlane.xlu0 %955
      %v957 = vmul.f32 %v767, %v572
      %v958 = vmul.f32 %v770, %v572
      %v959 = vmul.f32 %v773, %v572
      %v960 = vmul.f32 %v776, %v572
      %v961 = vmul.f32 %v779, %v572
      %v962 = vmul.f32 %v782, %v572
      %v963 = vmul.f32 %v785, %v572
      %v964 = vmul.f32 %v788, %v572
      %v965 = vmul.f32 %v791, %v572
      %v966 = vmul.f32 %v794, %v572
      %v967 = vmul.f32 %v797, %v572
      %v968 = vmul.f32 %v800, %v572
      %v969 = vmul.f32 %v803, %v572
      %v970 = vmul.f32 %v806, %v572
      %v971 = vmul.f32 %v809, %v572
      %v972 = vmul.f32 %v812, %v572
      %v973 = vmul.f32 %v815, %v572
      %v974 = vmul.f32 %v818, %v572
      %v975 = vmul.f32 %v821, %v572
      %v976 = vmul.f32 %v824, %v572
      %v977 = vmul.f32 %v827, %v572
      %v978 = vmul.f32 %v830, %v572
      %v979 = vmul.f32 %v833, %v572
      %v980 = vmul.f32 %v836, %v572
      %v981 = vmul.f32 %v839, %v572
      %v982 = vmul.f32 %v842, %v572
      %v983 = vmul.f32 %v845, %v572
      %v984 = vmul.f32 %v848, %v572
      %v985 = vmul.f32 %v851, %v572
      %v986 = vmul.f32 %v854, %v572
      %v987 = vmul.f32 %v857, %v572
      %v988 = vmul.f32 %v860, %v572
      %v989 = vmul.f32 %v863, %v572
      %v990 = vmul.f32 %v866, %v572
      %v991 = vmul.f32 %v869, %v572
      %v992 = vmul.f32 %v872, %v572
      %v993 = vmul.f32 %v875, %v572
      %v994 = vmul.f32 %v878, %v572
      %v995 = vmul.f32 %v881, %v572
      %v996 = vmul.f32 %v884, %v572
      %v997 = vmul.f32 %v887, %v572
      %v998 = vmul.f32 %v890, %v572
      %v999 = vmul.f32 %v893, %v572
      %v1000 = vmul.f32 %v896, %v572
      %v1001 = vmul.f32 %v899, %v572
      %v1002 = vmul.f32 %v902, %v572
      %v1003 = vmul.f32 %v905, %v572
      %v1004 = vmul.f32 %v908, %v572
      %v1005 = vmul.f32 %v911, %v572
      %v1006 = vmul.f32 %v914, %v572
      %v1007 = vmul.f32 %v917, %v572
      %v1008 = vmul.f32 %v920, %v572
      %v1009 = vmul.f32 %v923, %v572
      %v1010 = vmul.f32 %v926, %v572
      %v1011 = vmul.f32 %v929, %v572
      %v1012 = vmul.f32 %v932, %v572
      %v1013 = vmul.f32 %v935, %v572
      %v1014 = vmul.f32 %v938, %v572
      %v1015 = vmul.f32 %v941, %v572
      %v1016 = vmul.f32 %v944, %v572
      %v1017 = vmul.f32 %v947, %v572
      %v1018 = vmul.f32 %v950, %v572
      %v1019 = vmul.f32 %v953, %v572
      %v1020 = vmul.f32 %v956, %v572
      %v1021 = vadd.f32 %v957, 1e-05
      %v1022 = vadd.f32 %v958, 1e-05
      %v1023 = vadd.f32 %v959, 1e-05
      %v1024 = vadd.f32 %v960, 1e-05
      %v1025 = vadd.f32 %v961, 1e-05
      %v1026 = vadd.f32 %v962, 1e-05
      %v1027 = vadd.f32 %v963, 1e-05
      %v1028 = vadd.f32 %v964, 1e-05
      %v1029 = vadd.f32 %v965, 1e-05
      %v1030 = vadd.f32 %v966, 1e-05
      %v1031 = vadd.f32 %v967, 1e-05
      %v1032 = vadd.f32 %v968, 1e-05
      %v1033 = vadd.f32 %v969, 1e-05
      %v1034 = vadd.f32 %v970, 1e-05
      %v1035 = vadd.f32 %v971, 1e-05
      %v1036 = vadd.f32 %v972, 1e-05
      %v1037 = vadd.f32 %v973, 1e-05
      %v1038 = vadd.f32 %v974, 1e-05
      %v1039 = vadd.f32 %v975, 1e-05
      %v1040 = vadd.f32 %v976, 1e-05
      %v1041 = vadd.f32 %v977, 1e-05
      %v1042 = vadd.f32 %v978, 1e-05
      %v1043 = vadd.f32 %v979, 1e-05
      %v1044 = vadd.f32 %v980, 1e-05
      %v1045 = vadd.f32 %v981, 1e-05
      %v1046 = vadd.f32 %v982, 1e-05
      %v1047 = vadd.f32 %v983, 1e-05
      %v1048 = vadd.f32 %v984, 1e-05
      %v1049 = vadd.f32 %v985, 1e-05
      %v1050 = vadd.f32 %v986, 1e-05
      %v1051 = vadd.f32 %v987, 1e-05
      %v1052 = vadd.f32 %v988, 1e-05
      %v1053 = vadd.f32 %v989, 1e-05
      %v1054 = vadd.f32 %v990, 1e-05
      %v1055 = vadd.f32 %v991, 1e-05
      %v1056 = vadd.f32 %v992, 1e-05
      %v1057 = vadd.f32 %v993, 1e-05
      %v1058 = vadd.f32 %v994, 1e-05
      %v1059 = vadd.f32 %v995, 1e-05
      %v1060 = vadd.f32 %v996, 1e-05
      %v1061 = vadd.f32 %v997, 1e-05
      %v1062 = vadd.f32 %v998, 1e-05
      %v1063 = vadd.f32 %v999, 1e-05
      %v1064 = vadd.f32 %v1000, 1e-05
      %v1065 = vadd.f32 %v1001, 1e-05
      %v1066 = vadd.f32 %v1002, 1e-05
      %v1067 = vadd.f32 %v1003, 1e-05
      %v1068 = vadd.f32 %v1004, 1e-05
      %v1069 = vadd.f32 %v1005, 1e-05
      %v1070 = vadd.f32 %v1006, 1e-05
      %v1071 = vadd.f32 %v1007, 1e-05
      %v1072 = vadd.f32 %v1008, 1e-05
      %v1073 = vadd.f32 %v1009, 1e-05
      %v1074 = vadd.f32 %v1010, 1e-05
      %v1075 = vadd.f32 %v1011, 1e-05
      %v1076 = vadd.f32 %v1012, 1e-05
      %v1077 = vadd.f32 %v1013, 1e-05
      %v1078 = vadd.f32 %v1014, 1e-05
      %v1079 = vadd.f32 %v1015, 1e-05
      %v1080 = vadd.f32 %v1016, 1e-05
      %v1081 = vadd.f32 %v1017, 1e-05
      %v1082 = vadd.f32 %v1018, 1e-05
      %v1083 = vadd.f32 %v1019, 1e-05
      %v1084 = vadd.f32 %v1020, 1e-05
      %v1085 = vrsqrt.pop %v1021
      %v1086 = vrsqrt.pop %v1022
      %v1087 = vrsqrt.pop %v1023
      %v1088 = vrsqrt.pop %v1024
      %v1089 = vrsqrt.pop %v1025
      %v1090 = vrsqrt.pop %v1026
      %v1091 = vrsqrt.pop %v1027
      %v1092 = vrsqrt.pop %v1028
      %v1093 = vrsqrt.pop %v1029
      %v1094 = vrsqrt.pop %v1030
      %v1095 = vrsqrt.pop %v1031
      %v1096 = vrsqrt.pop %v1032
      %v1097 = vrsqrt.pop %v1033
      %v1098 = vrsqrt.pop %v1034
      %v1099 = vrsqrt.pop %v1035
      %v1100 = vrsqrt.pop %v1036
      %v1101 = vrsqrt.pop %v1037
      %v1102 = vrsqrt.pop %v1038
      %v1103 = vrsqrt.pop %v1039
      %v1104 = vrsqrt.pop %v1040
      %v1105 = vrsqrt.pop %v1041
      %v1106 = vrsqrt.pop %v1042
      %v1107 = vrsqrt.pop %v1043
      %v1108 = vrsqrt.pop %v1044
      %v1109 = vrsqrt.pop %v1045
      %v1110 = vrsqrt.pop %v1046
      %v1111 = vrsqrt.pop %v1047
      %v1112 = vrsqrt.pop %v1048
      %v1113 = vrsqrt.pop %v1049
      %v1114 = vrsqrt.pop %v1050
      %v1115 = vrsqrt.pop %v1051
      %v1116 = vrsqrt.pop %v1052
      %v1117 = vrsqrt.pop %v1053
      %v1118 = vrsqrt.pop %v1054
      %v1119 = vrsqrt.pop %v1055
      %v1120 = vrsqrt.pop %v1056
      %v1121 = vrsqrt.pop %v1057
      %v1122 = vrsqrt.pop %v1058
      %v1123 = vrsqrt.pop %v1059
      %v1124 = vrsqrt.pop %v1060
      %v1125 = vrsqrt.pop %v1061
      %v1126 = vrsqrt.pop %v1062
      %v1127 = vrsqrt.pop %v1063
      %v1128 = vrsqrt.pop %v1064
      %v1129 = vrsqrt.pop %v1065
      %v1130 = vrsqrt.pop %v1066
      %v1131 = vrsqrt.pop %v1067
      %v1132 = vrsqrt.pop %v1068
      %v1133 = vrsqrt.pop %v1069
      %v1134 = vrsqrt.pop %v1070
      %v1135 = vrsqrt.pop %v1071
      %v1136 = vrsqrt.pop %v1072
      %v1137 = vrsqrt.pop %v1073
      %v1138 = vrsqrt.pop %v1074
      %v1139 = vrsqrt.pop %v1075
      %v1140 = vrsqrt.pop %v1076
      %v1141 = vrsqrt.pop %v1077
      %v1142 = vrsqrt.pop %v1078
      %v1143 = vrsqrt.pop %v1079
      %v1144 = vrsqrt.pop %v1080
      %v1145 = vrsqrt.pop %v1081
      %v1146 = vrsqrt.pop %v1082
      %v1147 = vrsqrt.pop %v1083
      %v1148 = vrsqrt.pop %v1084
      %v1149 = vmul.f32 %v637, %v1085
      %v1150 = vmul.f32 %v638, %v1086
      %v1151 = vmul.f32 %v639, %v1087
      %v1152 = vmul.f32 %v640, %v1088
      %v1153 = vmul.f32 %v641, %v1089
      %v1154 = vmul.f32 %v642, %v1090
      %v1155 = vmul.f32 %v643, %v1091
      %v1156 = vmul.f32 %v644, %v1092
      %v1157 = vmul.f32 %v645, %v1093
      %v1158 = vmul.f32 %v646, %v1094
      %v1159 = vmul.f32 %v647, %v1095
      %v1160 = vmul.f32 %v648, %v1096
      %v1161 = vmul.f32 %v649, %v1097
      %v1162 = vmul.f32 %v650, %v1098
      %v1163 = vmul.f32 %v651, %v1099
      %v1164 = vmul.f32 %v652, %v1100
      %v1165 = vmul.f32 %v653, %v1101
      %v1166 = vmul.f32 %v654, %v1102
      %v1167 = vmul.f32 %v655, %v1103
      %v1168 = vmul.f32 %v656, %v1104
      %v1169 = vmul.f32 %v657, %v1105
      %v1170 = vmul.f32 %v658, %v1106
      %v1171 = vmul.f32 %v659, %v1107
      %v1172 = vmul.f32 %v660, %v1108
      %v1173 = vmul.f32 %v661, %v1109
      %v1174 = vmul.f32 %v662, %v1110
      %v1175 = vmul.f32 %v663, %v1111
      %v1176 = vmul.f32 %v664, %v1112
      %v1177 = vmul.f32 %v665, %v1113
      %v1178 = vmul.f32 %v666, %v1114
      %v1179 = vmul.f32 %v667, %v1115
      %v1180 = vmul.f32 %v668, %v1116
      %v1181 = vmul.f32 %v669, %v1117
      %v1182 = vmul.f32 %v670, %v1118
      %v1183 = vmul.f32 %v671, %v1119
      %v1184 = vmul.f32 %v672, %v1120
      %v1185 = vmul.f32 %v673, %v1121
      %v1186 = vmul.f32 %v674, %v1122
      %v1187 = vmul.f32 %v675, %v1123
      %v1188 = vmul.f32 %v676, %v1124
      %v1189 = vmul.f32 %v677, %v1125
      %v1190 = vmul.f32 %v678, %v1126
      %v1191 = vmul.f32 %v679, %v1127
      %v1192 = vmul.f32 %v680, %v1128
      %v1193 = vmul.f32 %v681, %v1129
      %v1194 = vmul.f32 %v682, %v1130
      %v1195 = vmul.f32 %v683, %v1131
      %v1196 = vmul.f32 %v684, %v1132
      %v1197 = vmul.f32 %v685, %v1133
      %v1198 = vmul.f32 %v686, %v1134
      %v1199 = vmul.f32 %v687, %v1135
      %v1200 = vmul.f32 %v688, %v1136
      %v1201 = vmul.f32 %v689, %v1137
      %v1202 = vmul.f32 %v690, %v1138
      %v1203 = vmul.f32 %v691, %v1139
      %v1204 = vmul.f32 %v692, %v1140
      %v1205 = vmul.f32 %v693, %v1141
      %v1206 = vmul.f32 %v694, %v1142
      %v1207 = vmul.f32 %v695, %v1143
      %v1208 = vmul.f32 %v696, %v1144
      %v1209 = vmul.f32 %v697, %v1145
      %v1210 = vmul.f32 %v698, %v1146
      %v1211 = vmul.f32 %v699, %v1147
      %v1212 = vmul.f32 %v700, %v1148
      %v1213 = vlaneseq
      %v1214 = vshrl.u32 %v1213, 7
      %v1215 = vsub.s32 0, %v1214
      %v1216 = vrot.slane %v374, %v1215
      %v1217 = vmul.f32 %v1149, %v1216
      %v1218 = vmul.f32 %v1150, %v1216
      %v1219 = vmul.f32 %v1151, %v1216
      %v1220 = vmul.f32 %v1152, %v1216
      %v1221 = vmul.f32 %v1153, %v1216
      %v1222 = vmul.f32 %v1154, %v1216
      %v1223 = vmul.f32 %v1155, %v1216
      %v1224 = vmul.f32 %v1156, %v1216
      %v1225 = vmul.f32 %v1157, %v1216
      %v1226 = vmul.f32 %v1158, %v1216
      %v1227 = vmul.f32 %v1159, %v1216
      %v1228 = vmul.f32 %v1160, %v1216
      %v1229 = vmul.f32 %v1161, %v1216
      %v1230 = vmul.f32 %v1162, %v1216
      %v1231 = vmul.f32 %v1163, %v1216
      %v1232 = vmul.f32 %v1164, %v1216
      %v1233 = vmul.f32 %v1165, %v1216
      %v1234 = vmul.f32 %v1166, %v1216
      %v1235 = vmul.f32 %v1167, %v1216
      %v1236 = vmul.f32 %v1168, %v1216
      %v1237 = vmul.f32 %v1169, %v1216
      %v1238 = vmul.f32 %v1170, %v1216
      %v1239 = vmul.f32 %v1171, %v1216
      %v1240 = vmul.f32 %v1172, %v1216
      %v1241 = vmul.f32 %v1173, %v1216
      %v1242 = vmul.f32 %v1174, %v1216
      %v1243 = vmul.f32 %v1175, %v1216
      %v1244 = vmul.f32 %v1176, %v1216
      %v1245 = vmul.f32 %v1177, %v1216
      %v1246 = vmul.f32 %v1178, %v1216
      %v1247 = vmul.f32 %v1179, %v1216
      %v1248 = vmul.f32 %v1180, %v1216
      %v1249 = vmul.f32 %v1181, %v1216
      %v1250 = vmul.f32 %v1182, %v1216
      %v1251 = vmul.f32 %v1183, %v1216
      %v1252 = vmul.f32 %v1184, %v1216
      %v1253 = vmul.f32 %v1185, %v1216
      %v1254 = vmul.f32 %v1186, %v1216
      %v1255 = vmul.f32 %v1187, %v1216
      %v1256 = vmul.f32 %v1188, %v1216
      %v1257 = vmul.f32 %v1189, %v1216
      %v1258 = vmul.f32 %v1190, %v1216
      %v1259 = vmul.f32 %v1191, %v1216
      %v1260 = vmul.f32 %v1192, %v1216
      %v1261 = vmul.f32 %v1193, %v1216
      %v1262 = vmul.f32 %v1194, %v1216
      %v1263 = vmul.f32 %v1195, %v1216
      %v1264 = vmul.f32 %v1196, %v1216
      %v1265 = vmul.f32 %v1197, %v1216
      %v1266 = vmul.f32 %v1198, %v1216
      %v1267 = vmul.f32 %v1199, %v1216
      %v1268 = vmul.f32 %v1200, %v1216
      %v1269 = vmul.f32 %v1201, %v1216
      %v1270 = vmul.f32 %v1202, %v1216
      %v1271 = vmul.f32 %v1203, %v1216
      %v1272 = vmul.f32 %v1204, %v1216
      %v1273 = vmul.f32 %v1205, %v1216
      %v1274 = vmul.f32 %v1206, %v1216
      %v1275 = vmul.f32 %v1207, %v1216
      %v1276 = vmul.f32 %v1208, %v1216
      %v1277 = vmul.f32 %v1209, %v1216
      %v1278 = vmul.f32 %v1210, %v1216
      %v1279 = vmul.f32 %v1211, %v1216
      %v1280 = vmul.f32 %v1212, %v1216
      %v1281 = vlaneseq
      %v1282 = vshrl.u32 %v1281, 7
      %v1283 = vsub.s32 0, %v1282
      %v1284 = vrot.slane %v375, %v1283
      %v1285 = vadd.f32 %v1217, %v1284
      %v1286 = vadd.f32 %v1218, %v1284
      %v1287 = vadd.f32 %v1219, %v1284
      %v1288 = vadd.f32 %v1220, %v1284
      %v1289 = vadd.f32 %v1221, %v1284
      %v1290 = vadd.f32 %v1222, %v1284
      %v1291 = vadd.f32 %v1223, %v1284
      %v1292 = vadd.f32 %v1224, %v1284
      %v1293 = vadd.f32 %v1225, %v1284
      %v1294 = vadd.f32 %v1226, %v1284
      %v1295 = vadd.f32 %v1227, %v1284
      %v1296 = vadd.f32 %v1228, %v1284
      %v1297 = vadd.f32 %v1229, %v1284
      %v1298 = vadd.f32 %v1230, %v1284
      %v1299 = vadd.f32 %v1231, %v1284
      %v1300 = vadd.f32 %v1232, %v1284
      %v1301 = vadd.f32 %v1233, %v1284
      %v1302 = vadd.f32 %v1234, %v1284
      %v1303 = vadd.f32 %v1235, %v1284
      %v1304 = vadd.f32 %v1236, %v1284
      %v1305 = vadd.f32 %v1237, %v1284
      %v1306 = vadd.f32 %v1238, %v1284
      %v1307 = vadd.f32 %v1239, %v1284
      %v1308 = vadd.f32 %v1240, %v1284
      %v1309 = vadd.f32 %v1241, %v1284
      %v1310 = vadd.f32 %v1242, %v1284
      %v1311 = vadd.f32 %v1243, %v1284
      %v1312 = vadd.f32 %v1244, %v1284
      %v1313 = vadd.f32 %v1245, %v1284
      %v1314 = vadd.f32 %v1246, %v1284
      %v1315 = vadd.f32 %v1247, %v1284
      %v1316 = vadd.f32 %v1248, %v1284
      %v1317 = vadd.f32 %v1249, %v1284
      %v1318 = vadd.f32 %v1250, %v1284
      %v1319 = vadd.f32 %v1251, %v1284
      %v1320 = vadd.f32 %v1252, %v1284
      %v1321 = vadd.f32 %v1253, %v1284
      %v1322 = vadd.f32 %v1254, %v1284
      %v1323 = vadd.f32 %v1255, %v1284
      %v1324 = vadd.f32 %v1256, %v1284
      %v1325 = vadd.f32 %v1257, %v1284
      %v1326 = vadd.f32 %v1258, %v1284
      %v1327 = vadd.f32 %v1259, %v1284
      %v1328 = vadd.f32 %v1260, %v1284
      %v1329 = vadd.f32 %v1261, %v1284
      %v1330 = vadd.f32 %v1262, %v1284
      %v1331 = vadd.f32 %v1263, %v1284
      %v1332 = vadd.f32 %v1264, %v1284
      %v1333 = vadd.f32 %v1265, %v1284
      %v1334 = vadd.f32 %v1266, %v1284
      %v1335 = vadd.f32 %v1267, %v1284
      %v1336 = vadd.f32 %v1268, %v1284
      %v1337 = vadd.f32 %v1269, %v1284
      %v1338 = vadd.f32 %v1270, %v1284
      %v1339 = vadd.f32 %v1271, %v1284
      %v1340 = vadd.f32 %v1272, %v1284
      %v1341 = vadd.f32 %v1273, %v1284
      %v1342 = vadd.f32 %v1274, %v1284
      %v1343 = vadd.f32 %v1275, %v1284
      %v1344 = vadd.f32 %v1276, %v1284
      %v1345 = vadd.f32 %v1277, %v1284
      %v1346 = vadd.f32 %v1278, %v1284
      %v1347 = vadd.f32 %v1279, %v1284
      %v1348 = vadd.f32 %v1280, %v1284
      %v1349 = vpack.c.bf16 %v1286, %v1285
      %v1350 = vpack.c.bf16 %v1288, %v1287
      %v1351 = vpack.c.bf16 %v1290, %v1289
      %v1352 = vpack.c.bf16 %v1292, %v1291
      %v1353 = vpack.c.bf16 %v1294, %v1293
      %v1354 = vpack.c.bf16 %v1296, %v1295
      %v1355 = vpack.c.bf16 %v1298, %v1297
      %v1356 = vpack.c.bf16 %v1300, %v1299
      %v1357 = vpack.c.bf16 %v1302, %v1301
      %v1358 = vpack.c.bf16 %v1304, %v1303
      %v1359 = vpack.c.bf16 %v1306, %v1305
      %v1360 = vpack.c.bf16 %v1308, %v1307
      %v1361 = vpack.c.bf16 %v1310, %v1309
      %v1362 = vpack.c.bf16 %v1312, %v1311
      %v1363 = vpack.c.bf16 %v1314, %v1313
      %v1364 = vpack.c.bf16 %v1316, %v1315
      %v1365 = vpack.c.bf16 %v1318, %v1317
      %v1366 = vpack.c.bf16 %v1320, %v1319
      %v1367 = vpack.c.bf16 %v1322, %v1321
      %v1368 = vpack.c.bf16 %v1324, %v1323
      %v1369 = vpack.c.bf16 %v1326, %v1325
      %v1370 = vpack.c.bf16 %v1328, %v1327
      %v1371 = vpack.c.bf16 %v1330, %v1329
      %v1372 = vpack.c.bf16 %v1332, %v1331
      %v1373 = vpack.c.bf16 %v1334, %v1333
      %v1374 = vpack.c.bf16 %v1336, %v1335
      %v1375 = vpack.c.bf16 %v1338, %v1337
      %v1376 = vpack.c.bf16 %v1340, %v1339
      %v1377 = vpack.c.bf16 %v1342, %v1341
      %v1378 = vpack.c.bf16 %v1344, %v1343
      %v1379 = vpack.c.bf16 %v1346, %v1345
      %v1380 = vpack.c.bf16 %v1348, %v1347
      %v1381 = vld [vmem:[%s2] sm:$0xf]
      %v1382 = vld [vmem:[%s2 + $0x4] sm:$0xf]
      %v1383 = vld [vmem:[%s2 + $0x8] sm:$0xf]
      %v1384 = vld [vmem:[%s2 + $0xc] sm:$0xf]
      %v1385 = vlaneseq
      %v1386 = vshrl.u32 %v1385, 7
      %v1387 = vsub.s32 0, %v1386
      %v1388 = vrot.slane %v376, %v1387
      %v1393 = vunpack.c.l.b16 %v1381
      %v1394 = vunpack.c.l.b16 %v1382
      %v1395 = vunpack.c.l.b16 %v1383
      %v1396 = vunpack.c.l.b16 %v1384
      %v1397 = vpack.c.b16 %v1394, %v1393
      %v1398 = vpack.c.b16 %v1396, %v1395
      %v1402 = vsel %vm379, %v1349, 0
      %v1405 = vsel %vm379, %v1350, 0
      %v1408 = vsel %vm379, %v1351, 0
      %v1411 = vsel %vm379, %v1352, 0
      %v1414 = vsel %vm379, %v1353, 0
      %v1417 = vsel %vm379, %v1354, 0
      %v1420 = vsel %vm379, %v1355, 0
      %v1423 = vsel %vm379, %v1356, 0
      %v1426 = vsel %vm379, %v1357, 0
      %v1429 = vsel %vm379, %v1358, 0
      %v1432 = vsel %vm379, %v1359, 0
      %v1435 = vsel %vm379, %v1360, 0
      %v1438 = vsel %vm379, %v1361, 0
      %v1441 = vsel %vm379, %v1362, 0
      %v1444 = vsel %vm379, %v1363, 0
      %v1447 = vsel %vm379, %v1364, 0
      %v1450 = vsel %vm379, %v1365, 0
      %v1453 = vsel %vm379, %v1366, 0
      %v1456 = vsel %vm379, %v1367, 0
      %v1459 = vsel %vm379, %v1368, 0
      %v1462 = vsel %vm379, %v1369, 0
      %v1465 = vsel %vm379, %v1370, 0
      %v1468 = vsel %vm379, %v1371, 0
      %v1471 = vsel %vm379, %v1372, 0
      %v1474 = vsel %vm379, %v1373, 0
      %v1477 = vsel %vm379, %v1374, 0
      %v1480 = vsel %vm379, %v1375, 0
      %v1483 = vsel %vm379, %v1376, 0
      %v1486 = vsel %vm379, %v1377, 0
      %v1489 = vsel %vm379, %v1378, 0
      %v1492 = vsel %vm379, %v1379, 0
      %v1495 = vsel %vm379, %v1380, 0
      %1497 = vmatprep.subr.bf16.mxu0 0
      %1498 = vmatpush1.bf16.msra.mxu0 0
      %1499 = vmatprep.subr.bf16.mxu0 0
      %1500 = vmatpush1.bf16.msra.mxu0 0
      %1501 = vmatprep.subr.bf16.mxu0 0
      %1502 = vmatpush1.bf16.msra.mxu0 0
      %1503 = vmatprep.subr.bf16.mxu0 0
      %1504 = vmatpush1.bf16.msra.mxu0 0
      %1505 = vmatprep.subr.bf16.mxu0 0
      %1506 = vmatpush1.bf16.msra.mxu0 0
      %1507 = vmatprep.subr.bf16.mxu0 0
      %1508 = vmatpush1.bf16.msra.mxu0 0
      %1509 = vmatprep.subr.bf16.mxu0 0
      %1510 = vmatpush1.bf16.msra.mxu0 %v1398
      %1511 = vmatprep.subr.bf16.mxu0 0
      %1512 = vmatpush1.bf16.msra.mxu0 %v1397
      %1513 = vmatprep.subr.bf16.mxu0 0
      %1514 = vmatpush2.bf16.msra.mxu0 0
      %1515 = vmatprep.subr.bf16.mxu0 0
      %1516 = vmatpush2.bf16.msra.mxu0 0
      %1517 = vmatprep.subr.bf16.mxu0 0
      %1518 = vmatpush2.bf16.msra.mxu0 0
      %1519 = vmatprep.subr.bf16.mxu0 0
      %1520 = vmatpush2.bf16.msra.mxu0 0
      %1521 = vmatprep.subr.bf16.mxu0 0
      %1522 = vmatpush2.bf16.msra.mxu0 0
      %1523 = vmatprep.subr.bf16.mxu0 0
      %1524 = vmatpush2.bf16.msra.mxu0 0
      %1525 = vmatprep.subr.bf16.mxu0 0
      %1526 = vmatpush2.bf16.msra.mxu0 0
      %1527 = vmatprep.subr.bf16.mxu0 0
      %1528 = vmatpush2.bf16.msra.mxu0 0
      %1529 = vmatprep.mubr.bf16.mxu0 0
      %1530 = vmatmul.mubr.bf16.gmra.mxu0 %v1402
      %v1531 = vpop.f32.mrf.mxu0
      %v1532 = vadd.f32 %v1388, %v1531
      %v1533 = vpop.f32.mrf.mxu0
      %v1534 = vpop.f32.mrf.mxu0
      %v1535 = vadd.f32 %v1388, %v1534
      %v1536 = vpop.f32.mrf.mxu0
      %1537 = vmatprep.mubr.bf16.mxu0 0
      %1538 = vmatmul.mubr.bf16.gmra.mxu0 %v1405
      %v1539 = vpop.f32.mrf.mxu0
      %v1540 = vadd.f32 %v1388, %v1539
      %v1541 = vpop.f32.mrf.mxu0
      %v1542 = vpop.f32.mrf.mxu0
      %v1543 = vadd.f32 %v1388, %v1542
      %v1544 = vpop.f32.mrf.mxu0
      %1545 = vmatprep.mubr.bf16.mxu0 0
      %1546 = vmatmul.mubr.bf16.gmra.mxu0 %v1408
      %v1547 = vpop.f32.mrf.mxu0
      %v1548 = vadd.f32 %v1388, %v1547
      %v1549 = vpop.f32.mrf.mxu0
      %v1550 = vpop.f32.mrf.mxu0
      %v1551 = vadd.f32 %v1388, %v1550
      %v1552 = vpop.f32.mrf.mxu0
      %1553 = vmatprep.mubr.bf16.mxu0 0
      %1554 = vmatmul.mubr.bf16.gmra.mxu0 %v1411
      %v1555 = vpop.f32.mrf.mxu0
      %v1556 = vadd.f32 %v1388, %v1555
      %v1557 = vpop.f32.mrf.mxu0
      %v1558 = vpop.f32.mrf.mxu0
      %v1559 = vadd.f32 %v1388, %v1558
      %v1560 = vpop.f32.mrf.mxu0
      %1561 = vmatprep.mubr.bf16.mxu0 0
      %1562 = vmatmul.mubr.bf16.gmra.mxu0 %v1414
      %v1563 = vpop.f32.mrf.mxu0
      %v1564 = vadd.f32 %v1388, %v1563
      %v1565 = vpop.f32.mrf.mxu0
      %v1566 = vpop.f32.mrf.mxu0
      %v1567 = vadd.f32 %v1388, %v1566
      %v1568 = vpop.f32.mrf.mxu0
      %1569 = vmatprep.mubr.bf16.mxu0 0
      %1570 = vmatmul.mubr.bf16.gmra.mxu0 %v1417
      %v1571 = vpop.f32.mrf.mxu0
      %v1572 = vadd.f32 %v1388, %v1571
      %v1573 = vpop.f32.mrf.mxu0
      %v1574 = vpop.f32.mrf.mxu0
      %v1575 = vadd.f32 %v1388, %v1574
      %v1576 = vpop.f32.mrf.mxu0
      %1577 = vmatprep.mubr.bf16.mxu0 0
      %1578 = vmatmul.mubr.bf16.gmra.mxu0 %v1420
      %v1579 = vpop.f32.mrf.mxu0
      %v1580 = vadd.f32 %v1388, %v1579
      %v1581 = vpop.f32.mrf.mxu0
      %v1582 = vpop.f32.mrf.mxu0
      %v1583 = vadd.f32 %v1388, %v1582
      %v1584 = vpop.f32.mrf.mxu0
      %1585 = vmatprep.mubr.bf16.mxu0 0
      %1586 = vmatmul.mubr.bf16.gmra.mxu0 %v1423
      %v1587 = vpop.f32.mrf.mxu0
      %v1588 = vadd.f32 %v1388, %v1587
      %v1589 = vpop.f32.mrf.mxu0
      %v1590 = vpop.f32.mrf.mxu0
      %v1591 = vadd.f32 %v1388, %v1590
      %v1592 = vpop.f32.mrf.mxu0
      %1593 = vmatprep.mubr.bf16.mxu0 0
      %1594 = vmatmul.mubr.bf16.gmra.mxu0 %v1426
      %v1595 = vpop.f32.mrf.mxu0
      %v1596 = vadd.f32 %v1388, %v1595
      %v1597 = vpop.f32.mrf.mxu0
      %v1598 = vpop.f32.mrf.mxu0
      %v1599 = vadd.f32 %v1388, %v1598
      %v1600 = vpop.f32.mrf.mxu0
      %1601 = vmatprep.mubr.bf16.mxu0 0
      %1602 = vmatmul.mubr.bf16.gmra.mxu0 %v1429
      %v1603 = vpop.f32.mrf.mxu0
      %v1604 = vadd.f32 %v1388, %v1603
      %v1605 = vpop.f32.mrf.mxu0
      %v1606 = vpop.f32.mrf.mxu0
      %v1607 = vadd.f32 %v1388, %v1606
      %v1608 = vpop.f32.mrf.mxu0
      %1609 = vmatprep.mubr.bf16.mxu0 0
      %1610 = vmatmul.mubr.bf16.gmra.mxu0 %v1432
      %v1611 = vpop.f32.mrf.mxu0
      %v1612 = vadd.f32 %v1388, %v1611
      %v1613 = vpop.f32.mrf.mxu0
      %v1614 = vpop.f32.mrf.mxu0
      %v1615 = vadd.f32 %v1388, %v1614
      %v1616 = vpop.f32.mrf.mxu0
      %1617 = vmatprep.mubr.bf16.mxu0 0
      %1618 = vmatmul.mubr.bf16.gmra.mxu0 %v1435
      %v1619 = vpop.f32.mrf.mxu0
      %v1620 = vadd.f32 %v1388, %v1619
      %v1621 = vpop.f32.mrf.mxu0
      %v1622 = vpop.f32.mrf.mxu0
      %v1623 = vadd.f32 %v1388, %v1622
      %v1624 = vpop.f32.mrf.mxu0
      %1625 = vmatprep.mubr.bf16.mxu0 0
      %1626 = vmatmul.mubr.bf16.gmra.mxu0 %v1438
      %v1627 = vpop.f32.mrf.mxu0
      %v1628 = vadd.f32 %v1388, %v1627
      %v1629 = vpop.f32.mrf.mxu0
      %v1630 = vpop.f32.mrf.mxu0
      %v1631 = vadd.f32 %v1388, %v1630
      %v1632 = vpop.f32.mrf.mxu0
      %1633 = vmatprep.mubr.bf16.mxu0 0
      %1634 = vmatmul.mubr.bf16.gmra.mxu0 %v1441
      %v1635 = vpop.f32.mrf.mxu0
      %v1636 = vadd.f32 %v1388, %v1635
      %v1637 = vpop.f32.mrf.mxu0
      %v1638 = vpop.f32.mrf.mxu0
      %v1639 = vadd.f32 %v1388, %v1638
      %v1640 = vpop.f32.mrf.mxu0
      %1641 = vmatprep.mubr.bf16.mxu0 0
      %1642 = vmatmul.mubr.bf16.gmra.mxu0 %v1444
      %v1643 = vpop.f32.mrf.mxu0
      %v1644 = vadd.f32 %v1388, %v1643
      %v1645 = vpop.f32.mrf.mxu0
      %v1646 = vpop.f32.mrf.mxu0
      %v1647 = vadd.f32 %v1388, %v1646
      %v1648 = vpop.f32.mrf.mxu0
      %1649 = vmatprep.mubr.bf16.mxu0 0
      %1650 = vmatmul.mubr.bf16.gmra.mxu0 %v1447
      %v1651 = vpop.f32.mrf.mxu0
      %v1652 = vadd.f32 %v1388, %v1651
      %v1653 = vpop.f32.mrf.mxu0
      %v1654 = vpop.f32.mrf.mxu0
      %v1655 = vadd.f32 %v1388, %v1654
      %v1656 = vpop.f32.mrf.mxu0
      %1657 = vmatprep.mubr.bf16.mxu0 0
      %1658 = vmatmul.mubr.bf16.gmra.mxu0 %v1450
      %v1659 = vpop.f32.mrf.mxu0
      %v1660 = vadd.f32 %v1388, %v1659
      %v1661 = vpop.f32.mrf.mxu0
      %v1662 = vpop.f32.mrf.mxu0
      %v1663 = vadd.f32 %v1388, %v1662
      %v1664 = vpop.f32.mrf.mxu0
      %1665 = vmatprep.mubr.bf16.mxu0 0
      %1666 = vmatmul.mubr.bf16.gmra.mxu0 %v1453
      %v1667 = vpop.f32.mrf.mxu0
      %v1668 = vadd.f32 %v1388, %v1667
      %v1669 = vpop.f32.mrf.mxu0
      %v1670 = vpop.f32.mrf.mxu0
      %v1671 = vadd.f32 %v1388, %v1670
      %v1672 = vpop.f32.mrf.mxu0
      %1673 = vmatprep.mubr.bf16.mxu0 0
      %1674 = vmatmul.mubr.bf16.gmra.mxu0 %v1456
      %v1675 = vpop.f32.mrf.mxu0
      %v1676 = vadd.f32 %v1388, %v1675
      %v1677 = vpop.f32.mrf.mxu0
      %v1678 = vpop.f32.mrf.mxu0
      %v1679 = vadd.f32 %v1388, %v1678
      %v1680 = vpop.f32.mrf.mxu0
      %1681 = vmatprep.mubr.bf16.mxu0 0
      %1682 = vmatmul.mubr.bf16.gmra.mxu0 %v1459
      %v1683 = vpop.f32.mrf.mxu0
      %v1684 = vadd.f32 %v1388, %v1683
      %v1685 = vpop.f32.mrf.mxu0
      %v1686 = vpop.f32.mrf.mxu0
      %v1687 = vadd.f32 %v1388, %v1686
      %v1688 = vpop.f32.mrf.mxu0
      %1689 = vmatprep.mubr.bf16.mxu0 0
      %1690 = vmatmul.mubr.bf16.gmra.mxu0 %v1462
      %v1691 = vpop.f32.mrf.mxu0
      %v1692 = vadd.f32 %v1388, %v1691
      %v1693 = vpop.f32.mrf.mxu0
      %v1694 = vpop.f32.mrf.mxu0
      %v1695 = vadd.f32 %v1388, %v1694
      %v1696 = vpop.f32.mrf.mxu0
      %1697 = vmatprep.mubr.bf16.mxu0 0
      %1698 = vmatmul.mubr.bf16.gmra.mxu0 %v1465
      %v1699 = vpop.f32.mrf.mxu0
      %v1700 = vadd.f32 %v1388, %v1699
      %v1701 = vpop.f32.mrf.mxu0
      %v1702 = vpop.f32.mrf.mxu0
      %v1703 = vadd.f32 %v1388, %v1702
      %v1704 = vpop.f32.mrf.mxu0
      %1705 = vmatprep.mubr.bf16.mxu0 0
      %1706 = vmatmul.mubr.bf16.gmra.mxu0 %v1468
      %v1707 = vpop.f32.mrf.mxu0
      %v1708 = vadd.f32 %v1388, %v1707
      %v1709 = vpop.f32.mrf.mxu0
      %v1710 = vpop.f32.mrf.mxu0
      %v1711 = vadd.f32 %v1388, %v1710
      %v1712 = vpop.f32.mrf.mxu0
      %1713 = vmatprep.mubr.bf16.mxu0 0
      %1714 = vmatmul.mubr.bf16.gmra.mxu0 %v1471
      %v1715 = vpop.f32.mrf.mxu0
      %v1716 = vadd.f32 %v1388, %v1715
      %v1717 = vpop.f32.mrf.mxu0
      %v1718 = vpop.f32.mrf.mxu0
      %v1719 = vadd.f32 %v1388, %v1718
      %v1720 = vpop.f32.mrf.mxu0
      %1721 = vmatprep.mubr.bf16.mxu0 0
      %1722 = vmatmul.mubr.bf16.gmra.mxu0 %v1474
      %v1723 = vpop.f32.mrf.mxu0
      %v1724 = vadd.f32 %v1388, %v1723
      %v1725 = vpop.f32.mrf.mxu0
      %v1726 = vpop.f32.mrf.mxu0
      %v1727 = vadd.f32 %v1388, %v1726
      %v1728 = vpop.f32.mrf.mxu0
      %1729 = vmatprep.mubr.bf16.mxu0 0
      %1730 = vmatmul.mubr.bf16.gmra.mxu0 %v1477
      %v1731 = vpop.f32.mrf.mxu0
      %v1732 = vadd.f32 %v1388, %v1731
      %v1733 = vpop.f32.mrf.mxu0
      %v1734 = vpop.f32.mrf.mxu0
      %v1735 = vadd.f32 %v1388, %v1734
      %v1736 = vpop.f32.mrf.mxu0
      %1737 = vmatprep.mubr.bf16.mxu0 0
      %1738 = vmatmul.mubr.bf16.gmra.mxu0 %v1480
      %v1739 = vpop.f32.mrf.mxu0
      %v1740 = vadd.f32 %v1388, %v1739
      %v1741 = vpop.f32.mrf.mxu0
      %v1742 = vpop.f32.mrf.mxu0
      %v1743 = vadd.f32 %v1388, %v1742
      %v1744 = vpop.f32.mrf.mxu0
      %1745 = vmatprep.mubr.bf16.mxu0 0
      %1746 = vmatmul.mubr.bf16.gmra.mxu0 %v1483
      %v1747 = vpop.f32.mrf.mxu0
      %v1748 = vadd.f32 %v1388, %v1747
      %v1749 = vpop.f32.mrf.mxu0
      %v1750 = vpop.f32.mrf.mxu0
      %v1751 = vadd.f32 %v1388, %v1750
      %v1752 = vpop.f32.mrf.mxu0
      %1753 = vmatprep.mubr.bf16.mxu0 0
      %1754 = vmatmul.mubr.bf16.gmra.mxu0 %v1486
      %v1755 = vpop.f32.mrf.mxu0
      %v1756 = vadd.f32 %v1388, %v1755
      %v1757 = vpop.f32.mrf.mxu0
      %v1758 = vpop.f32.mrf.mxu0
      %v1759 = vadd.f32 %v1388, %v1758
      %v1760 = vpop.f32.mrf.mxu0
      %1761 = vmatprep.mubr.bf16.mxu0 0
      %1762 = vmatmul.mubr.bf16.gmra.mxu0 %v1489
      %v1763 = vpop.f32.mrf.mxu0
      %v1764 = vadd.f32 %v1388, %v1763
      %v1765 = vpop.f32.mrf.mxu0
      %v1766 = vpop.f32.mrf.mxu0
      %v1767 = vadd.f32 %v1388, %v1766
      %v1768 = vpop.f32.mrf.mxu0
      %1769 = vmatprep.mubr.bf16.mxu0 0
      %1770 = vmatmul.mubr.bf16.gmra.mxu0 %v1492
      %v1771 = vpop.f32.mrf.mxu0
      %v1772 = vadd.f32 %v1388, %v1771
      %v1773 = vpop.f32.mrf.mxu0
      %v1774 = vpop.f32.mrf.mxu0
      %v1775 = vadd.f32 %v1388, %v1774
      %v1776 = vpop.f32.mrf.mxu0
      %1777 = vmatprep.mubr.bf16.mxu0 0
      %1778 = vmatmul.mubr.bf16.gmra.mxu0 %v1495
      %v1779 = vpop.f32.mrf.mxu0
      %v1780 = vadd.f32 %v1388, %v1779
      %v1781 = vpop.f32.mrf.mxu0
      %v1782 = vpop.f32.mrf.mxu0
      %v1783 = vadd.f32 %v1388, %v1782
      %v1784 = vpop.f32.mrf.mxu0
      %1785 = vdwg.mxu0
      %v1786 = vmax.f32 %v1532, 0.0
      %v1787 = vmax.f32 %v1535, 0.0
      %v1788 = vmax.f32 %v1540, 0.0
      %v1789 = vmax.f32 %v1543, 0.0
      %v1790 = vmax.f32 %v1548, 0.0
      %v1791 = vmax.f32 %v1551, 0.0
      %v1792 = vmax.f32 %v1556, 0.0
      %v1793 = vmax.f32 %v1559, 0.0
      %v1794 = vmax.f32 %v1564, 0.0
      %v1795 = vmax.f32 %v1567, 0.0
      %v1796 = vmax.f32 %v1572, 0.0
      %v1797 = vmax.f32 %v1575, 0.0
      %v1798 = vmax.f32 %v1580, 0.0
      %v1799 = vmax.f32 %v1583, 0.0
      %v1800 = vmax.f32 %v1588, 0.0
      %v1801 = vmax.f32 %v1591, 0.0
      %v1802 = vmax.f32 %v1596, 0.0
      %v1803 = vmax.f32 %v1599, 0.0
      %v1804 = vmax.f32 %v1604, 0.0
      %v1805 = vmax.f32 %v1607, 0.0
      %v1806 = vmax.f32 %v1612, 0.0
      %v1807 = vmax.f32 %v1615, 0.0
      %v1808 = vmax.f32 %v1620, 0.0
      %v1809 = vmax.f32 %v1623, 0.0
      %v1810 = vmax.f32 %v1628, 0.0
      %v1811 = vmax.f32 %v1631, 0.0
      %v1812 = vmax.f32 %v1636, 0.0
      %v1813 = vmax.f32 %v1639, 0.0
      %v1814 = vmax.f32 %v1644, 0.0
      %v1815 = vmax.f32 %v1647, 0.0
      %v1816 = vmax.f32 %v1652, 0.0
      %v1817 = vmax.f32 %v1655, 0.0
      %v1818 = vmax.f32 %v1660, 0.0
      %v1819 = vmax.f32 %v1663, 0.0
      %v1820 = vmax.f32 %v1668, 0.0
      %v1821 = vmax.f32 %v1671, 0.0
      %v1822 = vmax.f32 %v1676, 0.0
      %v1823 = vmax.f32 %v1679, 0.0
      %v1824 = vmax.f32 %v1684, 0.0
      %v1825 = vmax.f32 %v1687, 0.0
      %v1826 = vmax.f32 %v1692, 0.0
      %v1827 = vmax.f32 %v1695, 0.0
      %v1828 = vmax.f32 %v1700, 0.0
      %v1829 = vmax.f32 %v1703, 0.0
      %v1830 = vmax.f32 %v1708, 0.0
      %v1831 = vmax.f32 %v1711, 0.0
      %v1832 = vmax.f32 %v1716, 0.0
      %v1833 = vmax.f32 %v1719, 0.0
      %v1834 = vmax.f32 %v1724, 0.0
      %v1835 = vmax.f32 %v1727, 0.0
      %v1836 = vmax.f32 %v1732, 0.0
      %v1837 = vmax.f32 %v1735, 0.0
      %v1838 = vmax.f32 %v1740, 0.0
      %v1839 = vmax.f32 %v1743, 0.0
      %v1840 = vmax.f32 %v1748, 0.0
      %v1841 = vmax.f32 %v1751, 0.0
      %v1842 = vmax.f32 %v1756, 0.0
      %v1843 = vmax.f32 %v1759, 0.0
      %v1844 = vmax.f32 %v1764, 0.0
      %v1845 = vmax.f32 %v1767, 0.0
      %v1846 = vmax.f32 %v1772, 0.0
      %v1847 = vmax.f32 %v1775, 0.0
      %v1848 = vmax.f32 %v1780, 0.0
      %v1849 = vmax.f32 %v1783, 0.0
      %v1850 = vpack.c.bf16 %v1787, %v1786
      %v1851 = vpack.c.bf16 %v1789, %v1788
      %v1852 = vpack.c.bf16 %v1791, %v1790
      %v1853 = vpack.c.bf16 %v1793, %v1792
      %v1854 = vpack.c.bf16 %v1795, %v1794
      %v1855 = vpack.c.bf16 %v1797, %v1796
      %v1856 = vpack.c.bf16 %v1799, %v1798
      %v1857 = vpack.c.bf16 %v1801, %v1800
      %v1858 = vpack.c.bf16 %v1803, %v1802
      %v1859 = vpack.c.bf16 %v1805, %v1804
      %v1860 = vpack.c.bf16 %v1807, %v1806
      %v1861 = vpack.c.bf16 %v1809, %v1808
      %v1862 = vpack.c.bf16 %v1811, %v1810
      %v1863 = vpack.c.bf16 %v1813, %v1812
      %v1864 = vpack.c.bf16 %v1815, %v1814
      %v1865 = vpack.c.bf16 %v1817, %v1816
      %v1866 = vpack.c.bf16 %v1819, %v1818
      %v1867 = vpack.c.bf16 %v1821, %v1820
      %v1868 = vpack.c.bf16 %v1823, %v1822
      %v1869 = vpack.c.bf16 %v1825, %v1824
      %v1870 = vpack.c.bf16 %v1827, %v1826
      %v1871 = vpack.c.bf16 %v1829, %v1828
      %v1872 = vpack.c.bf16 %v1831, %v1830
      %v1873 = vpack.c.bf16 %v1833, %v1832
      %v1874 = vpack.c.bf16 %v1835, %v1834
      %v1875 = vpack.c.bf16 %v1837, %v1836
      %v1876 = vpack.c.bf16 %v1839, %v1838
      %v1877 = vpack.c.bf16 %v1841, %v1840
      %v1878 = vpack.c.bf16 %v1843, %v1842
      %v1879 = vpack.c.bf16 %v1845, %v1844
      %v1880 = vpack.c.bf16 %v1847, %v1846
      %v1881 = vpack.c.bf16 %v1849, %v1848
      %v1882 = vld [vmem:[%s3] sm:$0xf]
      %v1883 = vld [vmem:[%s3 + $0x4] sm:$0xf]
      %v1884 = vld [vmem:[%s3 + $0x8] sm:$0xf]
      %v1885 = vld [vmem:[%s3 + $0xc] sm:$0xf]
      %v1886 = vlaneseq
      %v1887 = vshrl.u32 %v1886, 7
      %v1888 = vsub.s32 0, %v1887
      %v1889 = vrot.slane %v377, %v1888
      %v1894 = vunpack.c.l.b16 %v1882
      %v1895 = vunpack.c.l.b16 %v1883
      %v1896 = vunpack.c.l.b16 %v1884
      %v1897 = vunpack.c.l.b16 %v1885
      %v1898 = vpack.c.b16 %v1895, %v1894
      %v1899 = vpack.c.b16 %v1897, %v1896
      %v1903 = vsel %vm379, %v1850, 0
      %v1906 = vsel %vm379, %v1851, 0
      %v1909 = vsel %vm379, %v1852, 0
      %v1912 = vsel %vm379, %v1853, 0
      %v1915 = vsel %vm379, %v1854, 0
      %v1918 = vsel %vm379, %v1855, 0
      %v1921 = vsel %vm379, %v1856, 0
      %v1924 = vsel %vm379, %v1857, 0
      %v1927 = vsel %vm379, %v1858, 0
      %v1930 = vsel %vm379, %v1859, 0
      %v1933 = vsel %vm379, %v1860, 0
      %v1936 = vsel %vm379, %v1861, 0
      %v1939 = vsel %vm379, %v1862, 0
      %v1942 = vsel %vm379, %v1863, 0
      %v1945 = vsel %vm379, %v1864, 0
      %v1948 = vsel %vm379, %v1865, 0
      %v1951 = vsel %vm379, %v1866, 0
      %v1954 = vsel %vm379, %v1867, 0
      %v1957 = vsel %vm379, %v1868, 0
      %v1960 = vsel %vm379, %v1869, 0
      %v1963 = vsel %vm379, %v1870, 0
      %v1966 = vsel %vm379, %v1871, 0
      %v1969 = vsel %vm379, %v1872, 0
      %v1972 = vsel %vm379, %v1873, 0
      %v1975 = vsel %vm379, %v1874, 0
      %v1978 = vsel %vm379, %v1875, 0
      %v1981 = vsel %vm379, %v1876, 0
      %v1984 = vsel %vm379, %v1877, 0
      %v1987 = vsel %vm379, %v1878, 0
      %v1990 = vsel %vm379, %v1879, 0
      %v1993 = vsel %vm379, %v1880, 0
      %v1996 = vsel %vm379, %v1881, 0
      %1998 = vmatprep.subr.bf16.mxu0 0
      %1999 = vmatpush1.bf16.msra.mxu0 0
      %2000 = vmatprep.subr.bf16.mxu0 0
      %2001 = vmatpush1.bf16.msra.mxu0 0
      %2002 = vmatprep.subr.bf16.mxu0 0
      %2003 = vmatpush1.bf16.msra.mxu0 0
      %2004 = vmatprep.subr.bf16.mxu0 0
      %2005 = vmatpush1.bf16.msra.mxu0 0
      %2006 = vmatprep.subr.bf16.mxu0 0
      %2007 = vmatpush1.bf16.msra.mxu0 0
      %2008 = vmatprep.subr.bf16.mxu0 0
      %2009 = vmatpush1.bf16.msra.mxu0 0
      %2010 = vmatprep.subr.bf16.mxu0 0
      %2011 = vmatpush1.bf16.msra.mxu0 %v1899
      %2012 = vmatprep.subr.bf16.mxu0 0
      %2013 = vmatpush1.bf16.msra.mxu0 %v1898
      %2014 = vmatprep.subr.bf16.mxu0 0
      %2015 = vmatpush2.bf16.msra.mxu0 0
      %2016 = vmatprep.subr.bf16.mxu0 0
      %2017 = vmatpush2.bf16.msra.mxu0 0
      %2018 = vmatprep.subr.bf16.mxu0 0
      %2019 = vmatpush2.bf16.msra.mxu0 0
      %2020 = vmatprep.subr.bf16.mxu0 0
      %2021 = vmatpush2.bf16.msra.mxu0 0
      %2022 = vmatprep.subr.bf16.mxu0 0
      %2023 = vmatpush2.bf16.msra.mxu0 0
      %2024 = vmatprep.subr.bf16.mxu0 0
      %2025 = vmatpush2.bf16.msra.mxu0 0
      %2026 = vmatprep.subr.bf16.mxu0 0
      %2027 = vmatpush2.bf16.msra.mxu0 0
      %2028 = vmatprep.subr.bf16.mxu0 0
      %2029 = vmatpush2.bf16.msra.mxu0 0
      %2030 = vmatprep.mubr.bf16.mxu0 0
      %2031 = vmatmul.mubr.bf16.gmra.mxu0 %v1903
      %v2032 = vpop.f32.mrf.mxu0
      %v2033 = vadd.f32 %v1889, %v2032
      %v2034 = vpop.f32.mrf.mxu0
      %v2035 = vpop.f32.mrf.mxu0
      %v2036 = vadd.f32 %v1889, %v2035
      %v2037 = vpop.f32.mrf.mxu0
      %2038 = vmatprep.mubr.bf16.mxu0 0
      %2039 = vmatmul.mubr.bf16.gmra.mxu0 %v1906
      %v2040 = vpop.f32.mrf.mxu0
      %v2041 = vadd.f32 %v1889, %v2040
      %v2042 = vpop.f32.mrf.mxu0
      %v2043 = vpop.f32.mrf.mxu0
      %v2044 = vadd.f32 %v1889, %v2043
      %v2045 = vpop.f32.mrf.mxu0
      %2046 = vmatprep.mubr.bf16.mxu0 0
      %2047 = vmatmul.mubr.bf16.gmra.mxu0 %v1909
      %v2048 = vpop.f32.mrf.mxu0
      %v2049 = vadd.f32 %v1889, %v2048
      %v2050 = vpop.f32.mrf.mxu0
      %v2051 = vpop.f32.mrf.mxu0
      %v2052 = vadd.f32 %v1889, %v2051
      %v2053 = vpop.f32.mrf.mxu0
      %2054 = vmatprep.mubr.bf16.mxu0 0
      %2055 = vmatmul.mubr.bf16.gmra.mxu0 %v1912
      %v2056 = vpop.f32.mrf.mxu0
      %v2057 = vadd.f32 %v1889, %v2056
      %v2058 = vpop.f32.mrf.mxu0
      %v2059 = vpop.f32.mrf.mxu0
      %v2060 = vadd.f32 %v1889, %v2059
      %v2061 = vpop.f32.mrf.mxu0
      %2062 = vmatprep.mubr.bf16.mxu0 0
      %2063 = vmatmul.mubr.bf16.gmra.mxu0 %v1915
      %v2064 = vpop.f32.mrf.mxu0
      %v2065 = vadd.f32 %v1889, %v2064
      %v2066 = vpop.f32.mrf.mxu0
      %v2067 = vpop.f32.mrf.mxu0
      %v2068 = vadd.f32 %v1889, %v2067
      %v2069 = vpop.f32.mrf.mxu0
      %2070 = vmatprep.mubr.bf16.mxu0 0
      %2071 = vmatmul.mubr.bf16.gmra.mxu0 %v1918
      %v2072 = vpop.f32.mrf.mxu0
      %v2073 = vadd.f32 %v1889, %v2072
      %v2074 = vpop.f32.mrf.mxu0
      %v2075 = vpop.f32.mrf.mxu0
      %v2076 = vadd.f32 %v1889, %v2075
      %v2077 = vpop.f32.mrf.mxu0
      %2078 = vmatprep.mubr.bf16.mxu0 0
      %2079 = vmatmul.mubr.bf16.gmra.mxu0 %v1921
      %v2080 = vpop.f32.mrf.mxu0
      %v2081 = vadd.f32 %v1889, %v2080
      %v2082 = vpop.f32.mrf.mxu0
      %v2083 = vpop.f32.mrf.mxu0
      %v2084 = vadd.f32 %v1889, %v2083
      %v2085 = vpop.f32.mrf.mxu0
      %2086 = vmatprep.mubr.bf16.mxu0 0
      %2087 = vmatmul.mubr.bf16.gmra.mxu0 %v1924
      %v2088 = vpop.f32.mrf.mxu0
      %v2089 = vadd.f32 %v1889, %v2088
      %v2090 = vpop.f32.mrf.mxu0
      %v2091 = vpop.f32.mrf.mxu0
      %v2092 = vadd.f32 %v1889, %v2091
      %v2093 = vpop.f32.mrf.mxu0
      %2094 = vmatprep.mubr.bf16.mxu0 0
      %2095 = vmatmul.mubr.bf16.gmra.mxu0 %v1927
      %v2096 = vpop.f32.mrf.mxu0
      %v2097 = vadd.f32 %v1889, %v2096
      %v2098 = vpop.f32.mrf.mxu0
      %v2099 = vpop.f32.mrf.mxu0
      %v2100 = vadd.f32 %v1889, %v2099
      %v2101 = vpop.f32.mrf.mxu0
      %2102 = vmatprep.mubr.bf16.mxu0 0
      %2103 = vmatmul.mubr.bf16.gmra.mxu0 %v1930
      %v2104 = vpop.f32.mrf.mxu0
      %v2105 = vadd.f32 %v1889, %v2104
      %v2106 = vpop.f32.mrf.mxu0
      %v2107 = vpop.f32.mrf.mxu0
      %v2108 = vadd.f32 %v1889, %v2107
      %v2109 = vpop.f32.mrf.mxu0
      %2110 = vmatprep.mubr.bf16.mxu0 0
      %2111 = vmatmul.mubr.bf16.gmra.mxu0 %v1933
      %v2112 = vpop.f32.mrf.mxu0
      %v2113 = vadd.f32 %v1889, %v2112
      %v2114 = vpop.f32.mrf.mxu0
      %v2115 = vpop.f32.mrf.mxu0
      %v2116 = vadd.f32 %v1889, %v2115
      %v2117 = vpop.f32.mrf.mxu0
      %2118 = vmatprep.mubr.bf16.mxu0 0
      %2119 = vmatmul.mubr.bf16.gmra.mxu0 %v1936
      %v2120 = vpop.f32.mrf.mxu0
      %v2121 = vadd.f32 %v1889, %v2120
      %v2122 = vpop.f32.mrf.mxu0
      %v2123 = vpop.f32.mrf.mxu0
      %v2124 = vadd.f32 %v1889, %v2123
      %v2125 = vpop.f32.mrf.mxu0
      %2126 = vmatprep.mubr.bf16.mxu0 0
      %2127 = vmatmul.mubr.bf16.gmra.mxu0 %v1939
      %v2128 = vpop.f32.mrf.mxu0
      %v2129 = vadd.f32 %v1889, %v2128
      %v2130 = vpop.f32.mrf.mxu0
      %v2131 = vpop.f32.mrf.mxu0
      %v2132 = vadd.f32 %v1889, %v2131
      %v2133 = vpop.f32.mrf.mxu0
      %2134 = vmatprep.mubr.bf16.mxu0 0
      %2135 = vmatmul.mubr.bf16.gmra.mxu0 %v1942
      %v2136 = vpop.f32.mrf.mxu0
      %v2137 = vadd.f32 %v1889, %v2136
      %v2138 = vpop.f32.mrf.mxu0
      %v2139 = vpop.f32.mrf.mxu0
      %v2140 = vadd.f32 %v1889, %v2139
      %v2141 = vpop.f32.mrf.mxu0
      %2142 = vmatprep.mubr.bf16.mxu0 0
      %2143 = vmatmul.mubr.bf16.gmra.mxu0 %v1945
      %v2144 = vpop.f32.mrf.mxu0
      %v2145 = vadd.f32 %v1889, %v2144
      %v2146 = vpop.f32.mrf.mxu0
      %v2147 = vpop.f32.mrf.mxu0
      %v2148 = vadd.f32 %v1889, %v2147
      %v2149 = vpop.f32.mrf.mxu0
      %2150 = vmatprep.mubr.bf16.mxu0 0
      %2151 = vmatmul.mubr.bf16.gmra.mxu0 %v1948
      %v2152 = vpop.f32.mrf.mxu0
      %v2153 = vadd.f32 %v1889, %v2152
      %v2154 = vpop.f32.mrf.mxu0
      %v2155 = vpop.f32.mrf.mxu0
      %v2156 = vadd.f32 %v1889, %v2155
      %v2157 = vpop.f32.mrf.mxu0
      %2158 = vmatprep.mubr.bf16.mxu0 0
      %2159 = vmatmul.mubr.bf16.gmra.mxu0 %v1951
      %v2160 = vpop.f32.mrf.mxu0
      %v2161 = vadd.f32 %v1889, %v2160
      %v2162 = vpop.f32.mrf.mxu0
      %v2163 = vpop.f32.mrf.mxu0
      %v2164 = vadd.f32 %v1889, %v2163
      %v2165 = vpop.f32.mrf.mxu0
      %2166 = vmatprep.mubr.bf16.mxu0 0
      %2167 = vmatmul.mubr.bf16.gmra.mxu0 %v1954
      %v2168 = vpop.f32.mrf.mxu0
      %v2169 = vadd.f32 %v1889, %v2168
      %v2170 = vpop.f32.mrf.mxu0
      %v2171 = vpop.f32.mrf.mxu0
      %v2172 = vadd.f32 %v1889, %v2171
      %v2173 = vpop.f32.mrf.mxu0
      %2174 = vmatprep.mubr.bf16.mxu0 0
      %2175 = vmatmul.mubr.bf16.gmra.mxu0 %v1957
      %v2176 = vpop.f32.mrf.mxu0
      %v2177 = vadd.f32 %v1889, %v2176
      %v2178 = vpop.f32.mrf.mxu0
      %v2179 = vpop.f32.mrf.mxu0
      %v2180 = vadd.f32 %v1889, %v2179
      %v2181 = vpop.f32.mrf.mxu0
      %2182 = vmatprep.mubr.bf16.mxu0 0
      %2183 = vmatmul.mubr.bf16.gmra.mxu0 %v1960
      %v2184 = vpop.f32.mrf.mxu0
      %v2185 = vadd.f32 %v1889, %v2184
      %v2186 = vpop.f32.mrf.mxu0
      %v2187 = vpop.f32.mrf.mxu0
      %v2188 = vadd.f32 %v1889, %v2187
      %v2189 = vpop.f32.mrf.mxu0
      %2190 = vmatprep.mubr.bf16.mxu0 0
      %2191 = vmatmul.mubr.bf16.gmra.mxu0 %v1963
      %v2192 = vpop.f32.mrf.mxu0
      %v2193 = vadd.f32 %v1889, %v2192
      %v2194 = vpop.f32.mrf.mxu0
      %v2195 = vpop.f32.mrf.mxu0
      %v2196 = vadd.f32 %v1889, %v2195
      %v2197 = vpop.f32.mrf.mxu0
      %2198 = vmatprep.mubr.bf16.mxu0 0
      %2199 = vmatmul.mubr.bf16.gmra.mxu0 %v1966
      %v2200 = vpop.f32.mrf.mxu0
      %v2201 = vadd.f32 %v1889, %v2200
      %v2202 = vpop.f32.mrf.mxu0
      %v2203 = vpop.f32.mrf.mxu0
      %v2204 = vadd.f32 %v1889, %v2203
      %v2205 = vpop.f32.mrf.mxu0
      %2206 = vmatprep.mubr.bf16.mxu0 0
      %2207 = vmatmul.mubr.bf16.gmra.mxu0 %v1969
      %v2208 = vpop.f32.mrf.mxu0
      %v2209 = vadd.f32 %v1889, %v2208
      %v2210 = vpop.f32.mrf.mxu0
      %v2211 = vpop.f32.mrf.mxu0
      %v2212 = vadd.f32 %v1889, %v2211
      %v2213 = vpop.f32.mrf.mxu0
      %2214 = vmatprep.mubr.bf16.mxu0 0
      %2215 = vmatmul.mubr.bf16.gmra.mxu0 %v1972
      %v2216 = vpop.f32.mrf.mxu0
      %v2217 = vadd.f32 %v1889, %v2216
      %v2218 = vpop.f32.mrf.mxu0
      %v2219 = vpop.f32.mrf.mxu0
      %v2220 = vadd.f32 %v1889, %v2219
      %v2221 = vpop.f32.mrf.mxu0
      %2222 = vmatprep.mubr.bf16.mxu0 0
      %2223 = vmatmul.mubr.bf16.gmra.mxu0 %v1975
      %v2224 = vpop.f32.mrf.mxu0
      %v2225 = vadd.f32 %v1889, %v2224
      %v2226 = vpop.f32.mrf.mxu0
      %v2227 = vpop.f32.mrf.mxu0
      %v2228 = vadd.f32 %v1889, %v2227
      %v2229 = vpop.f32.mrf.mxu0
      %2230 = vmatprep.mubr.bf16.mxu0 0
      %2231 = vmatmul.mubr.bf16.gmra.mxu0 %v1978
      %v2232 = vpop.f32.mrf.mxu0
      %v2233 = vadd.f32 %v1889, %v2232
      %v2234 = vpop.f32.mrf.mxu0
      %v2235 = vpop.f32.mrf.mxu0
      %v2236 = vadd.f32 %v1889, %v2235
      %v2237 = vpop.f32.mrf.mxu0
      %2238 = vmatprep.mubr.bf16.mxu0 0
      %2239 = vmatmul.mubr.bf16.gmra.mxu0 %v1981
      %v2240 = vpop.f32.mrf.mxu0
      %v2241 = vadd.f32 %v1889, %v2240
      %v2242 = vpop.f32.mrf.mxu0
      %v2243 = vpop.f32.mrf.mxu0
      %v2244 = vadd.f32 %v1889, %v2243
      %v2245 = vpop.f32.mrf.mxu0
      %2246 = vmatprep.mubr.bf16.mxu0 0
      %2247 = vmatmul.mubr.bf16.gmra.mxu0 %v1984
      %v2248 = vpop.f32.mrf.mxu0
      %v2249 = vadd.f32 %v1889, %v2248
      %v2250 = vpop.f32.mrf.mxu0
      %v2251 = vpop.f32.mrf.mxu0
      %v2252 = vadd.f32 %v1889, %v2251
      %v2253 = vpop.f32.mrf.mxu0
      %2254 = vmatprep.mubr.bf16.mxu0 0
      %2255 = vmatmul.mubr.bf16.gmra.mxu0 %v1987
      %v2256 = vpop.f32.mrf.mxu0
      %v2257 = vadd.f32 %v1889, %v2256
      %v2258 = vpop.f32.mrf.mxu0
      %v2259 = vpop.f32.mrf.mxu0
      %v2260 = vadd.f32 %v1889, %v2259
      %v2261 = vpop.f32.mrf.mxu0
      %2262 = vmatprep.mubr.bf16.mxu0 0
      %2263 = vmatmul.mubr.bf16.gmra.mxu0 %v1990
      %v2264 = vpop.f32.mrf.mxu0
      %v2265 = vadd.f32 %v1889, %v2264
      %v2266 = vpop.f32.mrf.mxu0
      %v2267 = vpop.f32.mrf.mxu0
      %v2268 = vadd.f32 %v1889, %v2267
      %v2269 = vpop.f32.mrf.mxu0
      %2270 = vmatprep.mubr.bf16.mxu0 0
      %2271 = vmatmul.mubr.bf16.gmra.mxu0 %v1993
      %v2272 = vpop.f32.mrf.mxu0
      %v2273 = vadd.f32 %v1889, %v2272
      %v2274 = vpop.f32.mrf.mxu0
      %v2275 = vpop.f32.mrf.mxu0
      %v2276 = vadd.f32 %v1889, %v2275
      %v2277 = vpop.f32.mrf.mxu0
      %2278 = vmatprep.mubr.bf16.mxu0 0
      %2279 = vmatmul.mubr.bf16.gmra.mxu0 %v1996
      %v2280 = vpop.f32.mrf.mxu0
      %v2281 = vadd.f32 %v1889, %v2280
      %v2282 = vpop.f32.mrf.mxu0
      %v2283 = vpop.f32.mrf.mxu0
      %v2284 = vadd.f32 %v1889, %v2283
      %v2285 = vpop.f32.mrf.mxu0
      %2286 = vdwg.mxu0
      %v2287 = vld [vmem:[%s4] sm:$0xf]
      %v2288 = vld [vmem:[%s4 + $0x4] sm:$0xf]
      %v2289 = vld [vmem:[%s4 + $0x8] sm:$0xf]
      %v2290 = vld [vmem:[%s4 + $0xc] sm:$0xf]
      %v2291 = vlaneseq
      %v2292 = vshrl.u32 %v2291, 7
      %v2293 = vsub.s32 0, %v2292
      %v2294 = vrot.slane %v378, %v2293
      %v2299 = vunpack.c.l.b16 %v2287
      %v2300 = vunpack.c.l.b16 %v2288
      %v2301 = vunpack.c.l.b16 %v2289
      %v2302 = vunpack.c.l.b16 %v2290
      %v2303 = vpack.c.b16 %v2300, %v2299
      %v2304 = vpack.c.b16 %v2302, %v2301
      %2307 = vmatprep.subr.bf16.mxu0 0
      %2308 = vmatpush1.bf16.msra.mxu0 0
      %2309 = vmatprep.subr.bf16.mxu0 0
      %2310 = vmatpush1.bf16.msra.mxu0 0
      %2311 = vmatprep.subr.bf16.mxu0 0
      %2312 = vmatpush1.bf16.msra.mxu0 0
      %2313 = vmatprep.subr.bf16.mxu0 0
      %2314 = vmatpush1.bf16.msra.mxu0 0
      %2315 = vmatprep.subr.bf16.mxu0 0
      %2316 = vmatpush1.bf16.msra.mxu0 0
      %2317 = vmatprep.subr.bf16.mxu0 0
      %2318 = vmatpush1.bf16.msra.mxu0 0
      %2319 = vmatprep.subr.bf16.mxu0 0
      %2320 = vmatpush1.bf16.msra.mxu0 %v2304
      %2321 = vmatprep.subr.bf16.mxu0 0
      %2322 = vmatpush1.bf16.msra.mxu0 %v2303
      %2323 = vmatprep.subr.bf16.mxu0 0
      %2324 = vmatpush2.bf16.msra.mxu0 0
      %2325 = vmatprep.subr.bf16.mxu0 0
      %2326 = vmatpush2.bf16.msra.mxu0 0
      %2327 = vmatprep.subr.bf16.mxu0 0
      %2328 = vmatpush2.bf16.msra.mxu0 0
      %2329 = vmatprep.subr.bf16.mxu0 0
      %2330 = vmatpush2.bf16.msra.mxu0 0
      %2331 = vmatprep.subr.bf16.mxu0 0
      %2332 = vmatpush2.bf16.msra.mxu0 0
      %2333 = vmatprep.subr.bf16.mxu0 0
      %2334 = vmatpush2.bf16.msra.mxu0 0
      %2335 = vmatprep.subr.bf16.mxu0 0
      %2336 = vmatpush2.bf16.msra.mxu0 0
      %2337 = vmatprep.subr.bf16.mxu0 0
      %2338 = vmatpush2.bf16.msra.mxu0 0
      %2339 = vmatprep.mubr.bf16.mxu0 0
      %2340 = vmatmul.mubr.bf16.gmra.mxu0 %v1903
      %v2341 = vpop.f32.mrf.mxu0
      %v2342 = vadd.f32 %v2294, %v2341
      %v2343 = vpop.f32.mrf.mxu0
      %v2344 = vpop.f32.mrf.mxu0
      %v2345 = vadd.f32 %v2294, %v2344
      %v2346 = vpop.f32.mrf.mxu0
      %2347 = vmatprep.mubr.bf16.mxu0 0
      %2348 = vmatmul.mubr.bf16.gmra.mxu0 %v1906
      %v2349 = vpop.f32.mrf.mxu0
      %v2350 = vadd.f32 %v2294, %v2349
      %v2351 = vpop.f32.mrf.mxu0
      %v2352 = vpop.f32.mrf.mxu0
      %v2353 = vadd.f32 %v2294, %v2352
      %v2354 = vpop.f32.mrf.mxu0
      %2355 = vmatprep.mubr.bf16.mxu0 0
      %2356 = vmatmul.mubr.bf16.gmra.mxu0 %v1909
      %v2357 = vpop.f32.mrf.mxu0
      %v2358 = vadd.f32 %v2294, %v2357
      %v2359 = vpop.f32.mrf.mxu0
      %v2360 = vpop.f32.mrf.mxu0
      %v2361 = vadd.f32 %v2294, %v2360
      %v2362 = vpop.f32.mrf.mxu0
      %2363 = vmatprep.mubr.bf16.mxu0 0
      %2364 = vmatmul.mubr.bf16.gmra.mxu0 %v1912
      %v2365 = vpop.f32.mrf.mxu0
      %v2366 = vadd.f32 %v2294, %v2365
      %v2367 = vpop.f32.mrf.mxu0
      %v2368 = vpop.f32.mrf.mxu0
      %v2369 = vadd.f32 %v2294, %v2368
      %v2370 = vpop.f32.mrf.mxu0
      %2371 = vmatprep.mubr.bf16.mxu0 0
      %2372 = vmatmul.mubr.bf16.gmra.mxu0 %v1915
      %v2373 = vpop.f32.mrf.mxu0
      %v2374 = vadd.f32 %v2294, %v2373
      %v2375 = vpop.f32.mrf.mxu0
      %v2376 = vpop.f32.mrf.mxu0
      %v2377 = vadd.f32 %v2294, %v2376
      %v2378 = vpop.f32.mrf.mxu0
      %2379 = vmatprep.mubr.bf16.mxu0 0
      %2380 = vmatmul.mubr.bf16.gmra.mxu0 %v1918
      %v2381 = vpop.f32.mrf.mxu0
      %v2382 = vadd.f32 %v2294, %v2381
      %v2383 = vpop.f32.mrf.mxu0
      %v2384 = vpop.f32.mrf.mxu0
      %v2385 = vadd.f32 %v2294, %v2384
      %v2386 = vpop.f32.mrf.mxu0
      %2387 = vmatprep.mubr.bf16.mxu0 0
      %2388 = vmatmul.mubr.bf16.gmra.mxu0 %v1921
      %v2389 = vpop.f32.mrf.mxu0
      %v2390 = vadd.f32 %v2294, %v2389
      %v2391 = vpop.f32.mrf.mxu0
      %v2392 = vpop.f32.mrf.mxu0
      %v2393 = vadd.f32 %v2294, %v2392
      %v2394 = vpop.f32.mrf.mxu0
      %2395 = vmatprep.mubr.bf16.mxu0 0
      %2396 = vmatmul.mubr.bf16.gmra.mxu0 %v1924
      %v2397 = vpop.f32.mrf.mxu0
      %v2398 = vadd.f32 %v2294, %v2397
      %v2399 = vpop.f32.mrf.mxu0
      %v2400 = vpop.f32.mrf.mxu0
      %v2401 = vadd.f32 %v2294, %v2400
      %v2402 = vpop.f32.mrf.mxu0
      %2403 = vmatprep.mubr.bf16.mxu0 0
      %2404 = vmatmul.mubr.bf16.gmra.mxu0 %v1927
      %v2405 = vpop.f32.mrf.mxu0
      %v2406 = vadd.f32 %v2294, %v2405
      %v2407 = vpop.f32.mrf.mxu0
      %v2408 = vpop.f32.mrf.mxu0
      %v2409 = vadd.f32 %v2294, %v2408
      %v2410 = vpop.f32.mrf.mxu0
      %2411 = vmatprep.mubr.bf16.mxu0 0
      %2412 = vmatmul.mubr.bf16.gmra.mxu0 %v1930
      %v2413 = vpop.f32.mrf.mxu0
      %v2414 = vadd.f32 %v2294, %v2413
      %v2415 = vpop.f32.mrf.mxu0
      %v2416 = vpop.f32.mrf.mxu0
      %v2417 = vadd.f32 %v2294, %v2416
      %v2418 = vpop.f32.mrf.mxu0
      %2419 = vmatprep.mubr.bf16.mxu0 0
      %2420 = vmatmul.mubr.bf16.gmra.mxu0 %v1933
      %v2421 = vpop.f32.mrf.mxu0
      %v2422 = vadd.f32 %v2294, %v2421
      %v2423 = vpop.f32.mrf.mxu0
      %v2424 = vpop.f32.mrf.mxu0
      %v2425 = vadd.f32 %v2294, %v2424
      %v2426 = vpop.f32.mrf.mxu0
      %2427 = vmatprep.mubr.bf16.mxu0 0
      %2428 = vmatmul.mubr.bf16.gmra.mxu0 %v1936
      %v2429 = vpop.f32.mrf.mxu0
      %v2430 = vadd.f32 %v2294, %v2429
      %v2431 = vpop.f32.mrf.mxu0
      %v2432 = vpop.f32.mrf.mxu0
      %v2433 = vadd.f32 %v2294, %v2432
      %v2434 = vpop.f32.mrf.mxu0
      %2435 = vmatprep.mubr.bf16.mxu0 0
      %2436 = vmatmul.mubr.bf16.gmra.mxu0 %v1939
      %v2437 = vpop.f32.mrf.mxu0
      %v2438 = vadd.f32 %v2294, %v2437
      %v2439 = vpop.f32.mrf.mxu0
      %v2440 = vpop.f32.mrf.mxu0
      %v2441 = vadd.f32 %v2294, %v2440
      %v2442 = vpop.f32.mrf.mxu0
      %2443 = vmatprep.mubr.bf16.mxu0 0
      %2444 = vmatmul.mubr.bf16.gmra.mxu0 %v1942
      %v2445 = vpop.f32.mrf.mxu0
      %v2446 = vadd.f32 %v2294, %v2445
      %v2447 = vpop.f32.mrf.mxu0
      %v2448 = vpop.f32.mrf.mxu0
      %v2449 = vadd.f32 %v2294, %v2448
      %v2450 = vpop.f32.mrf.mxu0
      %2451 = vmatprep.mubr.bf16.mxu0 0
      %2452 = vmatmul.mubr.bf16.gmra.mxu0 %v1945
      %v2453 = vpop.f32.mrf.mxu0
      %v2454 = vadd.f32 %v2294, %v2453
      %v2455 = vpop.f32.mrf.mxu0
      %v2456 = vpop.f32.mrf.mxu0
      %v2457 = vadd.f32 %v2294, %v2456
      %v2458 = vpop.f32.mrf.mxu0
      %2459 = vmatprep.mubr.bf16.mxu0 0
      %2460 = vmatmul.mubr.bf16.gmra.mxu0 %v1948
      %v2461 = vpop.f32.mrf.mxu0
      %v2462 = vadd.f32 %v2294, %v2461
      %v2463 = vpop.f32.mrf.mxu0
      %v2464 = vpop.f32.mrf.mxu0
      %v2465 = vadd.f32 %v2294, %v2464
      %v2466 = vpop.f32.mrf.mxu0
      %2467 = vmatprep.mubr.bf16.mxu0 0
      %2468 = vmatmul.mubr.bf16.gmra.mxu0 %v1951
      %v2469 = vpop.f32.mrf.mxu0
      %v2470 = vadd.f32 %v2294, %v2469
      %v2471 = vpop.f32.mrf.mxu0
      %v2472 = vpop.f32.mrf.mxu0
      %v2473 = vadd.f32 %v2294, %v2472
      %v2474 = vpop.f32.mrf.mxu0
      %2475 = vmatprep.mubr.bf16.mxu0 0
      %2476 = vmatmul.mubr.bf16.gmra.mxu0 %v1954
      %v2477 = vpop.f32.mrf.mxu0
      %v2478 = vadd.f32 %v2294, %v2477
      %v2479 = vpop.f32.mrf.mxu0
      %v2480 = vpop.f32.mrf.mxu0
      %v2481 = vadd.f32 %v2294, %v2480
      %v2482 = vpop.f32.mrf.mxu0
      %2483 = vmatprep.mubr.bf16.mxu0 0
      %2484 = vmatmul.mubr.bf16.gmra.mxu0 %v1957
      %v2485 = vpop.f32.mrf.mxu0
      %v2486 = vadd.f32 %v2294, %v2485
      %v2487 = vpop.f32.mrf.mxu0
      %v2488 = vpop.f32.mrf.mxu0
      %v2489 = vadd.f32 %v2294, %v2488
      %v2490 = vpop.f32.mrf.mxu0
      %2491 = vmatprep.mubr.bf16.mxu0 0
      %2492 = vmatmul.mubr.bf16.gmra.mxu0 %v1960
      %v2493 = vpop.f32.mrf.mxu0
      %v2494 = vadd.f32 %v2294, %v2493
      %v2495 = vpop.f32.mrf.mxu0
      %v2496 = vpop.f32.mrf.mxu0
      %v2497 = vadd.f32 %v2294, %v2496
      %v2498 = vpop.f32.mrf.mxu0
      %2499 = vmatprep.mubr.bf16.mxu0 0
      %2500 = vmatmul.mubr.bf16.gmra.mxu0 %v1963
      %v2501 = vpop.f32.mrf.mxu0
      %v2502 = vadd.f32 %v2294, %v2501
      %v2503 = vpop.f32.mrf.mxu0
      %v2504 = vpop.f32.mrf.mxu0
      %v2505 = vadd.f32 %v2294, %v2504
      %v2506 = vpop.f32.mrf.mxu0
      %2507 = vmatprep.mubr.bf16.mxu0 0
      %2508 = vmatmul.mubr.bf16.gmra.mxu0 %v1966
      %v2509 = vpop.f32.mrf.mxu0
      %v2510 = vadd.f32 %v2294, %v2509
      %v2511 = vpop.f32.mrf.mxu0
      %v2512 = vpop.f32.mrf.mxu0
      %v2513 = vadd.f32 %v2294, %v2512
      %v2514 = vpop.f32.mrf.mxu0
      %2515 = vmatprep.mubr.bf16.mxu0 0
      %2516 = vmatmul.mubr.bf16.gmra.mxu0 %v1969
      %v2517 = vpop.f32.mrf.mxu0
      %v2518 = vadd.f32 %v2294, %v2517
      %v2519 = vpop.f32.mrf.mxu0
      %v2520 = vpop.f32.mrf.mxu0
      %v2521 = vadd.f32 %v2294, %v2520
      %v2522 = vpop.f32.mrf.mxu0
      %2523 = vmatprep.mubr.bf16.mxu0 0
      %2524 = vmatmul.mubr.bf16.gmra.mxu0 %v1972
      %v2525 = vpop.f32.mrf.mxu0
      %v2526 = vadd.f32 %v2294, %v2525
      %v2527 = vpop.f32.mrf.mxu0
      %v2528 = vpop.f32.mrf.mxu0
      %v2529 = vadd.f32 %v2294, %v2528
      %v2530 = vpop.f32.mrf.mxu0
      %2531 = vmatprep.mubr.bf16.mxu0 0
      %2532 = vmatmul.mubr.bf16.gmra.mxu0 %v1975
      %v2533 = vpop.f32.mrf.mxu0
      %v2534 = vadd.f32 %v2294, %v2533
      %v2535 = vpop.f32.mrf.mxu0
      %v2536 = vpop.f32.mrf.mxu0
      %v2537 = vadd.f32 %v2294, %v2536
      %v2538 = vpop.f32.mrf.mxu0
      %2539 = vmatprep.mubr.bf16.mxu0 0
      %2540 = vmatmul.mubr.bf16.gmra.mxu0 %v1978
      %v2541 = vpop.f32.mrf.mxu0
      %v2542 = vadd.f32 %v2294, %v2541
      %v2543 = vpop.f32.mrf.mxu0
      %v2544 = vpop.f32.mrf.mxu0
      %v2545 = vadd.f32 %v2294, %v2544
      %v2546 = vpop.f32.mrf.mxu0
      %2547 = vmatprep.mubr.bf16.mxu0 0
      %2548 = vmatmul.mubr.bf16.gmra.mxu0 %v1981
      %v2549 = vpop.f32.mrf.mxu0
      %v2550 = vadd.f32 %v2294, %v2549
      %v2551 = vpop.f32.mrf.mxu0
      %v2552 = vpop.f32.mrf.mxu0
      %v2553 = vadd.f32 %v2294, %v2552
      %v2554 = vpop.f32.mrf.mxu0
      %2555 = vmatprep.mubr.bf16.mxu0 0
      %2556 = vmatmul.mubr.bf16.gmra.mxu0 %v1984
      %v2557 = vpop.f32.mrf.mxu0
      %v2558 = vadd.f32 %v2294, %v2557
      %v2559 = vpop.f32.mrf.mxu0
      %v2560 = vpop.f32.mrf.mxu0
      %v2561 = vadd.f32 %v2294, %v2560
      %v2562 = vpop.f32.mrf.mxu0
      %2563 = vmatprep.mubr.bf16.mxu0 0
      %2564 = vmatmul.mubr.bf16.gmra.mxu0 %v1987
      %v2565 = vpop.f32.mrf.mxu0
      %v2566 = vadd.f32 %v2294, %v2565
      %v2567 = vpop.f32.mrf.mxu0
      %v2568 = vpop.f32.mrf.mxu0
      %v2569 = vadd.f32 %v2294, %v2568
      %v2570 = vpop.f32.mrf.mxu0
      %2571 = vmatprep.mubr.bf16.mxu0 0
      %2572 = vmatmul.mubr.bf16.gmra.mxu0 %v1990
      %v2573 = vpop.f32.mrf.mxu0
      %v2574 = vadd.f32 %v2294, %v2573
      %v2575 = vpop.f32.mrf.mxu0
      %v2576 = vpop.f32.mrf.mxu0
      %v2577 = vadd.f32 %v2294, %v2576
      %v2578 = vpop.f32.mrf.mxu0
      %2579 = vmatprep.mubr.bf16.mxu0 0
      %2580 = vmatmul.mubr.bf16.gmra.mxu0 %v1993
      %v2581 = vpop.f32.mrf.mxu0
      %v2582 = vadd.f32 %v2294, %v2581
      %v2583 = vpop.f32.mrf.mxu0
      %v2584 = vpop.f32.mrf.mxu0
      %v2585 = vadd.f32 %v2294, %v2584
      %v2586 = vpop.f32.mrf.mxu0
      %2587 = vmatprep.mubr.bf16.mxu0 0
      %2588 = vmatmul.mubr.bf16.gmra.mxu0 %v1996
      %v2589 = vpop.f32.mrf.mxu0
      %v2590 = vadd.f32 %v2294, %v2589
      %v2591 = vpop.f32.mrf.mxu0
      %v2592 = vpop.f32.mrf.mxu0
      %v2593 = vadd.f32 %v2294, %v2592
      %v2594 = vpop.f32.mrf.mxu0
      %2595 = vdwg.mxu0
      %v2628 = vunpack.c.l.b16 %v1349
      %v2629 = vunpack.c.h.b16 %v1349
      %v2630 = vunpack.c.l.b16 %v1350
      %v2631 = vunpack.c.h.b16 %v1350
      %v2632 = vunpack.c.l.b16 %v1351
      %v2633 = vunpack.c.h.b16 %v1351
      %v2634 = vunpack.c.l.b16 %v1352
      %v2635 = vunpack.c.h.b16 %v1352
      %v2636 = vunpack.c.l.b16 %v1353
      %v2637 = vunpack.c.h.b16 %v1353
      %v2638 = vunpack.c.l.b16 %v1354
      %v2639 = vunpack.c.h.b16 %v1354
      %v2640 = vunpack.c.l.b16 %v1355
      %v2641 = vunpack.c.h.b16 %v1355
      %v2642 = vunpack.c.l.b16 %v1356
      %v2643 = vunpack.c.h.b16 %v1356
      %v2644 = vunpack.c.l.b16 %v1357
      %v2645 = vunpack.c.h.b16 %v1357
      %v2646 = vunpack.c.l.b16 %v1358
      %v2647 = vunpack.c.h.b16 %v1358
      %v2648 = vunpack.c.l.b16 %v1359
      %v2649 = vunpack.c.h.b16 %v1359
      %v2650 = vunpack.c.l.b16 %v1360
      %v2651 = vunpack.c.h.b16 %v1360
      %v2652 = vunpack.c.l.b16 %v1361
      %v2653 = vunpack.c.h.b16 %v1361
      %v2654 = vunpack.c.l.b16 %v1362
      %v2655 = vunpack.c.h.b16 %v1362
      %v2656 = vunpack.c.l.b16 %v1363
      %v2657 = vunpack.c.h.b16 %v1363
      %v2658 = vunpack.c.l.b16 %v1364
      %v2659 = vunpack.c.h.b16 %v1364
      %v2660 = vunpack.c.l.b16 %v1365
      %v2661 = vunpack.c.h.b16 %v1365
      %v2662 = vunpack.c.l.b16 %v1366
      %v2663 = vunpack.c.h.b16 %v1366
      %v2664 = vunpack.c.l.b16 %v1367
      %v2665 = vunpack.c.h.b16 %v1367
      %v2666 = vunpack.c.l.b16 %v1368
      %v2667 = vunpack.c.h.b16 %v1368
      %v2668 = vunpack.c.l.b16 %v1369
      %v2669 = vunpack.c.h.b16 %v1369
      %v2670 = vunpack.c.l.b16 %v1370
      %v2671 = vunpack.c.h.b16 %v1370
      %v2672 = vunpack.c.l.b16 %v1371
      %v2673 = vunpack.c.h.b16 %v1371
      %v2674 = vunpack.c.l.b16 %v1372
      %v2675 = vunpack.c.h.b16 %v1372
      %v2676 = vunpack.c.l.b16 %v1373
      %v2677 = vunpack.c.h.b16 %v1373
      %v2678 = vunpack.c.l.b16 %v1374
      %v2679 = vunpack.c.h.b16 %v1374
      %v2680 = vunpack.c.l.b16 %v1375
      %v2681 = vunpack.c.h.b16 %v1375
      %v2682 = vunpack.c.l.b16 %v1376
      %v2683 = vunpack.c.h.b16 %v1376
      %v2684 = vunpack.c.l.b16 %v1377
      %v2685 = vunpack.c.h.b16 %v1377
      %v2686 = vunpack.c.l.b16 %v1378
      %v2687 = vunpack.c.h.b16 %v1378
      %v2688 = vunpack.c.l.b16 %v1379
      %v2689 = vunpack.c.h.b16 %v1379
      %v2690 = vunpack.c.l.b16 %v1380
      %v2691 = vunpack.c.h.b16 %v1380
      %v2692 = vpack.c.b16 %v2628, %v2628
      %v2693 = vpack.c.b16 %v2629, %v2629
      %v2694 = vpack.c.b16 %v2630, %v2630
      %v2695 = vpack.c.b16 %v2631, %v2631
      %v2696 = vpack.c.b16 %v2632, %v2632
      %v2697 = vpack.c.b16 %v2633, %v2633
      %v2698 = vpack.c.b16 %v2634, %v2634
      %v2699 = vpack.c.b16 %v2635, %v2635
      %v2700 = vpack.c.b16 %v2636, %v2636
      %v2701 = vpack.c.b16 %v2637, %v2637
      %v2702 = vpack.c.b16 %v2638, %v2638
      %v2703 = vpack.c.b16 %v2639, %v2639
      %v2704 = vpack.c.b16 %v2640, %v2640
      %v2705 = vpack.c.b16 %v2641, %v2641
      %v2706 = vpack.c.b16 %v2642, %v2642
      %v2707 = vpack.c.b16 %v2643, %v2643
      %v2708 = vpack.c.b16 %v2644, %v2644
      %v2709 = vpack.c.b16 %v2645, %v2645
      %v2710 = vpack.c.b16 %v2646, %v2646
      %v2711 = vpack.c.b16 %v2647, %v2647
      %v2712 = vpack.c.b16 %v2648, %v2648
      %v2713 = vpack.c.b16 %v2649, %v2649
      %v2714 = vpack.c.b16 %v2650, %v2650
      %v2715 = vpack.c.b16 %v2651, %v2651
      %v2716 = vpack.c.b16 %v2652, %v2652
      %v2717 = vpack.c.b16 %v2653, %v2653
      %v2718 = vpack.c.b16 %v2654, %v2654
      %v2719 = vpack.c.b16 %v2655, %v2655
      %v2720 = vpack.c.b16 %v2656, %v2656
      %v2721 = vpack.c.b16 %v2657, %v2657
      %v2722 = vpack.c.b16 %v2658, %v2658
      %v2723 = vpack.c.b16 %v2659, %v2659
      %v2724 = vpack.c.b16 %v2660, %v2660
      %v2725 = vpack.c.b16 %v2661, %v2661
      %v2726 = vpack.c.b16 %v2662, %v2662
      %v2727 = vpack.c.b16 %v2663, %v2663
      %v2728 = vpack.c.b16 %v2664, %v2664
      %v2729 = vpack.c.b16 %v2665, %v2665
      %v2730 = vpack.c.b16 %v2666, %v2666
      %v2731 = vpack.c.b16 %v2667, %v2667
      %v2732 = vpack.c.b16 %v2668, %v2668
      %v2733 = vpack.c.b16 %v2669, %v2669
      %v2734 = vpack.c.b16 %v2670, %v2670
      %v2735 = vpack.c.b16 %v2671, %v2671
      %v2736 = vpack.c.b16 %v2672, %v2672
      %v2737 = vpack.c.b16 %v2673, %v2673
      %v2738 = vpack.c.b16 %v2674, %v2674
      %v2739 = vpack.c.b16 %v2675, %v2675
      %v2740 = vpack.c.b16 %v2676, %v2676
      %v2741 = vpack.c.b16 %v2677, %v2677
      %v2742 = vpack.c.b16 %v2678, %v2678
      %v2743 = vpack.c.b16 %v2679, %v2679
      %v2744 = vpack.c.b16 %v2680, %v2680
      %v2745 = vpack.c.b16 %v2681, %v2681
      %v2746 = vpack.c.b16 %v2682, %v2682
      %v2747 = vpack.c.b16 %v2683, %v2683
      %v2748 = vpack.c.b16 %v2684, %v2684
      %v2749 = vpack.c.b16 %v2685, %v2685
      %v2750 = vpack.c.b16 %v2686, %v2686
      %v2751 = vpack.c.b16 %v2687, %v2687
      %v2752 = vpack.c.b16 %v2688, %v2688
      %v2753 = vpack.c.b16 %v2689, %v2689
      %v2754 = vpack.c.b16 %v2690, %v2690
      %v2755 = vpack.c.b16 %v2691, %v2691
      %vm2820 = vcmask 257024
      %2821 = vst.msk [vmem:[%s295] sm:$0xf] %vm2820, %v2692
      %2822 = vst.msk [vmem:[%s295 + $0x4] sm:$0xf] %vm2820, %v2693
      %2823 = vst.msk [vmem:[%s295 + $0x8] sm:$0xf] %vm2820, %v2694
      %2824 = vst.msk [vmem:[%s295 + $0xc] sm:$0xf] %vm2820, %v2695
      %2825 = vst.msk [vmem:[%s295 + $0x10] sm:$0xf] %vm2820, %v2696
      %2826 = vst.msk [vmem:[%s295 + $0x14] sm:$0xf] %vm2820, %v2697
      %2827 = vst.msk [vmem:[%s295 + $0x18] sm:$0xf] %vm2820, %v2698
      %2828 = vst.msk [vmem:[%s295 + $0x1c] sm:$0xf] %vm2820, %v2699
      %2829 = vst.msk [vmem:[%s295 + $0x20] sm:$0xf] %vm2820, %v2700
      %2830 = vst.msk [vmem:[%s295 + $0x24] sm:$0xf] %vm2820, %v2701
      %2831 = vst.msk [vmem:[%s295 + $0x28] sm:$0xf] %vm2820, %v2702
      %2832 = vst.msk [vmem:[%s295 + $0x2c] sm:$0xf] %vm2820, %v2703
      %2833 = vst.msk [vmem:[%s295 + $0x30] sm:$0xf] %vm2820, %v2704
      %2834 = vst.msk [vmem:[%s295 + $0x34] sm:$0xf] %vm2820, %v2705
      %2835 = vst.msk [vmem:[%s295 + $0x38] sm:$0xf] %vm2820, %v2706
      %2836 = vst.msk [vmem:[%s295 + $0x3c] sm:$0xf] %vm2820, %v2707
      %2837 = vst.msk [vmem:[%s295 + $0x40] sm:$0xf] %vm2820, %v2708
      %2838 = vst.msk [vmem:[%s295 + $0x44] sm:$0xf] %vm2820, %v2709
      %2839 = vst.msk [vmem:[%s295 + $0x48] sm:$0xf] %vm2820, %v2710
      %2840 = vst.msk [vmem:[%s295 + $0x4c] sm:$0xf] %vm2820, %v2711
      %2841 = vst.msk [vmem:[%s295 + $0x50] sm:$0xf] %vm2820, %v2712
      %2842 = vst.msk [vmem:[%s295 + $0x54] sm:$0xf] %vm2820, %v2713
      %2843 = vst.msk [vmem:[%s295 + $0x58] sm:$0xf] %vm2820, %v2714
      %2844 = vst.msk [vmem:[%s295 + $0x5c] sm:$0xf] %vm2820, %v2715
      %2845 = vst.msk [vmem:[%s295 + $0x60] sm:$0xf] %vm2820, %v2716
      %2846 = vst.msk [vmem:[%s295 + $0x64] sm:$0xf] %vm2820, %v2717
      %2847 = vst.msk [vmem:[%s295 + $0x68] sm:$0xf] %vm2820, %v2718
      %2848 = vst.msk [vmem:[%s295 + $0x6c] sm:$0xf] %vm2820, %v2719
      %2849 = vst.msk [vmem:[%s295 + $0x70] sm:$0xf] %vm2820, %v2720
      %2850 = vst.msk [vmem:[%s295 + $0x74] sm:$0xf] %vm2820, %v2721
      %2851 = vst.msk [vmem:[%s295 + $0x78] sm:$0xf] %vm2820, %v2722
      %2852 = vst.msk [vmem:[%s295 + $0x7c] sm:$0xf] %vm2820, %v2723
      %2853 = vst.msk [vmem:[%s295 + $0x80] sm:$0xf] %vm2820, %v2724
      %2854 = vst.msk [vmem:[%s295 + $0x84] sm:$0xf] %vm2820, %v2725
      %2855 = vst.msk [vmem:[%s295 + $0x88] sm:$0xf] %vm2820, %v2726
      %2856 = vst.msk [vmem:[%s295 + $0x8c] sm:$0xf] %vm2820, %v2727
      %2857 = vst.msk [vmem:[%s295 + $0x90] sm:$0xf] %vm2820, %v2728
      %2858 = vst.msk [vmem:[%s295 + $0x94] sm:$0xf] %vm2820, %v2729
      %2859 = vst.msk [vmem:[%s295 + $0x98] sm:$0xf] %vm2820, %v2730
      %2860 = vst.msk [vmem:[%s295 + $0x9c] sm:$0xf] %vm2820, %v2731
      %2861 = vst.msk [vmem:[%s295 + $0xa0] sm:$0xf] %vm2820, %v2732
      %2862 = vst.msk [vmem:[%s295 + $0xa4] sm:$0xf] %vm2820, %v2733
      %2863 = vst.msk [vmem:[%s295 + $0xa8] sm:$0xf] %vm2820, %v2734
      %2864 = vst.msk [vmem:[%s295 + $0xac] sm:$0xf] %vm2820, %v2735
      %2865 = vst.msk [vmem:[%s295 + $0xb0] sm:$0xf] %vm2820, %v2736
      %2866 = vst.msk [vmem:[%s295 + $0xb4] sm:$0xf] %vm2820, %v2737
      %2867 = vst.msk [vmem:[%s295 + $0xb8] sm:$0xf] %vm2820, %v2738
      %2868 = vst.msk [vmem:[%s295 + $0xbc] sm:$0xf] %vm2820, %v2739
      %2869 = vst.msk [vmem:[%s295 + $0xc0] sm:$0xf] %vm2820, %v2740
      %2870 = vst.msk [vmem:[%s295 + $0xc4] sm:$0xf] %vm2820, %v2741
      %2871 = vst.msk [vmem:[%s295 + $0xc8] sm:$0xf] %vm2820, %v2742
      %2872 = vst.msk [vmem:[%s295 + $0xcc] sm:$0xf] %vm2820, %v2743
      %2873 = vst.msk [vmem:[%s295 + $0xd0] sm:$0xf] %vm2820, %v2744
      %2874 = vst.msk [vmem:[%s295 + $0xd4] sm:$0xf] %vm2820, %v2745
      %2875 = vst.msk [vmem:[%s295 + $0xd8] sm:$0xf] %vm2820, %v2746
      %2876 = vst.msk [vmem:[%s295 + $0xdc] sm:$0xf] %vm2820, %v2747
      %2877 = vst.msk [vmem:[%s295 + $0xe0] sm:$0xf] %vm2820, %v2748
      %2878 = vst.msk [vmem:[%s295 + $0xe4] sm:$0xf] %vm2820, %v2749
      %2879 = vst.msk [vmem:[%s295 + $0xe8] sm:$0xf] %vm2820, %v2750
      %2880 = vst.msk [vmem:[%s295 + $0xec] sm:$0xf] %vm2820, %v2751
      %2881 = vst.msk [vmem:[%s295 + $0xf0] sm:$0xf] %vm2820, %v2752
      %2882 = vst.msk [vmem:[%s295 + $0xf4] sm:$0xf] %vm2820, %v2753
      %2883 = vst.msk [vmem:[%s295 + $0xf8] sm:$0xf] %vm2820, %v2754
      %2884 = vst.msk [vmem:[%s295 + $0xfc] sm:$0xf] %vm2820, %v2755
      %v2885 = vpack.c.bf16 %v2036, %v2033
      %v2886 = vpack.c.bf16 %v2044, %v2041
      %v2887 = vpack.c.bf16 %v2052, %v2049
      %v2888 = vpack.c.bf16 %v2060, %v2057
      %v2889 = vpack.c.bf16 %v2068, %v2065
      %v2890 = vpack.c.bf16 %v2076, %v2073
      %v2891 = vpack.c.bf16 %v2084, %v2081
      %v2892 = vpack.c.bf16 %v2092, %v2089
      %v2893 = vpack.c.bf16 %v2100, %v2097
      %v2894 = vpack.c.bf16 %v2108, %v2105
      %v2895 = vpack.c.bf16 %v2116, %v2113
      %v2896 = vpack.c.bf16 %v2124, %v2121
      %v2897 = vpack.c.bf16 %v2132, %v2129
      %v2898 = vpack.c.bf16 %v2140, %v2137
      %v2899 = vpack.c.bf16 %v2148, %v2145
      %v2900 = vpack.c.bf16 %v2156, %v2153
      %v2901 = vpack.c.bf16 %v2164, %v2161
      %v2902 = vpack.c.bf16 %v2172, %v2169
      %v2903 = vpack.c.bf16 %v2180, %v2177
      %v2904 = vpack.c.bf16 %v2188, %v2185
      %v2905 = vpack.c.bf16 %v2196, %v2193
      %v2906 = vpack.c.bf16 %v2204, %v2201
      %v2907 = vpack.c.bf16 %v2212, %v2209
      %v2908 = vpack.c.bf16 %v2220, %v2217
      %v2909 = vpack.c.bf16 %v2228, %v2225
      %v2910 = vpack.c.bf16 %v2236, %v2233
      %v2911 = vpack.c.bf16 %v2244, %v2241
      %v2912 = vpack.c.bf16 %v2252, %v2249
      %v2913 = vpack.c.bf16 %v2260, %v2257
      %v2914 = vpack.c.bf16 %v2268, %v2265
      %v2915 = vpack.c.bf16 %v2276, %v2273
      %v2916 = vpack.c.bf16 %v2284, %v2281
      %v2949 = vunpack.c.l.b16 %v2885
      %v2950 = vunpack.c.h.b16 %v2885
      %v2951 = vunpack.c.l.b16 %v2886
      %v2952 = vunpack.c.h.b16 %v2886
      %v2953 = vunpack.c.l.b16 %v2887
      %v2954 = vunpack.c.h.b16 %v2887
      %v2955 = vunpack.c.l.b16 %v2888
      %v2956 = vunpack.c.h.b16 %v2888
      %v2957 = vunpack.c.l.b16 %v2889
      %v2958 = vunpack.c.h.b16 %v2889
      %v2959 = vunpack.c.l.b16 %v2890
      %v2960 = vunpack.c.h.b16 %v2890
      %v2961 = vunpack.c.l.b16 %v2891
      %v2962 = vunpack.c.h.b16 %v2891
      %v2963 = vunpack.c.l.b16 %v2892
      %v2964 = vunpack.c.h.b16 %v2892
      %v2965 = vunpack.c.l.b16 %v2893
      %v2966 = vunpack.c.h.b16 %v2893
      %v2967 = vunpack.c.l.b16 %v2894
      %v2968 = vunpack.c.h.b16 %v2894
      %v2969 = vunpack.c.l.b16 %v2895
      %v2970 = vunpack.c.h.b16 %v2895
      %v2971 = vunpack.c.l.b16 %v2896
      %v2972 = vunpack.c.h.b16 %v2896
      %v2973 = vunpack.c.l.b16 %v2897
      %v2974 = vunpack.c.h.b16 %v2897
      %v2975 = vunpack.c.l.b16 %v2898
      %v2976 = vunpack.c.h.b16 %v2898
      %v2977 = vunpack.c.l.b16 %v2899
      %v2978 = vunpack.c.h.b16 %v2899
      %v2979 = vunpack.c.l.b16 %v2900
      %v2980 = vunpack.c.h.b16 %v2900
      %v2981 = vunpack.c.l.b16 %v2901
      %v2982 = vunpack.c.h.b16 %v2901
      %v2983 = vunpack.c.l.b16 %v2902
      %v2984 = vunpack.c.h.b16 %v2902
      %v2985 = vunpack.c.l.b16 %v2903
      %v2986 = vunpack.c.h.b16 %v2903
      %v2987 = vunpack.c.l.b16 %v2904
      %v2988 = vunpack.c.h.b16 %v2904
      %v2989 = vunpack.c.l.b16 %v2905
      %v2990 = vunpack.c.h.b16 %v2905
      %v2991 = vunpack.c.l.b16 %v2906
      %v2992 = vunpack.c.h.b16 %v2906
      %v2993 = vunpack.c.l.b16 %v2907
      %v2994 = vunpack.c.h.b16 %v2907
      %v2995 = vunpack.c.l.b16 %v2908
      %v2996 = vunpack.c.h.b16 %v2908
      %v2997 = vunpack.c.l.b16 %v2909
      %v2998 = vunpack.c.h.b16 %v2909
      %v2999 = vunpack.c.l.b16 %v2910
      %v3000 = vunpack.c.h.b16 %v2910
      %v3001 = vunpack.c.l.b16 %v2911
      %v3002 = vunpack.c.h.b16 %v2911
      %v3003 = vunpack.c.l.b16 %v2912
      %v3004 = vunpack.c.h.b16 %v2912
      %v3005 = vunpack.c.l.b16 %v2913
      %v3006 = vunpack.c.h.b16 %v2913
      %v3007 = vunpack.c.l.b16 %v2914
      %v3008 = vunpack.c.h.b16 %v2914
      %v3009 = vunpack.c.l.b16 %v2915
      %v3010 = vunpack.c.h.b16 %v2915
      %v3011 = vunpack.c.l.b16 %v2916
      %v3012 = vunpack.c.h.b16 %v2916
      %v3013 = vpack.c.b16 %v2949, %v2949
      %v3014 = vpack.c.b16 %v2950, %v2950
      %v3015 = vpack.c.b16 %v2951, %v2951
      %v3016 = vpack.c.b16 %v2952, %v2952
      %v3017 = vpack.c.b16 %v2953, %v2953
      %v3018 = vpack.c.b16 %v2954, %v2954
      %v3019 = vpack.c.b16 %v2955, %v2955
      %v3020 = vpack.c.b16 %v2956, %v2956
      %v3021 = vpack.c.b16 %v2957, %v2957
      %v3022 = vpack.c.b16 %v2958, %v2958
      %v3023 = vpack.c.b16 %v2959, %v2959
      %v3024 = vpack.c.b16 %v2960, %v2960
      %v3025 = vpack.c.b16 %v2961, %v2961
      %v3026 = vpack.c.b16 %v2962, %v2962
      %v3027 = vpack.c.b16 %v2963, %v2963
      %v3028 = vpack.c.b16 %v2964, %v2964
      %v3029 = vpack.c.b16 %v2965, %v2965
      %v3030 = vpack.c.b16 %v2966, %v2966
      %v3031 = vpack.c.b16 %v2967, %v2967
      %v3032 = vpack.c.b16 %v2968, %v2968
      %v3033 = vpack.c.b16 %v2969, %v2969
      %v3034 = vpack.c.b16 %v2970, %v2970
      %v3035 = vpack.c.b16 %v2971, %v2971
      %v3036 = vpack.c.b16 %v2972, %v2972
      %v3037 = vpack.c.b16 %v2973, %v2973
      %v3038 = vpack.c.b16 %v2974, %v2974
      %v3039 = vpack.c.b16 %v2975, %v2975
      %v3040 = vpack.c.b16 %v2976, %v2976
      %v3041 = vpack.c.b16 %v2977, %v2977
      %v3042 = vpack.c.b16 %v2978, %v2978
      %v3043 = vpack.c.b16 %v2979, %v2979
      %v3044 = vpack.c.b16 %v2980, %v2980
      %v3045 = vpack.c.b16 %v2981, %v2981
      %v3046 = vpack.c.b16 %v2982, %v2982
      %v3047 = vpack.c.b16 %v2983, %v2983
      %v3048 = vpack.c.b16 %v2984, %v2984
      %v3049 = vpack.c.b16 %v2985, %v2985
      %v3050 = vpack.c.b16 %v2986, %v2986
      %v3051 = vpack.c.b16 %v2987, %v2987
      %v3052 = vpack.c.b16 %v2988, %v2988
      %v3053 = vpack.c.b16 %v2989, %v2989
      %v3054 = vpack.c.b16 %v2990, %v2990
      %v3055 = vpack.c.b16 %v2991, %v2991
      %v3056 = vpack.c.b16 %v2992, %v2992
      %v3057 = vpack.c.b16 %v2993, %v2993
      %v3058 = vpack.c.b16 %v2994, %v2994
      %v3059 = vpack.c.b16 %v2995, %v2995
      %v3060 = vpack.c.b16 %v2996, %v2996
      %v3061 = vpack.c.b16 %v2997, %v2997
      %v3062 = vpack.c.b16 %v2998, %v2998
      %v3063 = vpack.c.b16 %v2999, %v2999
      %v3064 = vpack.c.b16 %v3000, %v3000
      %v3065 = vpack.c.b16 %v3001, %v3001
      %v3066 = vpack.c.b16 %v3002, %v3002
      %v3067 = vpack.c.b16 %v3003, %v3003
      %v3068 = vpack.c.b16 %v3004, %v3004
      %v3069 = vpack.c.b16 %v3005, %v3005
      %v3070 = vpack.c.b16 %v3006, %v3006
      %v3071 = vpack.c.b16 %v3007, %v3007
      %v3072 = vpack.c.b16 %v3008, %v3008
      %v3073 = vpack.c.b16 %v3009, %v3009
      %v3074 = vpack.c.b16 %v3010, %v3010
      %v3075 = vpack.c.b16 %v3011, %v3011
      %v3076 = vpack.c.b16 %v3012, %v3012
      %3141 = vst.msk [vmem:[%s301] sm:$0xf] %vm2820, %v3013
      %3142 = vst.msk [vmem:[%s301 + $0x4] sm:$0xf] %vm2820, %v3014
      %3143 = vst.msk [vmem:[%s301 + $0x8] sm:$0xf] %vm2820, %v3015
      %3144 = vst.msk [vmem:[%s301 + $0xc] sm:$0xf] %vm2820, %v3016
      %3145 = vst.msk [vmem:[%s301 + $0x10] sm:$0xf] %vm2820, %v3017
      %3146 = vst.msk [vmem:[%s301 + $0x14] sm:$0xf] %vm2820, %v3018
      %3147 = vst.msk [vmem:[%s301 + $0x18] sm:$0xf] %vm2820, %v3019
      %3148 = vst.msk [vmem:[%s301 + $0x1c] sm:$0xf] %vm2820, %v3020
      %3149 = vst.msk [vmem:[%s301 + $0x20] sm:$0xf] %vm2820, %v3021
      %3150 = vst.msk [vmem:[%s301 + $0x24] sm:$0xf] %vm2820, %v3022
      %3151 = vst.msk [vmem:[%s301 + $0x28] sm:$0xf] %vm2820, %v3023
      %3152 = vst.msk [vmem:[%s301 + $0x2c] sm:$0xf] %vm2820, %v3024
      %3153 = vst.msk [vmem:[%s301 + $0x30] sm:$0xf] %vm2820, %v3025
      %3154 = vst.msk [vmem:[%s301 + $0x34] sm:$0xf] %vm2820, %v3026
      %3155 = vst.msk [vmem:[%s301 + $0x38] sm:$0xf] %vm2820, %v3027
      %3156 = vst.msk [vmem:[%s301 + $0x3c] sm:$0xf] %vm2820, %v3028
      %3157 = vst.msk [vmem:[%s301 + $0x40] sm:$0xf] %vm2820, %v3029
      %3158 = vst.msk [vmem:[%s301 + $0x44] sm:$0xf] %vm2820, %v3030
      %3159 = vst.msk [vmem:[%s301 + $0x48] sm:$0xf] %vm2820, %v3031
      %3160 = vst.msk [vmem:[%s301 + $0x4c] sm:$0xf] %vm2820, %v3032
      %3161 = vst.msk [vmem:[%s301 + $0x50] sm:$0xf] %vm2820, %v3033
      %3162 = vst.msk [vmem:[%s301 + $0x54] sm:$0xf] %vm2820, %v3034
      %3163 = vst.msk [vmem:[%s301 + $0x58] sm:$0xf] %vm2820, %v3035
      %3164 = vst.msk [vmem:[%s301 + $0x5c] sm:$0xf] %vm2820, %v3036
      %3165 = vst.msk [vmem:[%s301 + $0x60] sm:$0xf] %vm2820, %v3037
      %3166 = vst.msk [vmem:[%s301 + $0x64] sm:$0xf] %vm2820, %v3038
      %3167 = vst.msk [vmem:[%s301 + $0x68] sm:$0xf] %vm2820, %v3039
      %3168 = vst.msk [vmem:[%s301 + $0x6c] sm:$0xf] %vm2820, %v3040
      %3169 = vst.msk [vmem:[%s301 + $0x70] sm:$0xf] %vm2820, %v3041
      %3170 = vst.msk [vmem:[%s301 + $0x74] sm:$0xf] %vm2820, %v3042
      %3171 = vst.msk [vmem:[%s301 + $0x78] sm:$0xf] %vm2820, %v3043
      %3172 = vst.msk [vmem:[%s301 + $0x7c] sm:$0xf] %vm2820, %v3044
      %3173 = vst.msk [vmem:[%s301 + $0x80] sm:$0xf] %vm2820, %v3045
      %3174 = vst.msk [vmem:[%s301 + $0x84] sm:$0xf] %vm2820, %v3046
      %3175 = vst.msk [vmem:[%s301 + $0x88] sm:$0xf] %vm2820, %v3047
      %3176 = vst.msk [vmem:[%s301 + $0x8c] sm:$0xf] %vm2820, %v3048
      %3177 = vst.msk [vmem:[%s301 + $0x90] sm:$0xf] %vm2820, %v3049
      %3178 = vst.msk [vmem:[%s301 + $0x94] sm:$0xf] %vm2820, %v3050
      %3179 = vst.msk [vmem:[%s301 + $0x98] sm:$0xf] %vm2820, %v3051
      %3180 = vst.msk [vmem:[%s301 + $0x9c] sm:$0xf] %vm2820, %v3052
      %3181 = vst.msk [vmem:[%s301 + $0xa0] sm:$0xf] %vm2820, %v3053
      %3182 = vst.msk [vmem:[%s301 + $0xa4] sm:$0xf] %vm2820, %v3054
      %3183 = vst.msk [vmem:[%s301 + $0xa8] sm:$0xf] %vm2820, %v3055
      %3184 = vst.msk [vmem:[%s301 + $0xac] sm:$0xf] %vm2820, %v3056
      %3185 = vst.msk [vmem:[%s301 + $0xb0] sm:$0xf] %vm2820, %v3057
      %3186 = vst.msk [vmem:[%s301 + $0xb4] sm:$0xf] %vm2820, %v3058
      %3187 = vst.msk [vmem:[%s301 + $0xb8] sm:$0xf] %vm2820, %v3059
      %3188 = vst.msk [vmem:[%s301 + $0xbc] sm:$0xf] %vm2820, %v3060
      %3189 = vst.msk [vmem:[%s301 + $0xc0] sm:$0xf] %vm2820, %v3061
      %3190 = vst.msk [vmem:[%s301 + $0xc4] sm:$0xf] %vm2820, %v3062
      %3191 = vst.msk [vmem:[%s301 + $0xc8] sm:$0xf] %vm2820, %v3063
      %3192 = vst.msk [vmem:[%s301 + $0xcc] sm:$0xf] %vm2820, %v3064
      %3193 = vst.msk [vmem:[%s301 + $0xd0] sm:$0xf] %vm2820, %v3065
      %3194 = vst.msk [vmem:[%s301 + $0xd4] sm:$0xf] %vm2820, %v3066
      %3195 = vst.msk [vmem:[%s301 + $0xd8] sm:$0xf] %vm2820, %v3067
      %3196 = vst.msk [vmem:[%s301 + $0xdc] sm:$0xf] %vm2820, %v3068
      %3197 = vst.msk [vmem:[%s301 + $0xe0] sm:$0xf] %vm2820, %v3069
      %3198 = vst.msk [vmem:[%s301 + $0xe4] sm:$0xf] %vm2820, %v3070
      %3199 = vst.msk [vmem:[%s301 + $0xe8] sm:$0xf] %vm2820, %v3071
      %3200 = vst.msk [vmem:[%s301 + $0xec] sm:$0xf] %vm2820, %v3072
      %3201 = vst.msk [vmem:[%s301 + $0xf0] sm:$0xf] %vm2820, %v3073
      %3202 = vst.msk [vmem:[%s301 + $0xf4] sm:$0xf] %vm2820, %v3074
      %3203 = vst.msk [vmem:[%s301 + $0xf8] sm:$0xf] %vm2820, %v3075
      %3204 = vst.msk [vmem:[%s301 + $0xfc] sm:$0xf] %vm2820, %v3076
      %v3205 = vpack.c.bf16 %v2345, %v2342
      %v3206 = vpack.c.bf16 %v2353, %v2350
      %v3207 = vpack.c.bf16 %v2361, %v2358
      %v3208 = vpack.c.bf16 %v2369, %v2366
      %v3209 = vpack.c.bf16 %v2377, %v2374
      %v3210 = vpack.c.bf16 %v2385, %v2382
      %v3211 = vpack.c.bf16 %v2393, %v2390
      %v3212 = vpack.c.bf16 %v2401, %v2398
      %v3213 = vpack.c.bf16 %v2409, %v2406
      %v3214 = vpack.c.bf16 %v2417, %v2414
      %v3215 = vpack.c.bf16 %v2425, %v2422
      %v3216 = vpack.c.bf16 %v2433, %v2430
      %v3217 = vpack.c.bf16 %v2441, %v2438
      %v3218 = vpack.c.bf16 %v2449, %v2446
      %v3219 = vpack.c.bf16 %v2457, %v2454
      %v3220 = vpack.c.bf16 %v2465, %v2462
      %v3221 = vpack.c.bf16 %v2473, %v2470
      %v3222 = vpack.c.bf16 %v2481, %v2478
      %v3223 = vpack.c.bf16 %v2489, %v2486
      %v3224 = vpack.c.bf16 %v2497, %v2494
      %v3225 = vpack.c.bf16 %v2505, %v2502
      %v3226 = vpack.c.bf16 %v2513, %v2510
      %v3227 = vpack.c.bf16 %v2521, %v2518
      %v3228 = vpack.c.bf16 %v2529, %v2526
      %v3229 = vpack.c.bf16 %v2537, %v2534
      %v3230 = vpack.c.bf16 %v2545, %v2542
      %v3231 = vpack.c.bf16 %v2553, %v2550
      %v3232 = vpack.c.bf16 %v2561, %v2558
      %v3233 = vpack.c.bf16 %v2569, %v2566
      %v3234 = vpack.c.bf16 %v2577, %v2574
      %v3235 = vpack.c.bf16 %v2585, %v2582
      %v3236 = vpack.c.bf16 %v2593, %v2590
      %v3269 = vunpack.c.l.b16 %v3205
      %v3270 = vunpack.c.h.b16 %v3205
      %v3271 = vunpack.c.l.b16 %v3206
      %v3272 = vunpack.c.h.b16 %v3206
      %v3273 = vunpack.c.l.b16 %v3207
      %v3274 = vunpack.c.h.b16 %v3207
      %v3275 = vunpack.c.l.b16 %v3208
      %v3276 = vunpack.c.h.b16 %v3208
      %v3277 = vunpack.c.l.b16 %v3209
      %v3278 = vunpack.c.h.b16 %v3209
      %v3279 = vunpack.c.l.b16 %v3210
      %v3280 = vunpack.c.h.b16 %v3210
      %v3281 = vunpack.c.l.b16 %v3211
      %v3282 = vunpack.c.h.b16 %v3211
      %v3283 = vunpack.c.l.b16 %v3212
      %v3284 = vunpack.c.h.b16 %v3212
      %v3285 = vunpack.c.l.b16 %v3213
      %v3286 = vunpack.c.h.b16 %v3213
      %v3287 = vunpack.c.l.b16 %v3214
      %v3288 = vunpack.c.h.b16 %v3214
      %v3289 = vunpack.c.l.b16 %v3215
      %v3290 = vunpack.c.h.b16 %v3215
      %v3291 = vunpack.c.l.b16 %v3216
      %v3292 = vunpack.c.h.b16 %v3216
      %v3293 = vunpack.c.l.b16 %v3217
      %v3294 = vunpack.c.h.b16 %v3217
      %v3295 = vunpack.c.l.b16 %v3218
      %v3296 = vunpack.c.h.b16 %v3218
      %v3297 = vunpack.c.l.b16 %v3219
      %v3298 = vunpack.c.h.b16 %v3219
      %v3299 = vunpack.c.l.b16 %v3220
      %v3300 = vunpack.c.h.b16 %v3220
      %v3301 = vunpack.c.l.b16 %v3221
      %v3302 = vunpack.c.h.b16 %v3221
      %v3303 = vunpack.c.l.b16 %v3222
      %v3304 = vunpack.c.h.b16 %v3222
      %v3305 = vunpack.c.l.b16 %v3223
      %v3306 = vunpack.c.h.b16 %v3223
      %v3307 = vunpack.c.l.b16 %v3224
      %v3308 = vunpack.c.h.b16 %v3224
      %v3309 = vunpack.c.l.b16 %v3225
      %v3310 = vunpack.c.h.b16 %v3225
      %v3311 = vunpack.c.l.b16 %v3226
      %v3312 = vunpack.c.h.b16 %v3226
      %v3313 = vunpack.c.l.b16 %v3227
      %v3314 = vunpack.c.h.b16 %v3227
      %v3315 = vunpack.c.l.b16 %v3228
      %v3316 = vunpack.c.h.b16 %v3228
      %v3317 = vunpack.c.l.b16 %v3229
      %v3318 = vunpack.c.h.b16 %v3229
      %v3319 = vunpack.c.l.b16 %v3230
      %v3320 = vunpack.c.h.b16 %v3230
      %v3321 = vunpack.c.l.b16 %v3231
      %v3322 = vunpack.c.h.b16 %v3231
      %v3323 = vunpack.c.l.b16 %v3232
      %v3324 = vunpack.c.h.b16 %v3232
      %v3325 = vunpack.c.l.b16 %v3233
      %v3326 = vunpack.c.h.b16 %v3233
      %v3327 = vunpack.c.l.b16 %v3234
      %v3328 = vunpack.c.h.b16 %v3234
      %v3329 = vunpack.c.l.b16 %v3235
      %v3330 = vunpack.c.h.b16 %v3235
      %v3331 = vunpack.c.l.b16 %v3236
      %v3332 = vunpack.c.h.b16 %v3236
      %v3333 = vpack.c.b16 %v3269, %v3269
      %v3334 = vpack.c.b16 %v3270, %v3270
      %v3335 = vpack.c.b16 %v3271, %v3271
      %v3336 = vpack.c.b16 %v3272, %v3272
      %v3337 = vpack.c.b16 %v3273, %v3273
      %v3338 = vpack.c.b16 %v3274, %v3274
      %v3339 = vpack.c.b16 %v3275, %v3275
      %v3340 = vpack.c.b16 %v3276, %v3276
      %v3341 = vpack.c.b16 %v3277, %v3277
      %v3342 = vpack.c.b16 %v3278, %v3278
      %v3343 = vpack.c.b16 %v3279, %v3279
      %v3344 = vpack.c.b16 %v3280, %v3280
      %v3345 = vpack.c.b16 %v3281, %v3281
      %v3346 = vpack.c.b16 %v3282, %v3282
      %v3347 = vpack.c.b16 %v3283, %v3283
      %v3348 = vpack.c.b16 %v3284, %v3284
      %v3349 = vpack.c.b16 %v3285, %v3285
      %v3350 = vpack.c.b16 %v3286, %v3286
      %v3351 = vpack.c.b16 %v3287, %v3287
      %v3352 = vpack.c.b16 %v3288, %v3288
      %v3353 = vpack.c.b16 %v3289, %v3289
      %v3354 = vpack.c.b16 %v3290, %v3290
      %v3355 = vpack.c.b16 %v3291, %v3291
      %v3356 = vpack.c.b16 %v3292, %v3292
      %v3357 = vpack.c.b16 %v3293, %v3293
      %v3358 = vpack.c.b16 %v3294, %v3294
      %v3359 = vpack.c.b16 %v3295, %v3295
      %v3360 = vpack.c.b16 %v3296, %v3296
      %v3361 = vpack.c.b16 %v3297, %v3297
      %v3362 = vpack.c.b16 %v3298, %v3298
      %v3363 = vpack.c.b16 %v3299, %v3299
      %v3364 = vpack.c.b16 %v3300, %v3300
      %v3365 = vpack.c.b16 %v3301, %v3301
      %v3366 = vpack.c.b16 %v3302, %v3302
      %v3367 = vpack.c.b16 %v3303, %v3303
      %v3368 = vpack.c.b16 %v3304, %v3304
      %v3369 = vpack.c.b16 %v3305, %v3305
      %v3370 = vpack.c.b16 %v3306, %v3306
      %v3371 = vpack.c.b16 %v3307, %v3307
      %v3372 = vpack.c.b16 %v3308, %v3308
      %v3373 = vpack.c.b16 %v3309, %v3309
      %v3374 = vpack.c.b16 %v3310, %v3310
      %v3375 = vpack.c.b16 %v3311, %v3311
      %v3376 = vpack.c.b16 %v3312, %v3312
      %v3377 = vpack.c.b16 %v3313, %v3313
      %v3378 = vpack.c.b16 %v3314, %v3314
      %v3379 = vpack.c.b16 %v3315, %v3315
      %v3380 = vpack.c.b16 %v3316, %v3316
      %v3381 = vpack.c.b16 %v3317, %v3317
      %v3382 = vpack.c.b16 %v3318, %v3318
      %v3383 = vpack.c.b16 %v3319, %v3319
      %v3384 = vpack.c.b16 %v3320, %v3320
      %v3385 = vpack.c.b16 %v3321, %v3321
      %v3386 = vpack.c.b16 %v3322, %v3322
      %v3387 = vpack.c.b16 %v3323, %v3323
      %v3388 = vpack.c.b16 %v3324, %v3324
      %v3389 = vpack.c.b16 %v3325, %v3325
      %v3390 = vpack.c.b16 %v3326, %v3326
      %v3391 = vpack.c.b16 %v3327, %v3327
      %v3392 = vpack.c.b16 %v3328, %v3328
      %v3393 = vpack.c.b16 %v3329, %v3329
      %v3394 = vpack.c.b16 %v3330, %v3330
      %v3395 = vpack.c.b16 %v3331, %v3331
      %v3396 = vpack.c.b16 %v3332, %v3332
      %3461 = vst.msk [vmem:[%s307] sm:$0xf] %vm2820, %v3333
      %3462 = vst.msk [vmem:[%s307 + $0x4] sm:$0xf] %vm2820, %v3334
      %3463 = vst.msk [vmem:[%s307 + $0x8] sm:$0xf] %vm2820, %v3335
      %3464 = vst.msk [vmem:[%s307 + $0xc] sm:$0xf] %vm2820, %v3336
      %3465 = vst.msk [vmem:[%s307 + $0x10] sm:$0xf] %vm2820, %v3337
      %3466 = vst.msk [vmem:[%s307 + $0x14] sm:$0xf] %vm2820, %v3338
      %3467 = vst.msk [vmem:[%s307 + $0x18] sm:$0xf] %vm2820, %v3339
      %3468 = vst.msk [vmem:[%s307 + $0x1c] sm:$0xf] %vm2820, %v3340
      %3469 = vst.msk [vmem:[%s307 + $0x20] sm:$0xf] %vm2820, %v3341
      %3470 = vst.msk [vmem:[%s307 + $0x24] sm:$0xf] %vm2820, %v3342
      %3471 = vst.msk [vmem:[%s307 + $0x28] sm:$0xf] %vm2820, %v3343
      %3472 = vst.msk [vmem:[%s307 + $0x2c] sm:$0xf] %vm2820, %v3344
      %3473 = vst.msk [vmem:[%s307 + $0x30] sm:$0xf] %vm2820, %v3345
      %3474 = vst.msk [vmem:[%s307 + $0x34] sm:$0xf] %vm2820, %v3346
      %3475 = vst.msk [vmem:[%s307 + $0x38] sm:$0xf] %vm2820, %v3347
      %3476 = vst.msk [vmem:[%s307 + $0x3c] sm:$0xf] %vm2820, %v3348
      %3477 = vst.msk [vmem:[%s307 + $0x40] sm:$0xf] %vm2820, %v3349
      %3478 = vst.msk [vmem:[%s307 + $0x44] sm:$0xf] %vm2820, %v3350
      %3479 = vst.msk [vmem:[%s307 + $0x48] sm:$0xf] %vm2820, %v3351
      %3480 = vst.msk [vmem:[%s307 + $0x4c] sm:$0xf] %vm2820, %v3352
      %3481 = vst.msk [vmem:[%s307 + $0x50] sm:$0xf] %vm2820, %v3353
      %3482 = vst.msk [vmem:[%s307 + $0x54] sm:$0xf] %vm2820, %v3354
      %3483 = vst.msk [vmem:[%s307 + $0x58] sm:$0xf] %vm2820, %v3355
      %3484 = vst.msk [vmem:[%s307 + $0x5c] sm:$0xf] %vm2820, %v3356
      %3485 = vst.msk [vmem:[%s307 + $0x60] sm:$0xf] %vm2820, %v3357
      %3486 = vst.msk [vmem:[%s307 + $0x64] sm:$0xf] %vm2820, %v3358
      %3487 = vst.msk [vmem:[%s307 + $0x68] sm:$0xf] %vm2820, %v3359
      %3488 = vst.msk [vmem:[%s307 + $0x6c] sm:$0xf] %vm2820, %v3360
      %3489 = vst.msk [vmem:[%s307 + $0x70] sm:$0xf] %vm2820, %v3361
      %3490 = vst.msk [vmem:[%s307 + $0x74] sm:$0xf] %vm2820, %v3362
      %3491 = vst.msk [vmem:[%s307 + $0x78] sm:$0xf] %vm2820, %v3363
      %3492 = vst.msk [vmem:[%s307 + $0x7c] sm:$0xf] %vm2820, %v3364
      %3493 = vst.msk [vmem:[%s307 + $0x80] sm:$0xf] %vm2820, %v3365
      %3494 = vst.msk [vmem:[%s307 + $0x84] sm:$0xf] %vm2820, %v3366
      %3495 = vst.msk [vmem:[%s307 + $0x88] sm:$0xf] %vm2820, %v3367
      %3496 = vst.msk [vmem:[%s307 + $0x8c] sm:$0xf] %vm2820, %v3368
      %3497 = vst.msk [vmem:[%s307 + $0x90] sm:$0xf] %vm2820, %v3369
      %3498 = vst.msk [vmem:[%s307 + $0x94] sm:$0xf] %vm2820, %v3370
      %3499 = vst.msk [vmem:[%s307 + $0x98] sm:$0xf] %vm2820, %v3371
      %3500 = vst.msk [vmem:[%s307 + $0x9c] sm:$0xf] %vm2820, %v3372
      %3501 = vst.msk [vmem:[%s307 + $0xa0] sm:$0xf] %vm2820, %v3373
      %3502 = vst.msk [vmem:[%s307 + $0xa4] sm:$0xf] %vm2820, %v3374
      %3503 = vst.msk [vmem:[%s307 + $0xa8] sm:$0xf] %vm2820, %v3375
      %3504 = vst.msk [vmem:[%s307 + $0xac] sm:$0xf] %vm2820, %v3376
      %3505 = vst.msk [vmem:[%s307 + $0xb0] sm:$0xf] %vm2820, %v3377
      %3506 = vst.msk [vmem:[%s307 + $0xb4] sm:$0xf] %vm2820, %v3378
      %3507 = vst.msk [vmem:[%s307 + $0xb8] sm:$0xf] %vm2820, %v3379
      %3508 = vst.msk [vmem:[%s307 + $0xbc] sm:$0xf] %vm2820, %v3380
      %3509 = vst.msk [vmem:[%s307 + $0xc0] sm:$0xf] %vm2820, %v3381
      %3510 = vst.msk [vmem:[%s307 + $0xc4] sm:$0xf] %vm2820, %v3382
      %3511 = vst.msk [vmem:[%s307 + $0xc8] sm:$0xf] %vm2820, %v3383
      %3512 = vst.msk [vmem:[%s307 + $0xcc] sm:$0xf] %vm2820, %v3384
      %3513 = vst.msk [vmem:[%s307 + $0xd0] sm:$0xf] %vm2820, %v3385
      %3514 = vst.msk [vmem:[%s307 + $0xd4] sm:$0xf] %vm2820, %v3386
      %3515 = vst.msk [vmem:[%s307 + $0xd8] sm:$0xf] %vm2820, %v3387
      %3516 = vst.msk [vmem:[%s307 + $0xdc] sm:$0xf] %vm2820, %v3388
      %3517 = vst.msk [vmem:[%s307 + $0xe0] sm:$0xf] %vm2820, %v3389
      %3518 = vst.msk [vmem:[%s307 + $0xe4] sm:$0xf] %vm2820, %v3390
      %3519 = vst.msk [vmem:[%s307 + $0xe8] sm:$0xf] %vm2820, %v3391
      %3520 = vst.msk [vmem:[%s307 + $0xec] sm:$0xf] %vm2820, %v3392
      %3521 = vst.msk [vmem:[%s307 + $0xf0] sm:$0xf] %vm2820, %v3393
      %3522 = vst.msk [vmem:[%s307 + $0xf4] sm:$0xf] %vm2820, %v3394
      %3523 = vst.msk [vmem:[%s307 + $0xf8] sm:$0xf] %vm2820, %v3395
      %3524 = vst.msk [vmem:[%s307 + $0xfc] sm:$0xf] %vm2820, %v3396
      %s3525 = smul.u32 64, %s19
      %p3526 = scmp.lt.s32.totalorder %s3525, 127
      %s3527 = scalar_select %p3526, %s3525, 127
      %s3528 = smul.addr %s3527, 4
      %s3529 = scalar_lea.vmem %s5, %s3528
      %s3530 = smul.u32 64, %s19
      %p3531 = scmp.lt.s32.totalorder %s3530, 127
      %s3532 = scalar_select %p3531, %s3530, 127
      %s3533 = smul.addr %s3532, 4
      %s3534 = scalar_lea.vmem %s6, %s3533
      %s3535 = smul.u32 64, %s19
      %p3536 = scmp.lt.s32.totalorder %s3535, 127
      %s3537 = scalar_select %p3536, %s3535, 127
      %s3538 = smul.addr %s3537, 4
      %s3539 = scalar_lea.vmem %s7, %s3538
      // Predicated region
      $region41: #{tpu_custom_call.1} parent=39 // pred_check
        %p3540 = pneg %p147
      $region42: #{tpu_custom_call.1} parent=39 // pred_check_branch
        %3542 = sbr.rel (%p3540) target = $region44
      $region43: #{tpu_custom_call.1} parent=39 // pred_region
        %s3543 = smul.u32 64, %s19
      $region44: #{tpu_custom_call.1} parent=39 // pred_fallthru
        _
      // Predicated region
      $region45: #{tpu_custom_call.1} parent=39 // pred_check
        %p3544 = pneg %p173
      $region46: #{tpu_custom_call.1} parent=39 // pred_check_branch
        %3546 = sbr.rel (%p3544) target = $region48
      $region47: #{tpu_custom_call.1} parent=39 // pred_region
        %s3547 = smul.u32 64, %s19
      $region48: #{tpu_custom_call.1} parent=39 // pred_fallthru
        _
      // Predicated region
      $region49: #{tpu_custom_call.1} parent=39 // pred_check
        %p3548 = pneg %p199
      $region50: #{tpu_custom_call.1} parent=39 // pred_check_branch
        %3550 = sbr.rel (%p3548) target = $region52
      $region51: #{tpu_custom_call.1} parent=39 // pred_region
        %s3551 = smul.u32 64, %s19
      $region52: #{tpu_custom_call.1} parent=39 // pred_fallthru
        _
    $region40: #{tpu_custom_call.1} parent=5 // pred_fallthru
      _
    %p3552 = scmp.le.s32.totalorder 2, %s14
    // Predicated region
    $region53: #{tpu_custom_call.1} parent=5 // pred_check
      %p3553 = pneg %p3552
    $region54: #{tpu_custom_call.1} parent=5 // pred_check_branch
      %3555 = sbr.rel (%p3553) target = $region56
    $region55: #{tpu_custom_call.1} parent=5 // pred_region
      %s3556 = ssub.s32 %s14, 2
      // Predicated region
      $region57: #{tpu_custom_call.1} parent=55 // pred_check
        %p3557 = pneg %p153
      $region58: #{tpu_custom_call.1} parent=55 // pred_check_branch
        %3559 = sbr.rel (%p3557) target = $region60
      $region59: #{tpu_custom_call.1} parent=55 // pred_region
        %s3560 = smul.u32 64, %s20
        %p3561 = scmp.lt.s32.totalorder %s3560, 127
        %s3562 = scalar_select %p3561, %s3560, 127
        %s3563 = smul.addr %s3562, 4
        %s3564 = scalar_lea.vmem %s5, %s3563
      $region60: #{tpu_custom_call.1} parent=55 // pred_fallthru
        _
      // Predicated region
      $region61: #{tpu_custom_call.1} parent=55 // pred_check
        %p3565 = pneg %p179
      $region62: #{tpu_custom_call.1} parent=55 // pred_check_branch
        %3567 = sbr.rel (%p3565) target = $region64
      $region63: #{tpu_custom_call.1} parent=55 // pred_region
        %s3568 = smul.u32 64, %s20
        %p3569 = scmp.lt.s32.totalorder %s3568, 127
        %s3570 = scalar_select %p3569, %s3568, 127
        %s3571 = smul.addr %s3570, 4
        %s3572 = scalar_lea.vmem %s6, %s3571
      $region64: #{tpu_custom_call.1} parent=55 // pred_fallthru
        _
      // Predicated region
      $region65: #{tpu_custom_call.1} parent=55 // pred_check
        %p3573 = pneg %p205
      $region66: #{tpu_custom_call.1} parent=55 // pred_check_branch
        %3575 = sbr.rel (%p3573) target = $region68
      $region67: #{tpu_custom_call.1} parent=55 // pred_region
        %s3576 = smul.u32 64, %s20
        %p3577 = scmp.lt.s32.totalorder %s3576, 127
        %s3578 = scalar_select %p3577, %s3576, 127
        %s3579 = smul.addr %s3578, 4
        %s3580 = scalar_lea.vmem %s7, %s3579
      $region68: #{tpu_custom_call.1} parent=55 // pred_fallthru
        _
    $region56: #{tpu_custom_call.1} parent=5 // pred_fallthru
      _
  $region6: #{tpu_custom_call.1} parent=0 // loop_footer
    %s18 = sadd.s32 1, %s14
  $region7: #{tpu_custom_call.1} parent=0 // loop_footer_branch
    %13 = sbr.rel target = $region3
  $region8: #{tpu_custom_call.1} parent=0 // loop_exit
    _

</llo_original>
